<compile_context>
chip_gen: v7x
topology: tpu7x:2x2x1
jax: 0.10.0
libtpu: 0.0.40
codegen_flags: <defaults>
</compile_context>

<pallas_src>
import functools

import jax
import jax.numpy as jnp
from jax.experimental import pallas as pl
from jax.experimental.pallas import tpu as pltpu


# Set True on TPU v7x (2 TensorCores/chip) so fwd/bwd shard across cores.
# On v5e/v6e (single TensorCore) plain PARALLEL is equivalent and safe.
_USE_CORE_PARALLEL_FOR_DIRECTIONS = False


def _round_up(x, m):
    return ((x + m - 1) // m) * m


def _gru_dimension_semantics():
    dir_sem = (pltpu.CORE_PARALLEL if _USE_CORE_PARALLEL_FOR_DIRECTIONS
               else pltpu.PARALLEL)
    return (dir_sem, pltpu.ARBITRARY)


def _pick_time_chunk(T, Bp, Hp, budget_bytes=8 * 1024 * 1024):
    # double-buffered ig (bf16) + out (f32) chunk blocks
    per_step_bytes = Bp * 3 * Hp * 2 + Bp * Hp * 4
    tc = max(1, min(T, budget_bytes // max(1, 2 * per_step_bytes)))
    while T % tc:
        tc -= 1
    return tc


# ----------------------------------------------------------------------------
# GRU recurrence kernel: grid = (num_directions, num_time_chunks).
# Hidden state is carried across time chunks in a VMEM scratch; the backward
# direction's chunks are visited in reverse via the BlockSpec index_map.
# ----------------------------------------------------------------------------
def _gru_layer_kernel(ig_ref, whh_ref, bhn_ref, out_ref, hlast_ref, h_scr):
    # ig_ref   : (1, Tc, Bp, 3Hp) bf16  x @ W_ih + b_ih + [b_hr | b_hz | 0]
    # whh_ref  : (1, Hp, 3Hp)     bf16  packed hidden weights, 128-aligned gates
    # bhn_ref  : (1, 1, Hp)       f32   hidden bias of the n gate only
    # out_ref  : (1, Tc, Bp, Hp)  f32   per-step hidden states (this chunk)
    # hlast_ref: (1, Bp, Hp)      f32   final hidden state of this direction
    # h_scr    : (Bp, Hp)         f32   hidden-state carry across time chunks
    d = pl.program_id(0)      # 0 = forward, 1 = backward
    k = pl.program_id(1)      # chunk step (backward visits blocks in reverse)
    Tc, Bp = ig_ref.shape[1], ig_ref.shape[2]
    Hp = whh_ref.shape[1]

    @pl.when(k == 0)
    def _init():
        h_scr[...] = jnp.zeros_like(h_scr)

    w_hh = whh_ref[0]                                        # (Hp, 3Hp) bf16, resident
    b_hn = jnp.broadcast_to(bhn_ref[0], (Bp, Hp))            # hoisted once per chunk

    def step(t, h):
        # forward: local t ; backward: Tc-1-t (chunk order reversed by index_map)
        t_eff = d * (Tc - 1) + (1 - 2 * d) * t
        gi = ig_ref[0, t_eff].astype(jnp.float32)            # (Bp, 3Hp)
        gh = jnp.dot(h.astype(jnp.bfloat16), w_hh,
                     preferred_element_type=jnp.float32)     # (Bp, 3Hp) MXU
        r = jax.nn.sigmoid(gi[:, :Hp] + gh[:, :Hp])
        z = jax.nn.sigmoid(gi[:, Hp:2 * Hp] + gh[:, Hp:2 * Hp])
        n = jnp.tanh(gi[:, 2 * Hp:] + r * (gh[:, 2 * Hp:] + b_hn))
        h_new = (1.0 - z) * n + z * h
        out_ref[0, t_eff] = h_new                            # lane-dense (Bp, Hp) store
        return h_new

    h_final = jax.lax.fori_loop(0, Tc, step, h_scr[...], unroll=min(4, Tc))
    h_scr[...] = h_final
    hlast_ref[0] = h_final


def gru_layer(ig, w_hh, b_hn, *, t_chunk=None):
    """Run both directions of one GRU layer in a single pallas_call.

    ig   : (D, T, Bp, 3Hp) bf16 -- precomputed input projections (+ folded biases)
    w_hh : (D, Hp, 3Hp)    bf16
    b_hn : (D, 1, Hp)      f32
    returns: (out (D, T, Bp, Hp) f32, h_last (D, Bp, Hp) f32)
    """
    D, T, Bp, H3 = ig.shape
    Hp = w_hh.shape[1]
    if t_chunk is None:
        t_chunk = _pick_time_chunk(T, Bp, Hp)
    tc = max(1, min(int(t_chunk), T))
    while T % tc:
        tc -= 1
    nchunks = T // tc

    def chunk_map(d, k):
        # forward direction walks chunks 0..C-1, backward walks C-1..0
        return (d, k + d * (nchunks - 1 - 2 * k), 0, 0)

    # VMEM budget: 2x double-buffered chunk blocks + resident weights/carries.
    blk = tc * Bp * H3 * 2 + tc * Bp * Hp * 4
    fixed = Hp * H3 * 2 + Hp * 4 + 2 * Bp * Hp * 4
    vmem_limit = int(min(48 * 2**20, max(16 * 2**20, 4 * blk + 2 * fixed)))

    out_shapes = (jax.ShapeDtypeStruct((D, T, Bp, Hp), jnp.float32),
                  jax.ShapeDtypeStruct((D, Bp, Hp), jnp.float32))
    return pl.pallas_call(
        _gru_layer_kernel,
        out_shape=out_shapes,
        grid_spec=pltpu.PrefetchScalarGridSpec(
            num_scalar_prefetch=0,
            grid=(D, nchunks),
            in_specs=[
                pl.BlockSpec((1, tc, Bp, H3), chunk_map),
                pl.BlockSpec((1, Hp, H3), lambda d, k: (d, 0, 0)),
                pl.BlockSpec((1, 1, Hp), lambda d, k: (d, 0, 0)),
            ],
            out_specs=[
                pl.BlockSpec((1, tc, Bp, Hp), chunk_map),
                pl.BlockSpec((1, Bp, Hp), lambda d, k: (d, 0, 0)),
            ],
            scratch_shapes=[pltpu.VMEM((Bp, Hp), jnp.float32)],
        ),
        compiler_params=pltpu.CompilerParams(
            dimension_semantics=_gru_dimension_semantics(),
            vmem_limit_bytes=vmem_limit,
        ),
    )(ig, w_hh, b_hn)


# ----------------------------------------------------------------------------
# Fused mu/logvar head: one (Bp, D*Hp) x (D*Hp, Zp) matmul, lane-dense output.
# ----------------------------------------------------------------------------
def _head_kernel(h_ref, w_ref, b_ref, o_ref):
    o_ref[...] = (jnp.dot(h_ref[...], w_ref[...],
                          preferred_element_type=jnp.float32) + b_ref[...])


def fused_heads(h, w, b):
    vspec = pl.BlockSpec(memory_space=pltpu.MemorySpace.VMEM)
    return pl.pallas_call(
        _head_kernel,
        out_shape=jax.ShapeDtypeStruct((h.shape[0], w.shape[-1]), jnp.float32),
        in_specs=[vspec, vspec, vspec],
        out_specs=vspec,
    )(h, w, b)


# ----------------------------------------------------------------------------
# Parameter init (raw, PyTorch-equivalent) and packing into padded TPU layout.
# Gate packing convention: columns [r | z | n]; weights are (in_features, 3H).
# ----------------------------------------------------------------------------
def init_params(key, n_vocab, H, num_layers, bidir, z_dim):
    D = 2 if bidir else 1
    hid = H * D
    stdv = 1.0 / (H ** 0.5)
    lstdv = 1.0 / (hid ** 0.5)
    keys = iter(jax.random.split(key, num_layers * D * 4 + 4))

    layers = []
    for l in range(num_layers):
        din = n_vocab if l == 0 else hid
        per_dir = []
        for _ in range(D):
            per_dir.append(dict(
                w_ih=jax.random.uniform(next(keys), (din, 3 * H), jnp.float32, -stdv, stdv),
                w_hh=jax.random.uniform(next(keys), (H, 3 * H), jnp.float32, -stdv, stdv),
                b_ih=jax.random.uniform(next(keys), (3 * H,), jnp.float32, -stdv, stdv),
                b_hh=jax.random.uniform(next(keys), (3 * H,), jnp.float32, -stdv, stdv),
            ))
        layers.append(per_dir)

    mu_w = jax.random.uniform(next(keys), (hid, z_dim), jnp.float32, -lstdv, lstdv)
    mu_b = jax.random.uniform(next(keys), (z_dim,), jnp.float32, -lstdv, lstdv)
    lv_w = jax.random.uniform(next(keys), (hid, z_dim), jnp.float32, -lstdv, lstdv)
    lv_b = jax.random.uniform(next(keys), (z_dim,), jnp.float32, -lstdv, lstdv)
    return dict(layers=layers, mu_w=mu_w, mu_b=mu_b, lv_w=lv_w, lv_b=lv_b,
                n_vocab=n_vocab, H=H, D=D, z_dim=z_dim)


def pack_params(raw):
    """Pad/pack raw params: Hp = round_up(H,128), each gate 128-lane aligned,
    r/z hidden biases folded into the input-gate bias, matmul weights bf16."""
    H, D, V, z = raw['H'], raw['D'], raw['n_vocab'], raw['z_dim']
    Hp = _round_up(H, 128)
    packed_layers = []
    for l, layer in enumerate(raw['layers']):
        w_ih_p, w_hh_p, b_i_p, b_hn_p = [], [], [], []
        for d in range(D):
            p = layer[d]
            if l == 0:
                w = jnp.zeros((V, 3 * Hp), jnp.float32)
                for g in range(3):
                    w = w.at[:, g * Hp:g * Hp + H].set(p['w_ih'][:, g * H:(g + 1) * H])
            else:
                w = jnp.zeros((D * Hp, 3 * Hp), jnp.float32)
                for g in range(3):
                    src = p['w_ih'][:, g * H:(g + 1) * H]
                    for e in range(D):
                        w = w.at[e * Hp:e * Hp + H, g * Hp:g * Hp + H].set(
                            src[e * H:(e + 1) * H, :])
            whh = jnp.zeros((Hp, 3 * Hp), jnp.float32)
            for g in range(3):
                whh = whh.at[:H, g * Hp:g * Hp + H].set(p['w_hh'][:, g * H:(g + 1) * H])
            b_i = jnp.zeros((3 * Hp,), jnp.float32)
            for g in range(3):
                bi = p['b_ih'][g * H:(g + 1) * H]
                if g < 2:                       # fold b_hr, b_hz into ig bias
                    bi = bi + p['b_hh'][g * H:(g + 1) * H]
                b_i = b_i.at[g * Hp:g * Hp + H].set(bi)
            b_hn = jnp.zeros((Hp,), jnp.float32).at[:H].set(p['b_hh'][2 * H:3 * H])
            w_ih_p.append(w); w_hh_p.append(whh); b_i_p.append(b_i); b_hn_p.append(b_hn)
        if l == 0:
            w_ih_stacked = jnp.stack(w_ih_p)                                  # (D, V, 3Hp) f32
        else:
            w_ih_stacked = jnp.stack(
                [w.reshape(D, Hp, 3 * Hp) for w in w_ih_p]).astype(jnp.bfloat16)  # (Do, Di, Hp, 3Hp)
        packed_layers.append(dict(
            w_ih=w_ih_stacked,
            w_hh=jnp.stack(w_hh_p).astype(jnp.bfloat16),                      # (D, Hp, 3Hp)
            b_i=jnp.stack(b_i_p)[:, None, None, :],                           # (D, 1, 1, 3Hp)
            b_hn=jnp.stack(b_hn_p)[:, None, :],                               # (D, 1, Hp)
        ))

    Zp = _round_up(2 * z, 128)
    head_w = jnp.zeros((D * Hp, Zp), jnp.float32)
    head_b = jnp.zeros((1, Zp), jnp.float32)
    for e in range(D):
        head_w = head_w.at[e * Hp:e * Hp + H, :z].set(raw['mu_w'][e * H:(e + 1) * H, :])
        head_w = head_w.at[e * Hp:e * Hp + H, z:2 * z].set(raw['lv_w'][e * H:(e + 1) * H, :])
    head_b = head_b.at[0, :z].set(raw['mu_b'])
    head_b = head_b.at[0, z:2 * z].set(raw['lv_b'])
    return dict(layers=packed_layers, head_w=head_w, head_b=head_b)


# ----------------------------------------------------------------------------
# Forward pass (mirrors RNNEncoder.forward, eval mode).
# ----------------------------------------------------------------------------
def rnn_encoder_forward(tokens, packed, *, z_dim, t_chunk=None):
    """tokens: (B, T) int32 -> (mu, logvar), each (B, z_dim) f32."""
    B, T = tokens.shape
    Bp = max(8, _round_up(B, 8))                       # full f32 sublane tile
    tok = jnp.pad(tokens, ((0, Bp - B), (0, 0)))
    # NOTE: jnp.take clamps out-of-range token ids (PyTorch embedding would error).

    layer_out = None
    h_last = None
    for li, lp in enumerate(packed['layers']):
        if li == 0:
            # Embedding weight is eye(V): layer-0 projection is a pure row gather
            # of the packed (V, 3Hp) table, produced directly in (D,T,Bp,3Hp)
            # order -- no one-hot, no transposes.
            ig = jnp.take(lp['w_ih'], tok.T, axis=1)                   # (D, T, Bp, 3Hp)
        else:
            # next-layer input = fwd||bwd of previous outputs; contract the
            # input-direction axis directly (no HBM transpose/reshape copy).
            ig = jnp.einsum('etbh,deho->dtbo',
                            layer_out.astype(jnp.bfloat16), lp['w_ih'],
                            preferred_element_type=jnp.float32)
        ig = (ig + lp['b_i']).astype(jnp.bfloat16)                     # bias folded once
        layer_out, h_last = gru_layer(ig, lp['w_hh'], lp['b_hn'], t_chunk=t_chunk)

    # torch: h_n[-(1+bidir):] -> last layer's (fwd, bwd), concat on features
    D = h_last.shape[0]
    hcat = jnp.concatenate([h_last[e] for e in range(D)], axis=-1)     # (Bp, D*Hp)
    out = fused_heads(hcat, packed['head_w'], packed['head_b'])        # (Bp, Zp)
    return out[:B, :z_dim], out[:B, z_dim:2 * z_dim]


# ----------------------------------------------------------------------------
# Pure-JAX reference (unpadded, f32) for correctness checking.
# ----------------------------------------------------------------------------
def reference_forward(tokens, raw):
    V, H, D = raw['n_vocab'], raw['H'], raw['D']
    B, T = tokens.shape
    x = jax.nn.one_hot(tokens, V, dtype=jnp.float32)                   # (B, T, V)
    h_lasts = None
    for layer in raw['layers']:
        outs, h_lasts = [], []
        for d in range(D):
            p = layer[d]
            order = range(T) if d == 0 else range(T - 1, -1, -1)
            h = jnp.zeros((B, H), jnp.float32)
            out_d = [None] * T
            for t in order:
                gi = x[:, t, :] @ p['w_ih'] + p['b_ih']
                gh = h @ p['w_hh'] + p['b_hh']
                r = jax.nn.sigmoid(gi[:, :H] + gh[:, :H])
                u = jax.nn.sigmoid(gi[:, H:2 * H] + gh[:, H:2 * H])
                n = jnp.tanh(gi[:, 2 * H:] + r * gh[:, 2 * H:])
                h = (1.0 - u) * n + u * h
                out_d[t] = h
            outs.append(jnp.stack(out_d, axis=1))
            h_lasts.append(h)
        x = jnp.concatenate(outs, axis=-1)                             # (B, T, D*H)
    hcat = jnp.concatenate(h_lasts, axis=-1)
    mu = hcat @ raw['mu_w'] + raw['mu_b']
    lv = hcat @ raw['lv_w'] + raw['lv_b']
    return mu, lv


if __name__ == "__main__":
    n_vocab = 12        # len(vocab), includes '<pad>'
    GRU_dim = 32
    num_layers = 2
    bidir = True
    z_dim = 16
    B, T = 2, 8

    key = jax.random.PRNGKey(0)
    k_tok, k_par = jax.random.split(key)
    tokens = jax.random.randint(k_tok, (B, T), 0, n_vocab, dtype=jnp.int32)
    raw = init_params(k_par, n_vocab, GRU_dim, num_layers, bidir, z_dim)
    packed = pack_params(raw)

    fwd = jax.jit(functools.partial(rnn_encoder_forward, z_dim=z_dim, t_chunk=4))
    mu, logvar = fwd(tokens, packed)
    jax.block_until_ready((mu, logvar))

    assert mu.shape == (B, z_dim) and logvar.shape == (B, z_dim)
    assert mu.dtype == jnp.float32 and logvar.dtype == jnp.float32
    assert bool(jnp.all(jnp.isfinite(mu))) and bool(jnp.all(jnp.isfinite(logvar)))

    mu_ref, lv_ref = reference_forward(tokens, raw)
    assert bool(jnp.allclose(mu, mu_ref, atol=5e-2, rtol=5e-2)), "mu mismatch vs reference"
    assert bool(jnp.allclose(logvar, lv_ref, atol=5e-2, rtol=5e-2)), "logvar mismatch vs reference"

    print("KERNEL_OK")
</pallas_src>

<mosaic_0001>
module attributes {stable_mosaic.version = 11 : i64} {
  func.func @_gru_layer_kernel(%arg0: i32, %arg1: i32, %arg2: memref<1x4x8x384xbf16, #tpu.memory_space<vmem>>, %arg3: memref<1x128x384xbf16, #tpu.memory_space<vmem>>, %arg4: memref<1x1x128xf32, #tpu.memory_space<vmem>>, %arg5: memref<1x4x8x128xf32, #tpu.memory_space<vmem>>, %arg6: memref<1x8x128xf32, #tpu.memory_space<vmem>>, %arg7: memref<8x128xf32, #tpu.memory_space<vmem>>) attributes {dimension_semantics = [#tpu.dimension_semantics<parallel>, #tpu.dimension_semantics<arbitrary>], iteration_bounds = array<i64: 2, 2>, scalar_prefetch = 0 : i64, scratch_operands = 1 : i64, tpu.core_type = #tpu.core_type<tc>, window_params = [{transform_indices = @transform_0, window_bounds = array<i64: 1, 4, 8, 384>}, {transform_indices = @transform_1, window_bounds = array<i64: 1, 128, 384>}, {transform_indices = @transform_2, window_bounds = array<i64: 1, 1, 128>}, {transform_indices = @transform_3, window_bounds = array<i64: 1, 4, 8, 128>}, {transform_indices = @transform_4, window_bounds = array<i64: 1, 8, 128>}]} {
    %c0_i32 = arith.constant 0 : i32
    %0 = arith.cmpi eq, %arg1, %c0_i32 : i32
    %1 = arith.extui %0 : i1 to i32
    %c0_i32_0 = arith.constant 0 : i32
    %2 = arith.cmpi ne, %1, %c0_i32_0 : i32
    scf.if %2 {
      %cst_65 = arith.constant 0.000000e+00 : f32
      %182 = vector.broadcast %cst_65 : f32 to vector<8x128xf32>
      %c0_66 = arith.constant 0 : index
      %c0_67 = arith.constant 0 : index
      %183 = vector.load %arg7[%c0_66, %c0_67] : memref<8x128xf32, #tpu.memory_space<vmem>>, vector<8x128xf32>
      tpu.vector_store %arg7[%c0_66, %c0_67], %182 {strides = array<i32>} : memref<8x128xf32, #tpu.memory_space<vmem>>, vector<8x128xf32>,
    } else {
    }
    %c0 = arith.constant 0 : index
    %c0_1 = arith.constant 0 : index
    %c0_2 = arith.constant 0 : index
    %3 = vector.load %arg3[%c0, %c0_1, %c0_2] : memref<1x128x384xbf16, #tpu.memory_space<vmem>>, vector<1x128x384xbf16>
    %4 = vector.shape_cast %3 : vector<1x128x384xbf16> to vector<128x384xbf16>
    %c0_3 = arith.constant 0 : index
    %c0_4 = arith.constant 0 : index
    %c0_5 = arith.constant 0 : index
    %5 = vector.load %arg4[%c0_3, %c0_4, %c0_5] : memref<1x1x128xf32, #tpu.memory_space<vmem>>, vector<1x1x128xf32>
    %6 = vector.shape_cast %5 : vector<1x1x128xf32> to vector<1x128xf32>
    %7 = vector.shape_cast %6 : vector<1x128xf32> to vector<1x128xf32>
    %8 = vector.broadcast %7 : vector<1x128xf32> to vector<8x128xf32>
    %c0_6 = arith.constant 0 : index
    %c0_7 = arith.constant 0 : index
    %9 = vector.load %arg7[%c0_6, %c0_7] : memref<8x128xf32, #tpu.memory_space<vmem>>, vector<8x128xf32>
    %c0_i32_8 = arith.constant 0 : i32
    %c3_i32 = arith.constant 3 : i32
    %10 = arith.muli %arg0, %c3_i32 : i32
    %c2_i32 = arith.constant 2 : i32
    %11 = arith.muli %c2_i32, %arg0 : i32
    %c1_i32 = arith.constant 1 : i32
    %12 = arith.subi %c1_i32, %11 : i32
    %13 = arith.muli %12, %c0_i32_8 : i32
    %14 = arith.addi %10, %13 : i32
    %c0_9 = arith.constant 0 : index
    %15 = arith.index_cast %14 : i32 to index
    %c0_10 = arith.constant 0 : index
    %c0_11 = arith.constant 0 : index
    %16 = vector.load %arg2[%c0_9, %15, %c0_10, %c0_11] : memref<1x4x8x384xbf16, #tpu.memory_space<vmem>>, vector<1x1x8x384xbf16>
    %17 = vector.shape_cast %16 : vector<1x1x8x384xbf16> to vector<8x384xbf16>
    %18 = arith.extf %17 : vector<8x384xbf16> to vector<8x384xf32>
    %19 = arith.truncf %9 : vector<8x128xf32> to vector<8x128xbf16>
    %cst = arith.constant dense<0.000000e+00> : vector<8x384xf32>
    %20 = tpu.matmul %19, %4, %cst {dimension_numbers = #tpu.dot_dimension_numbers<[1], [0], [0], [1], [0, 0, 1, 1], [], []>} : vector<8x128xbf16>, vector<128x384xbf16>, vector<8x384xf32> -> vector<8x384xf32>
    %21 = vector.extract_strided_slice %18 {offsets = [0, 0], sizes = [8, 128], strides = [1, 1]} : vector<8x384xf32> to vector<8x128xf32>
    %22 = vector.extract_strided_slice %20 {offsets = [0, 0], sizes = [8, 128], strides = [1, 1]} : vector<8x384xf32> to vector<8x128xf32>
    %23 = arith.addf %21, %22 : vector<8x128xf32>
    %24 = arith.negf %23 : vector<8x128xf32>
    %25 = math.exp %24 : vector<8x128xf32>
    %cst_12 = arith.constant 1.000000e+00 : f32
    %26 = vector.broadcast %cst_12 : f32 to vector<8x128xf32>
    %27 = arith.addf %26, %25 : vector<8x128xf32>
    %28 = arith.divf %26, %27 : vector<8x128xf32>
    %29 = vector.extract_strided_slice %18 {offsets = [0, 128], sizes = [8, 128], strides = [1, 1]} : vector<8x384xf32> to vector<8x128xf32>
    %30 = vector.extract_strided_slice %20 {offsets = [0, 128], sizes = [8, 128], strides = [1, 1]} : vector<8x384xf32> to vector<8x128xf32>
    %31 = arith.addf %29, %30 : vector<8x128xf32>
    %32 = arith.negf %31 : vector<8x128xf32>
    %33 = math.exp %32 : vector<8x128xf32>
    %cst_13 = arith.constant 1.000000e+00 : f32
    %34 = vector.broadcast %cst_13 : f32 to vector<8x128xf32>
    %35 = arith.addf %34, %33 : vector<8x128xf32>
    %36 = arith.divf %34, %35 : vector<8x128xf32>
    %37 = vector.extract_strided_slice %18 {offsets = [0, 256], sizes = [8, 128], strides = [1, 1]} : vector<8x384xf32> to vector<8x128xf32>
    %38 = vector.extract_strided_slice %20 {offsets = [0, 256], sizes = [8, 128], strides = [1, 1]} : vector<8x384xf32> to vector<8x128xf32>
    %39 = arith.addf %38, %8 : vector<8x128xf32>
    %40 = arith.mulf %28, %39 : vector<8x128xf32>
    %41 = arith.addf %37, %40 : vector<8x128xf32>
    %42 = math.tanh %41 : vector<8x128xf32>
    %cst_14 = arith.constant 1.000000e+00 : f32
    %43 = vector.broadcast %cst_14 : f32 to vector<8x128xf32>
    %44 = arith.subf %43, %36 : vector<8x128xf32>
    %45 = arith.mulf %44, %42 : vector<8x128xf32>
    %46 = arith.mulf %36, %9 : vector<8x128xf32>
    %47 = arith.addf %45, %46 : vector<8x128xf32>
    %c0_15 = arith.constant 0 : index
    %48 = arith.index_cast %14 : i32 to index
    %c0_16 = arith.constant 0 : index
    %c0_17 = arith.constant 0 : index
    %49 = vector.load %arg5[%c0_15, %48, %c0_16, %c0_17] : memref<1x4x8x128xf32, #tpu.memory_space<vmem>>, vector<1x1x8x128xf32>
    %50 = vector.shape_cast %49 : vector<1x1x8x128xf32> to vector<8x128xf32>
    %51 = vector.shape_cast %47 : vector<8x128xf32> to vector<1x1x8x128xf32>
    tpu.vector_store %arg5[%c0_15, %48, %c0_16, %c0_17], %51 {strides = array<i32>} : memref<1x4x8x128xf32, #tpu.memory_space<vmem>>, vector<1x1x8x128xf32>,
    %c1_i32_18 = arith.constant 1 : i32
    %c3_i32_19 = arith.constant 3 : i32
    %52 = arith.muli %arg0, %c3_i32_19 : i32
    %c2_i32_20 = arith.constant 2 : i32
    %53 = arith.muli %c2_i32_20, %arg0 : i32
    %c1_i32_21 = arith.constant 1 : i32
    %54 = arith.subi %c1_i32_21, %53 : i32
    %55 = arith.muli %54, %c1_i32_18 : i32
    %56 = arith.addi %52, %55 : i32
    %c0_22 = arith.constant 0 : index
    %57 = arith.index_cast %56 : i32 to index
    %c0_23 = arith.constant 0 : index
    %c0_24 = arith.constant 0 : index
    %58 = vector.load %arg2[%c0_22, %57, %c0_23, %c0_24] : memref<1x4x8x384xbf16, #tpu.memory_space<vmem>>, vector<1x1x8x384xbf16>
    %59 = vector.shape_cast %58 : vector<1x1x8x384xbf16> to vector<8x384xbf16>
    %60 = arith.extf %59 : vector<8x384xbf16> to vector<8x384xf32>
    %61 = arith.truncf %47 : vector<8x128xf32> to vector<8x128xbf16>
    %cst_25 = arith.constant dense<0.000000e+00> : vector<8x384xf32>
    %62 = tpu.matmul %61, %4, %cst_25 {dimension_numbers = #tpu.dot_dimension_numbers<[1], [0], [0], [1], [0, 0, 1, 1], [], []>} : vector<8x128xbf16>, vector<128x384xbf16>, vector<8x384xf32> -> vector<8x384xf32>
    %63 = vector.extract_strided_slice %60 {offsets = [0, 0], sizes = [8, 128], strides = [1, 1]} : vector<8x384xf32> to vector<8x128xf32>
    %64 = vector.extract_strided_slice %62 {offsets = [0, 0], sizes = [8, 128], strides = [1, 1]} : vector<8x384xf32> to vector<8x128xf32>
    %65 = arith.addf %63, %64 : vector<8x128xf32>
    %66 = arith.negf %65 : vector<8x128xf32>
    %67 = math.exp %66 : vector<8x128xf32>
    %cst_26 = arith.constant 1.000000e+00 : f32
    %68 = vector.broadcast %cst_26 : f32 to vector<8x128xf32>
    %69 = arith.addf %68, %67 : vector<8x128xf32>
    %70 = arith.divf %68, %69 : vector<8x128xf32>
    %71 = vector.extract_strided_slice %60 {offsets = [0, 128], sizes = [8, 128], strides = [1, 1]} : vector<8x384xf32> to vector<8x128xf32>
    %72 = vector.extract_strided_slice %62 {offsets = [0, 128], sizes = [8, 128], strides = [1, 1]} : vector<8x384xf32> to vector<8x128xf32>
    %73 = arith.addf %71, %72 : vector<8x128xf32>
    %74 = arith.negf %73 : vector<8x128xf32>
    %75 = math.exp %74 : vector<8x128xf32>
    %cst_27 = arith.constant 1.000000e+00 : f32
    %76 = vector.broadcast %cst_27 : f32 to vector<8x128xf32>
    %77 = arith.addf %76, %75 : vector<8x128xf32>
    %78 = arith.divf %76, %77 : vector<8x128xf32>
    %79 = vector.extract_strided_slice %60 {offsets = [0, 256], sizes = [8, 128], strides = [1, 1]} : vector<8x384xf32> to vector<8x128xf32>
    %80 = vector.extract_strided_slice %62 {offsets = [0, 256], sizes = [8, 128], strides = [1, 1]} : vector<8x384xf32> to vector<8x128xf32>
    %81 = arith.addf %80, %8 : vector<8x128xf32>
    %82 = arith.mulf %70, %81 : vector<8x128xf32>
    %83 = arith.addf %79, %82 : vector<8x128xf32>
    %84 = math.tanh %83 : vector<8x128xf32>
    %cst_28 = arith.constant 1.000000e+00 : f32
    %85 = vector.broadcast %cst_28 : f32 to vector<8x128xf32>
    %86 = arith.subf %85, %78 : vector<8x128xf32>
    %87 = arith.mulf %86, %84 : vector<8x128xf32>
    %88 = arith.mulf %78, %47 : vector<8x128xf32>
    %89 = arith.addf %87, %88 : vector<8x128xf32>
    %c0_29 = arith.constant 0 : index
    %90 = arith.index_cast %56 : i32 to index
    %c0_30 = arith.constant 0 : index
    %c0_31 = arith.constant 0 : index
    %91 = vector.load %arg5[%c0_29, %90, %c0_30, %c0_31] : memref<1x4x8x128xf32, #tpu.memory_space<vmem>>, vector<1x1x8x128xf32>
    %92 = vector.shape_cast %91 : vector<1x1x8x128xf32> to vector<8x128xf32>
    %93 = vector.shape_cast %89 : vector<8x128xf32> to vector<1x1x8x128xf32>
    tpu.vector_store %arg5[%c0_29, %90, %c0_30, %c0_31], %93 {strides = array<i32>} : memref<1x4x8x128xf32, #tpu.memory_space<vmem>>, vector<1x1x8x128xf32>,
    %c2_i32_32 = arith.constant 2 : i32
    %c3_i32_33 = arith.constant 3 : i32
    %94 = arith.muli %arg0, %c3_i32_33 : i32
    %c2_i32_34 = arith.constant 2 : i32
    %95 = arith.muli %c2_i32_34, %arg0 : i32
    %c1_i32_35 = arith.constant 1 : i32
    %96 = arith.subi %c1_i32_35, %95 : i32
    %97 = arith.muli %96, %c2_i32_32 : i32
    %98 = arith.addi %94, %97 : i32
    %c0_36 = arith.constant 0 : index
    %99 = arith.index_cast %98 : i32 to index
    %c0_37 = arith.constant 0 : index
    %c0_38 = arith.constant 0 : index
    %100 = vector.load %arg2[%c0_36, %99, %c0_37, %c0_38] : memref<1x4x8x384xbf16, #tpu.memory_space<vmem>>, vector<1x1x8x384xbf16>
    %101 = vector.shape_cast %100 : vector<1x1x8x384xbf16> to vector<8x384xbf16>
    %102 = arith.extf %101 : vector<8x384xbf16> to vector<8x384xf32>
    %103 = arith.truncf %89 : vector<8x128xf32> to vector<8x128xbf16>
    %cst_39 = arith.constant dense<0.000000e+00> : vector<8x384xf32>
    %104 = tpu.matmul %103, %4, %cst_39 {dimension_numbers = #tpu.dot_dimension_numbers<[1], [0], [0], [1], [0, 0, 1, 1], [], []>} : vector<8x128xbf16>, vector<128x384xbf16>, vector<8x384xf32> -> vector<8x384xf32>
    %105 = vector.extract_strided_slice %102 {offsets = [0, 0], sizes = [8, 128], strides = [1, 1]} : vector<8x384xf32> to vector<8x128xf32>
    %106 = vector.extract_strided_slice %104 {offsets = [0, 0], sizes = [8, 128], strides = [1, 1]} : vector<8x384xf32> to vector<8x128xf32>
    %107 = arith.addf %105, %106 : vector<8x128xf32>
    %108 = arith.negf %107 : vector<8x128xf32>
    %109 = math.exp %108 : vector<8x128xf32>
    %cst_40 = arith.constant 1.000000e+00 : f32
    %110 = vector.broadcast %cst_40 : f32 to vector<8x128xf32>
    %111 = arith.addf %110, %109 : vector<8x128xf32>
    %112 = arith.divf %110, %111 : vector<8x128xf32>
    %113 = vector.extract_strided_slice %102 {offsets = [0, 128], sizes = [8, 128], strides = [1, 1]} : vector<8x384xf32> to vector<8x128xf32>
    %114 = vector.extract_strided_slice %104 {offsets = [0, 128], sizes = [8, 128], strides = [1, 1]} : vector<8x384xf32> to vector<8x128xf32>
    %115 = arith.addf %113, %114 : vector<8x128xf32>
    %116 = arith.negf %115 : vector<8x128xf32>
    %117 = math.exp %116 : vector<8x128xf32>
    %cst_41 = arith.constant 1.000000e+00 : f32
    %118 = vector.broadcast %cst_41 : f32 to vector<8x128xf32>
    %119 = arith.addf %118, %117 : vector<8x128xf32>
    %120 = arith.divf %118, %119 : vector<8x128xf32>
    %121 = vector.extract_strided_slice %102 {offsets = [0, 256], sizes = [8, 128], strides = [1, 1]} : vector<8x384xf32> to vector<8x128xf32>
    %122 = vector.extract_strided_slice %104 {offsets = [0, 256], sizes = [8, 128], strides = [1, 1]} : vector<8x384xf32> to vector<8x128xf32>
    %123 = arith.addf %122, %8 : vector<8x128xf32>
    %124 = arith.mulf %112, %123 : vector<8x128xf32>
    %125 = arith.addf %121, %124 : vector<8x128xf32>
    %126 = math.tanh %125 : vector<8x128xf32>
    %cst_42 = arith.constant 1.000000e+00 : f32
    %127 = vector.broadcast %cst_42 : f32 to vector<8x128xf32>
    %128 = arith.subf %127, %120 : vector<8x128xf32>
    %129 = arith.mulf %128, %126 : vector<8x128xf32>
    %130 = arith.mulf %120, %89 : vector<8x128xf32>
    %131 = arith.addf %129, %130 : vector<8x128xf32>
    %c0_43 = arith.constant 0 : index
    %132 = arith.index_cast %98 : i32 to index
    %c0_44 = arith.constant 0 : index
    %c0_45 = arith.constant 0 : index
    %133 = vector.load %arg5[%c0_43, %132, %c0_44, %c0_45] : memref<1x4x8x128xf32, #tpu.memory_space<vmem>>, vector<1x1x8x128xf32>
    %134 = vector.shape_cast %133 : vector<1x1x8x128xf32> to vector<8x128xf32>
    %135 = vector.shape_cast %131 : vector<8x128xf32> to vector<1x1x8x128xf32>
    tpu.vector_store %arg5[%c0_43, %132, %c0_44, %c0_45], %135 {strides = array<i32>} : memref<1x4x8x128xf32, #tpu.memory_space<vmem>>, vector<1x1x8x128xf32>,
    %c3_i32_46 = arith.constant 3 : i32
    %c3_i32_47 = arith.constant 3 : i32
    %136 = arith.muli %arg0, %c3_i32_47 : i32
    %c2_i32_48 = arith.constant 2 : i32
    %137 = arith.muli %c2_i32_48, %arg0 : i32
    %c1_i32_49 = arith.constant 1 : i32
    %138 = arith.subi %c1_i32_49, %137 : i32
    %139 = arith.muli %138, %c3_i32_46 : i32
    %140 = arith.addi %136, %139 : i32
    %c0_50 = arith.constant 0 : index
    %141 = arith.index_cast %140 : i32 to index
    %c0_51 = arith.constant 0 : index
    %c0_52 = arith.constant 0 : index
    %142 = vector.load %arg2[%c0_50, %141, %c0_51, %c0_52] : memref<1x4x8x384xbf16, #tpu.memory_space<vmem>>, vector<1x1x8x384xbf16>
    %143 = vector.shape_cast %142 : vector<1x1x8x384xbf16> to vector<8x384xbf16>
    %144 = arith.extf %143 : vector<8x384xbf16> to vector<8x384xf32>
    %145 = arith.truncf %131 : vector<8x128xf32> to vector<8x128xbf16>
    %cst_53 = arith.constant dense<0.000000e+00> : vector<8x384xf32>
    %146 = tpu.matmul %145, %4, %cst_53 {dimension_numbers = #tpu.dot_dimension_numbers<[1], [0], [0], [1], [0, 0, 1, 1], [], []>} : vector<8x128xbf16>, vector<128x384xbf16>, vector<8x384xf32> -> vector<8x384xf32>
    %147 = vector.extract_strided_slice %144 {offsets = [0, 0], sizes = [8, 128], strides = [1, 1]} : vector<8x384xf32> to vector<8x128xf32>
    %148 = vector.extract_strided_slice %146 {offsets = [0, 0], sizes = [8, 128], strides = [1, 1]} : vector<8x384xf32> to vector<8x128xf32>
    %149 = arith.addf %147, %148 : vector<8x128xf32>
    %150 = arith.negf %149 : vector<8x128xf32>
    %151 = math.exp %150 : vector<8x128xf32>
    %cst_54 = arith.constant 1.000000e+00 : f32
    %152 = vector.broadcast %cst_54 : f32 to vector<8x128xf32>
    %153 = arith.addf %152, %151 : vector<8x128xf32>
    %154 = arith.divf %152, %153 : vector<8x128xf32>
    %155 = vector.extract_strided_slice %144 {offsets = [0, 128], sizes = [8, 128], strides = [1, 1]} : vector<8x384xf32> to vector<8x128xf32>
    %156 = vector.extract_strided_slice %146 {offsets = [0, 128], sizes = [8, 128], strides = [1, 1]} : vector<8x384xf32> to vector<8x128xf32>
    %157 = arith.addf %155, %156 : vector<8x128xf32>
    %158 = arith.negf %157 : vector<8x128xf32>
    %159 = math.exp %158 : vector<8x128xf32>
    %cst_55 = arith.constant 1.000000e+00 : f32
    %160 = vector.broadcast %cst_55 : f32 to vector<8x128xf32>
    %161 = arith.addf %160, %159 : vector<8x128xf32>
    %162 = arith.divf %160, %161 : vector<8x128xf32>
    %163 = vector.extract_strided_slice %144 {offsets = [0, 256], sizes = [8, 128], strides = [1, 1]} : vector<8x384xf32> to vector<8x128xf32>
    %164 = vector.extract_strided_slice %146 {offsets = [0, 256], sizes = [8, 128], strides = [1, 1]} : vector<8x384xf32> to vector<8x128xf32>
    %165 = arith.addf %164, %8 : vector<8x128xf32>
    %166 = arith.mulf %154, %165 : vector<8x128xf32>
    %167 = arith.addf %163, %166 : vector<8x128xf32>
    %168 = math.tanh %167 : vector<8x128xf32>
    %cst_56 = arith.constant 1.000000e+00 : f32
    %169 = vector.broadcast %cst_56 : f32 to vector<8x128xf32>
    %170 = arith.subf %169, %162 : vector<8x128xf32>
    %171 = arith.mulf %170, %168 : vector<8x128xf32>
    %172 = arith.mulf %162, %131 : vector<8x128xf32>
    %173 = arith.addf %171, %172 : vector<8x128xf32>
    %c0_57 = arith.constant 0 : index
    %174 = arith.index_cast %140 : i32 to index
    %c0_58 = arith.constant 0 : index
    %c0_59 = arith.constant 0 : index
    %175 = vector.load %arg5[%c0_57, %174, %c0_58, %c0_59] : memref<1x4x8x128xf32, #tpu.memory_space<vmem>>, vector<1x1x8x128xf32>
    %176 = vector.shape_cast %175 : vector<1x1x8x128xf32> to vector<8x128xf32>
    %177 = vector.shape_cast %173 : vector<8x128xf32> to vector<1x1x8x128xf32>
    tpu.vector_store %arg5[%c0_57, %174, %c0_58, %c0_59], %177 {strides = array<i32>} : memref<1x4x8x128xf32, #tpu.memory_space<vmem>>, vector<1x1x8x128xf32>,
    %c4_i32 = arith.constant 4 : i32
    %c0_60 = arith.constant 0 : index
    %c0_61 = arith.constant 0 : index
    %178 = vector.load %arg7[%c0_60, %c0_61] : memref<8x128xf32, #tpu.memory_space<vmem>>, vector<8x128xf32>
    tpu.vector_store %arg7[%c0_60, %c0_61], %173 {strides = array<i32>} : memref<8x128xf32, #tpu.memory_space<vmem>>, vector<8x128xf32>,
    %c0_62 = arith.constant 0 : index
    %c0_63 = arith.constant 0 : index
    %c0_64 = arith.constant 0 : index
    %179 = vector.load %arg6[%c0_62, %c0_63, %c0_64] : memref<1x8x128xf32, #tpu.memory_space<vmem>>, vector<1x8x128xf32>
    %180 = vector.shape_cast %179 : vector<1x8x128xf32> to vector<8x128xf32>
    %181 = vector.shape_cast %173 : vector<8x128xf32> to vector<1x8x128xf32>
    tpu.vector_store %arg6[%c0_62, %c0_63, %c0_64], %181 {strides = array<i32>} : memref<1x8x128xf32, #tpu.memory_space<vmem>>, vector<1x8x128xf32>,
    return
  }
  func.func @transform_0(%arg0: i32, %arg1: i32) -> (i32, i32, i32, i32) {
    %c2_i32 = arith.constant 2 : i32
    %0 = arith.muli %c2_i32, %arg1 : i32
    %c1_i32 = arith.constant 1 : i32
    %1 = arith.subi %c1_i32, %0 : i32
    %2 = arith.muli %arg0, %1 : i32
    %3 = arith.addi %arg1, %2 : i32
    %c0_i32 = arith.constant 0 : i32
    %c0_i32_0 = arith.constant 0 : i32
    %c0_i32_1 = arith.constant 0 : i32
    return %arg0, %3, %c0_i32, %c0_i32_0 : i32, i32, i32, i32
  }
  func.func @transform_1(%arg0: i32, %arg1: i32) -> (i32, i32, i32) {
    %c0_i32 = arith.constant 0 : i32
    %c0_i32_0 = arith.constant 0 : i32
    %c0_i32_1 = arith.constant 0 : i32
    return %arg0, %c0_i32, %c0_i32_0 : i32, i32, i32
  }
  func.func @transform_2(%arg0: i32, %arg1: i32) -> (i32, i32, i32) {
    %c0_i32 = arith.constant 0 : i32
    %c0_i32_0 = arith.constant 0 : i32
    %c0_i32_1 = arith.constant 0 : i32
    return %arg0, %c0_i32, %c0_i32_0 : i32, i32, i32
  }
  func.func @transform_3(%arg0: i32, %arg1: i32) -> (i32, i32, i32, i32) {
    %c2_i32 = arith.constant 2 : i32
    %0 = arith.muli %c2_i32, %arg1 : i32
    %c1_i32 = arith.constant 1 : i32
    %1 = arith.subi %c1_i32, %0 : i32
    %2 = arith.muli %arg0, %1 : i32
    %3 = arith.addi %arg1, %2 : i32
    %c0_i32 = arith.constant 0 : i32
    %c0_i32_0 = arith.constant 0 : i32
    %c0_i32_1 = arith.constant 0 : i32
    return %arg0, %3, %c0_i32, %c0_i32_0 : i32, i32, i32, i32
  }
  func.func @transform_4(%arg0: i32, %arg1: i32) -> (i32, i32, i32) {
    %c0_i32 = arith.constant 0 : i32
    %c0_i32_0 = arith.constant 0 : i32
    %c0_i32_1 = arith.constant 0 : i32
    return %arg0, %c0_i32, %c0_i32_0 : i32, i32, i32
  }
}

module attributes {stable_mosaic.version = 11 : i64} {
  func.func @_gru_layer_kernel(%arg0: i32, %arg1: i32, %arg2: memref<1x4x8x384xbf16, #tpu.memory_space<vmem>>, %arg3: memref<1x128x384xbf16, #tpu.memory_space<vmem>>, %arg4: memref<1x1x128xf32, #tpu.memory_space<vmem>>, %arg5: memref<1x4x8x128xf32, #tpu.memory_space<vmem>>, %arg6: memref<1x8x128xf32, #tpu.memory_space<vmem>>, %arg7: memref<8x128xf32, #tpu.memory_space<vmem>>) attributes {dimension_semantics = [#tpu.dimension_semantics<parallel>, #tpu.dimension_semantics<arbitrary>], iteration_bounds = array<i64: 2, 2>, scalar_prefetch = 0 : i64, scratch_operands = 1 : i64, tpu.core_type = #tpu.core_type<tc>, window_params = [{transform_indices = @transform_0, window_bounds = array<i64: 1, 4, 8, 384>}, {transform_indices = @transform_1, window_bounds = array<i64: 1, 128, 384>}, {transform_indices = @transform_2, window_bounds = array<i64: 1, 1, 128>}, {transform_indices = @transform_3, window_bounds = array<i64: 1, 4, 8, 128>}, {transform_indices = @transform_4, window_bounds = array<i64: 1, 8, 128>}]} {
    %c0_i32 = arith.constant 0 : i32
    %0 = arith.cmpi eq, %arg1, %c0_i32 : i32
    %1 = arith.extui %0 : i1 to i32
    %c0_i32_0 = arith.constant 0 : i32
    %2 = arith.cmpi ne, %1, %c0_i32_0 : i32
    scf.if %2 {
      %cst_65 = arith.constant 0.000000e+00 : f32
      %182 = vector.broadcast %cst_65 : f32 to vector<8x128xf32>
      %c0_66 = arith.constant 0 : index
      %c0_67 = arith.constant 0 : index
      %183 = vector.load %arg7[%c0_66, %c0_67] : memref<8x128xf32, #tpu.memory_space<vmem>>, vector<8x128xf32>
      tpu.vector_store %arg7[%c0_66, %c0_67], %182 {strides = array<i32>} : memref<8x128xf32, #tpu.memory_space<vmem>>, vector<8x128xf32>,
    } else {
    }
    %c0 = arith.constant 0 : index
    %c0_1 = arith.constant 0 : index
    %c0_2 = arith.constant 0 : index
    %3 = vector.load %arg3[%c0, %c0_1, %c0_2] : memref<1x128x384xbf16, #tpu.memory_space<vmem>>, vector<1x128x384xbf16>
    %4 = vector.shape_cast %3 : vector<1x128x384xbf16> to vector<128x384xbf16>
    %c0_3 = arith.constant 0 : index
    %c0_4 = arith.constant 0 : index
    %c0_5 = arith.constant 0 : index
    %5 = vector.load %arg4[%c0_3, %c0_4, %c0_5] : memref<1x1x128xf32, #tpu.memory_space<vmem>>, vector<1x1x128xf32>
    %6 = vector.shape_cast %5 : vector<1x1x128xf32> to vector<1x128xf32>
    %7 = vector.shape_cast %6 : vector<1x128xf32> to vector<1x128xf32>
    %8 = vector.broadcast %7 : vector<1x128xf32> to vector<8x128xf32>
    %c0_6 = arith.constant 0 : index
    %c0_7 = arith.constant 0 : index
    %9 = vector.load %arg7[%c0_6, %c0_7] : memref<8x128xf32, #tpu.memory_space<vmem>>, vector<8x128xf32>
    %c0_i32_8 = arith.constant 0 : i32
    %c3_i32 = arith.constant 3 : i32
    %10 = arith.muli %arg0, %c3_i32 : i32
    %c2_i32 = arith.constant 2 : i32
    %11 = arith.muli %c2_i32, %arg0 : i32
    %c1_i32 = arith.constant 1 : i32
    %12 = arith.subi %c1_i32, %11 : i32
    %13 = arith.muli %12, %c0_i32_8 : i32
    %14 = arith.addi %10, %13 : i32
    %c0_9 = arith.constant 0 : index
    %15 = arith.index_cast %14 : i32 to index
    %c0_10 = arith.constant 0 : index
    %c0_11 = arith.constant 0 : index
    %16 = vector.load %arg2[%c0_9, %15, %c0_10, %c0_11] : memref<1x4x8x384xbf16, #tpu.memory_space<vmem>>, vector<1x1x8x384xbf16>
    %17 = vector.shape_cast %16 : vector<1x1x8x384xbf16> to vector<8x384xbf16>
    %18 = arith.extf %17 : vector<8x384xbf16> to vector<8x384xf32>
    %19 = arith.truncf %9 : vector<8x128xf32> to vector<8x128xbf16>
    %cst = arith.constant dense<0.000000e+00> : vector<8x384xf32>
    %20 = tpu.matmul %19, %4, %cst {dimension_numbers = #tpu.dot_dimension_numbers<[1], [0], [0], [1], [0, 0, 1, 1], [], []>} : vector<8x128xbf16>, vector<128x384xbf16>, vector<8x384xf32> -> vector<8x384xf32>
    %21 = vector.extract_strided_slice %18 {offsets = [0, 0], sizes = [8, 128], strides = [1, 1]} : vector<8x384xf32> to vector<8x128xf32>
    %22 = vector.extract_strided_slice %20 {offsets = [0, 0], sizes = [8, 128], strides = [1, 1]} : vector<8x384xf32> to vector<8x128xf32>
    %23 = arith.addf %21, %22 : vector<8x128xf32>
    %24 = arith.negf %23 : vector<8x128xf32>
    %25 = math.exp %24 : vector<8x128xf32>
    %cst_12 = arith.constant 1.000000e+00 : f32
    %26 = vector.broadcast %cst_12 : f32 to vector<8x128xf32>
    %27 = arith.addf %26, %25 : vector<8x128xf32>
    %28 = arith.divf %26, %27 : vector<8x128xf32>
    %29 = vector.extract_strided_slice %18 {offsets = [0, 128], sizes = [8, 128], strides = [1, 1]} : vector<8x384xf32> to vector<8x128xf32>
    %30 = vector.extract_strided_slice %20 {offsets = [0, 128], sizes = [8, 128], strides = [1, 1]} : vector<8x384xf32> to vector<8x128xf32>
    %31 = arith.addf %29, %30 : vector<8x128xf32>
    %32 = arith.negf %31 : vector<8x128xf32>
    %33 = math.exp %32 : vector<8x128xf32>
    %cst_13 = arith.constant 1.000000e+00 : f32
    %34 = vector.broadcast %cst_13 : f32 to vector<8x128xf32>
    %35 = arith.addf %34, %33 : vector<8x128xf32>
    %36 = arith.divf %34, %35 : vector<8x128xf32>
    %37 = vector.extract_strided_slice %18 {offsets = [0, 256], sizes = [8, 128], strides = [1, 1]} : vector<8x384xf32> to vector<8x128xf32>
    %38 = vector.extract_strided_slice %20 {offsets = [0, 256], sizes = [8, 128], strides = [1, 1]} : vector<8x384xf32> to vector<8x128xf32>
    %39 = arith.addf %38, %8 : vector<8x128xf32>
    %40 = arith.mulf %28, %39 : vector<8x128xf32>
    %41 = arith.addf %37, %40 : vector<8x128xf32>
    %42 = math.tanh %41 : vector<8x128xf32>
    %cst_14 = arith.constant 1.000000e+00 : f32
    %43 = vector.broadcast %cst_14 : f32 to vector<8x128xf32>
    %44 = arith.subf %43, %36 : vector<8x128xf32>
    %45 = arith.mulf %44, %42 : vector<8x128xf32>
    %46 = arith.mulf %36, %9 : vector<8x128xf32>
    %47 = arith.addf %45, %46 : vector<8x128xf32>
    %c0_15 = arith.constant 0 : index
    %48 = arith.index_cast %14 : i32 to index
    %c0_16 = arith.constant 0 : index
    %c0_17 = arith.constant 0 : index
    %49 = vector.load %arg5[%c0_15, %48, %c0_16, %c0_17] : memref<1x4x8x128xf32, #tpu.memory_space<vmem>>, vector<1x1x8x128xf32>
    %50 = vector.shape_cast %49 : vector<1x1x8x128xf32> to vector<8x128xf32>
    %51 = vector.shape_cast %47 : vector<8x128xf32> to vector<1x1x8x128xf32>
    tpu.vector_store %arg5[%c0_15, %48, %c0_16, %c0_17], %51 {strides = array<i32>} : memref<1x4x8x128xf32, #tpu.memory_space<vmem>>, vector<1x1x8x128xf32>,
    %c1_i32_18 = arith.constant 1 : i32
    %c3_i32_19 = arith.constant 3 : i32
    %52 = arith.muli %arg0, %c3_i32_19 : i32
    %c2_i32_20 = arith.constant 2 : i32
    %53 = arith.muli %c2_i32_20, %arg0 : i32
    %c1_i32_21 = arith.constant 1 : i32
    %54 = arith.subi %c1_i32_21, %53 : i32
    %55 = arith.muli %54, %c1_i32_18 : i32
    %56 = arith.addi %52, %55 : i32
    %c0_22 = arith.constant 0 : index
    %57 = arith.index_cast %56 : i32 to index
    %c0_23 = arith.constant 0 : index
    %c0_24 = arith.constant 0 : index
    %58 = vector.load %arg2[%c0_22, %57, %c0_23, %c0_24] : memref<1x4x8x384xbf16, #tpu.memory_space<vmem>>, vector<1x1x8x384xbf16>
    %59 = vector.shape_cast %58 : vector<1x1x8x384xbf16> to vector<8x384xbf16>
    %60 = arith.extf %59 : vector<8x384xbf16> to vector<8x384xf32>
    %61 = arith.truncf %47 : vector<8x128xf32> to vector<8x128xbf16>
    %cst_25 = arith.constant dense<0.000000e+00> : vector<8x384xf32>
    %62 = tpu.matmul %61, %4, %cst_25 {dimension_numbers = #tpu.dot_dimension_numbers<[1], [0], [0], [1], [0, 0, 1, 1], [], []>} : vector<8x128xbf16>, vector<128x384xbf16>, vector<8x384xf32> -> vector<8x384xf32>
    %63 = vector.extract_strided_slice %60 {offsets = [0, 0], sizes = [8, 128], strides = [1, 1]} : vector<8x384xf32> to vector<8x128xf32>
    %64 = vector.extract_strided_slice %62 {offsets = [0, 0], sizes = [8, 128], strides = [1, 1]} : vector<8x384xf32> to vector<8x128xf32>
    %65 = arith.addf %63, %64 : vector<8x128xf32>
    %66 = arith.negf %65 : vector<8x128xf32>
    %67 = math.exp %66 : vector<8x128xf32>
    %cst_26 = arith.constant 1.000000e+00 : f32
    %68 = vector.broadcast %cst_26 : f32 to vector<8x128xf32>
    %69 = arith.addf %68, %67 : vector<8x128xf32>
    %70 = arith.divf %68, %69 : vector<8x128xf32>
    %71 = vector.extract_strided_slice %60 {offsets = [0, 128], sizes = [8, 128], strides = [1, 1]} : vector<8x384xf32> to vector<8x128xf32>
    %72 = vector.extract_strided_slice %62 {offsets = [0, 128], sizes = [8, 128], strides = [1, 1]} : vector<8x384xf32> to vector<8x128xf32>
    %73 = arith.addf %71, %72 : vector<8x128xf32>
    %74 = arith.negf %73 : vector<8x128xf32>
    %75 = math.exp %74 : vector<8x128xf32>
    %cst_27 = arith.constant 1.000000e+00 : f32
    %76 = vector.broadcast %cst_27 : f32 to vector<8x128xf32>
    %77 = arith.addf %76, %75 : vector<8x128xf32>
    %78 = arith.divf %76, %77 : vector<8x128xf32>
    %79 = vector.extract_strided_slice %60 {offsets = [0, 256], sizes = [8, 128], strides = [1, 1]} : vector<8x384xf32> to vector<8x128xf32>
    %80 = vector.extract_strided_slice %62 {offsets = [0, 256], sizes = [8, 128], strides = [1, 1]} : vector<8x384xf32> to vector<8x128xf32>
    %81 = arith.addf %80, %8 : vector<8x128xf32>
    %82 = arith.mulf %70, %81 : vector<8x128xf32>
    %83 = arith.addf %79, %82 : vector<8x128xf32>
    %84 = math.tanh %83 : vector<8x128xf32>
    %cst_28 = arith.constant 1.000000e+00 : f32
    %85 = vector.broadcast %cst_28 : f32 to vector<8x128xf32>
    %86 = arith.subf %85, %78 : vector<8x128xf32>
    %87 = arith.mulf %86, %84 : vector<8x128xf32>
    %88 = arith.mulf %78, %47 : vector<8x128xf32>
    %89 = arith.addf %87, %88 : vector<8x128xf32>
    %c0_29 = arith.constant 0 : index
    %90 = arith.index_cast %56 : i32 to index
    %c0_30 = arith.constant 0 : index
    %c0_31 = arith.constant 0 : index
    %91 = vector.load %arg5[%c0_29, %90, %c0_30, %c0_31] : memref<1x4x8x128xf32, #tpu.memory_space<vmem>>, vector<1x1x8x128xf32>
    %92 = vector.shape_cast %91 : vector<1x1x8x128xf32> to vector<8x128xf32>
    %93 = vector.shape_cast %89 : vector<8x128xf32> to vector<1x1x8x128xf32>
    tpu.vector_store %arg5[%c0_29, %90, %c0_30, %c0_31], %93 {strides = array<i32>} : memref<1x4x8x128xf32, #tpu.memory_space<vmem>>, vector<1x1x8x128xf32>,
    %c2_i32_32 = arith.constant 2 : i32
    %c3_i32_33 = arith.constant 3 : i32
    %94 = arith.muli %arg0, %c3_i32_33 : i32
    %c2_i32_34 = arith.constant 2 : i32
    %95 = arith.muli %c2_i32_34, %arg0 : i32
    %c1_i32_35 = arith.constant 1 : i32
    %96 = arith.subi %c1_i32_35, %95 : i32
    %97 = arith.muli %96, %c2_i32_32 : i32
    %98 = arith.addi %94, %97 : i32
    %c0_36 = arith.constant 0 : index
    %99 = arith.index_cast %98 : i32 to index
    %c0_37 = arith.constant 0 : index
    %c0_38 = arith.constant 0 : index
    %100 = vector.load %arg2[%c0_36, %99, %c0_37, %c0_38] : memref<1x4x8x384xbf16, #tpu.memory_space<vmem>>, vector<1x1x8x384xbf16>
    %101 = vector.shape_cast %100 : vector<1x1x8x384xbf16> to vector<8x384xbf16>
    %102 = arith.extf %101 : vector<8x384xbf16> to vector<8x384xf32>
    %103 = arith.truncf %89 : vector<8x128xf32> to vector<8x128xbf16>
    %cst_39 = arith.constant dense<0.000000e+00> : vector<8x384xf32>
    %104 = tpu.matmul %103, %4, %cst_39 {dimension_numbers = #tpu.dot_dimension_numbers<[1], [0], [0], [1], [0, 0, 1, 1], [], []>} : vector<8x128xbf16>, vector<128x384xbf16>, vector<8x384xf32> -> vector<8x384xf32>
    %105 = vector.extract_strided_slice %102 {offsets = [0, 0], sizes = [8, 128], strides = [1, 1]} : vector<8x384xf32> to vector<8x128xf32>
    %106 = vector.extract_strided_slice %104 {offsets = [0, 0], sizes = [8, 128], strides = [1, 1]} : vector<8x384xf32> to vector<8x128xf32>
    %107 = arith.addf %105, %106 : vector<8x128xf32>
    %108 = arith.negf %107 : vector<8x128xf32>
    %109 = math.exp %108 : vector<8x128xf32>
    %cst_40 = arith.constant 1.000000e+00 : f32
    %110 = vector.broadcast %cst_40 : f32 to vector<8x128xf32>
    %111 = arith.addf %110, %109 : vector<8x128xf32>
    %112 = arith.divf %110, %111 : vector<8x128xf32>
    %113 = vector.extract_strided_slice %102 {offsets = [0, 128], sizes = [8, 128], strides = [1, 1]} : vector<8x384xf32> to vector<8x128xf32>
    %114 = vector.extract_strided_slice %104 {offsets = [0, 128], sizes = [8, 128], strides = [1, 1]} : vector<8x384xf32> to vector<8x128xf32>
    %115 = arith.addf %113, %114 : vector<8x128xf32>
    %116 = arith.negf %115 : vector<8x128xf32>
    %117 = math.exp %116 : vector<8x128xf32>
    %cst_41 = arith.constant 1.000000e+00 : f32
    %118 = vector.broadcast %cst_41 : f32 to vector<8x128xf32>
    %119 = arith.addf %118, %117 : vector<8x128xf32>
    %120 = arith.divf %118, %119 : vector<8x128xf32>
    %121 = vector.extract_strided_slice %102 {offsets = [0, 256], sizes = [8, 128], strides = [1, 1]} : vector<8x384xf32> to vector<8x128xf32>
    %122 = vector.extract_strided_slice %104 {offsets = [0, 256], sizes = [8, 128], strides = [1, 1]} : vector<8x384xf32> to vector<8x128xf32>
    %123 = arith.addf %122, %8 : vector<8x128xf32>
    %124 = arith.mulf %112, %123 : vector<8x128xf32>
    %125 = arith.addf %121, %124 : vector<8x128xf32>
    %126 = math.tanh %125 : vector<8x128xf32>
    %cst_42 = arith.constant 1.000000e+00 : f32
    %127 = vector.broadcast %cst_42 : f32 to vector<8x128xf32>
    %128 = arith.subf %127, %120 : vector<8x128xf32>
    %129 = arith.mulf %128, %126 : vector<8x128xf32>
    %130 = arith.mulf %120, %89 : vector<8x128xf32>
    %131 = arith.addf %129, %130 : vector<8x128xf32>
    %c0_43 = arith.constant 0 : index
    %132 = arith.index_cast %98 : i32 to index
    %c0_44 = arith.constant 0 : index
    %c0_45 = arith.constant 0 : index
    %133 = vector.load %arg5[%c0_43, %132, %c0_44, %c0_45] : memref<1x4x8x128xf32, #tpu.memory_space<vmem>>, vector<1x1x8x128xf32>
    %134 = vector.shape_cast %133 : vector<1x1x8x128xf32> to vector<8x128xf32>
    %135 = vector.shape_cast %131 : vector<8x128xf32> to vector<1x1x8x128xf32>
    tpu.vector_store %arg5[%c0_43, %132, %c0_44, %c0_45], %135 {strides = array<i32>} : memref<1x4x8x128xf32, #tpu.memory_space<vmem>>, vector<1x1x8x128xf32>,
    %c3_i32_46 = arith.constant 3 : i32
    %c3_i32_47 = arith.constant 3 : i32
    %136 = arith.muli %arg0, %c3_i32_47 : i32
    %c2_i32_48 = arith.constant 2 : i32
    %137 = arith.muli %c2_i32_48, %arg0 : i32
    %c1_i32_49 = arith.constant 1 : i32
    %138 = arith.subi %c1_i32_49, %137 : i32
    %139 = arith.muli %138, %c3_i32_46 : i32
    %140 = arith.addi %136, %139 : i32
    %c0_50 = arith.constant 0 : index
    %141 = arith.index_cast %140 : i32 to index
    %c0_51 = arith.constant 0 : index
    %c0_52 = arith.constant 0 : index
    %142 = vector.load %arg2[%c0_50, %141, %c0_51, %c0_52] : memref<1x4x8x384xbf16, #tpu.memory_space<vmem>>, vector<1x1x8x384xbf16>
    %143 = vector.shape_cast %142 : vector<1x1x8x384xbf16> to vector<8x384xbf16>
    %144 = arith.extf %143 : vector<8x384xbf16> to vector<8x384xf32>
    %145 = arith.truncf %131 : vector<8x128xf32> to vector<8x128xbf16>
    %cst_53 = arith.constant dense<0.000000e+00> : vector<8x384xf32>
    %146 = tpu.matmul %145, %4, %cst_53 {dimension_numbers = #tpu.dot_dimension_numbers<[1], [0], [0], [1], [0, 0, 1, 1], [], []>} : vector<8x128xbf16>, vector<128x384xbf16>, vector<8x384xf32> -> vector<8x384xf32>
    %147 = vector.extract_strided_slice %144 {offsets = [0, 0], sizes = [8, 128], strides = [1, 1]} : vector<8x384xf32> to vector<8x128xf32>
    %148 = vector.extract_strided_slice %146 {offsets = [0, 0], sizes = [8, 128], strides = [1, 1]} : vector<8x384xf32> to vector<8x128xf32>
    %149 = arith.addf %147, %148 : vector<8x128xf32>
    %150 = arith.negf %149 : vector<8x128xf32>
    %151 = math.exp %150 : vector<8x128xf32>
    %cst_54 = arith.constant 1.000000e+00 : f32
    %152 = vector.broadcast %cst_54 : f32 to vector<8x128xf32>
    %153 = arith.addf %152, %151 : vector<8x128xf32>
    %154 = arith.divf %152, %153 : vector<8x128xf32>
    %155 = vector.extract_strided_slice %144 {offsets = [0, 128], sizes = [8, 128], strides = [1, 1]} : vector<8x384xf32> to vector<8x128xf32>
    %156 = vector.extract_strided_slice %146 {offsets = [0, 128], sizes = [8, 128], strides = [1, 1]} : vector<8x384xf32> to vector<8x128xf32>
    %157 = arith.addf %155, %156 : vector<8x128xf32>
    %158 = arith.negf %157 : vector<8x128xf32>
    %159 = math.exp %158 : vector<8x128xf32>
    %cst_55 = arith.constant 1.000000e+00 : f32
    %160 = vector.broadcast %cst_55 : f32 to vector<8x128xf32>
    %161 = arith.addf %160, %159 : vector<8x128xf32>
    %162 = arith.divf %160, %161 : vector<8x128xf32>
    %163 = vector.extract_strided_slice %144 {offsets = [0, 256], sizes = [8, 128], strides = [1, 1]} : vector<8x384xf32> to vector<8x128xf32>
    %164 = vector.extract_strided_slice %146 {offsets = [0, 256], sizes = [8, 128], strides = [1, 1]} : vector<8x384xf32> to vector<8x128xf32>
    %165 = arith.addf %164, %8 : vector<8x128xf32>
    %166 = arith.mulf %154, %165 : vector<8x128xf32>
    %167 = arith.addf %163, %166 : vector<8x128xf32>
    %168 = math.tanh %167 : vector<8x128xf32>
    %cst_56 = arith.constant 1.000000e+00 : f32
    %169 = vector.broadcast %cst_56 : f32 to vector<8x128xf32>
    %170 = arith.subf %169, %162 : vector<8x128xf32>
    %171 = arith.mulf %170, %168 : vector<8x128xf32>
    %172 = arith.mulf %162, %131 : vector<8x128xf32>
    %173 = arith.addf %171, %172 : vector<8x128xf32>
    %c0_57 = arith.constant 0 : index
    %174 = arith.index_cast %140 : i32 to index
    %c0_58 = arith.constant 0 : index
    %c0_59 = arith.constant 0 : index
    %175 = vector.load %arg5[%c0_57, %174, %c0_58, %c0_59] : memref<1x4x8x128xf32, #tpu.memory_space<vmem>>, vector<1x1x8x128xf32>
    %176 = vector.shape_cast %175 : vector<1x1x8x128xf32> to vector<8x128xf32>
    %177 = vector.shape_cast %173 : vector<8x128xf32> to vector<1x1x8x128xf32>
    tpu.vector_store %arg5[%c0_57, %174, %c0_58, %c0_59], %177 {strides = array<i32>} : memref<1x4x8x128xf32, #tpu.memory_space<vmem>>, vector<1x1x8x128xf32>,
    %c4_i32 = arith.constant 4 : i32
    %c0_60 = arith.constant 0 : index
    %c0_61 = arith.constant 0 : index
    %178 = vector.load %arg7[%c0_60, %c0_61] : memref<8x128xf32, #tpu.memory_space<vmem>>, vector<8x128xf32>
    tpu.vector_store %arg7[%c0_60, %c0_61], %173 {strides = array<i32>} : memref<8x128xf32, #tpu.memory_space<vmem>>, vector<8x128xf32>,
    %c0_62 = arith.constant 0 : index
    %c0_63 = arith.constant 0 : index
    %c0_64 = arith.constant 0 : index
    %179 = vector.load %arg6[%c0_62, %c0_63, %c0_64] : memref<1x8x128xf32, #tpu.memory_space<vmem>>, vector<1x8x128xf32>
    %180 = vector.shape_cast %179 : vector<1x8x128xf32> to vector<8x128xf32>
    %181 = vector.shape_cast %173 : vector<8x128xf32> to vector<1x8x128xf32>
    tpu.vector_store %arg6[%c0_62, %c0_63, %c0_64], %181 {strides = array<i32>} : memref<1x8x128xf32, #tpu.memory_space<vmem>>, vector<1x8x128xf32>,
    return
  }
  func.func @transform_0(%arg0: i32, %arg1: i32) -> (i32, i32, i32, i32) {
    %c2_i32 = arith.constant 2 : i32
    %0 = arith.muli %c2_i32, %arg1 : i32
    %c1_i32 = arith.constant 1 : i32
    %1 = arith.subi %c1_i32, %0 : i32
    %2 = arith.muli %arg0, %1 : i32
    %3 = arith.addi %arg1, %2 : i32
    %c0_i32 = arith.constant 0 : i32
    %c0_i32_0 = arith.constant 0 : i32
    %c0_i32_1 = arith.constant 0 : i32
    return %arg0, %3, %c0_i32, %c0_i32_0 : i32, i32, i32, i32
  }
  func.func @transform_1(%arg0: i32, %arg1: i32) -> (i32, i32, i32) {
    %c0_i32 = arith.constant 0 : i32
    %c0_i32_0 = arith.constant 0 : i32
    %c0_i32_1 = arith.constant 0 : i32
    return %arg0, %c0_i32, %c0_i32_0 : i32, i32, i32
  }
  func.func @transform_2(%arg0: i32, %arg1: i32) -> (i32, i32, i32) {
    %c0_i32 = arith.constant 0 : i32
    %c0_i32_0 = arith.constant 0 : i32
    %c0_i32_1 = arith.constant 0 : i32
    return %arg0, %c0_i32, %c0_i32_0 : i32, i32, i32
  }
  func.func @transform_3(%arg0: i32, %arg1: i32) -> (i32, i32, i32, i32) {
    %c2_i32 = arith.constant 2 : i32
    %0 = arith.muli %c2_i32, %arg1 : i32
    %c1_i32 = arith.constant 1 : i32
    %1 = arith.subi %c1_i32, %0 : i32
    %2 = arith.muli %arg0, %1 : i32
    %3 = arith.addi %arg1, %2 : i32
    %c0_i32 = arith.constant 0 : i32
    %c0_i32_0 = arith.constant 0 : i32
    %c0_i32_1 = arith.constant 0 : i32
    return %arg0, %3, %c0_i32, %c0_i32_0 : i32, i32, i32, i32
  }
  func.func @transform_4(%arg0: i32, %arg1: i32) -> (i32, i32, i32) {
    %c0_i32 = arith.constant 0 : i32
    %c0_i32_0 = arith.constant 0 : i32
    %c0_i32_1 = arith.constant 0 : i32
    return %arg0, %c0_i32, %c0_i32_0 : i32, i32, i32
  }
}

module attributes {stable_mosaic.version = 11 : i64} {
  func.func @_head_kernel(%arg0: memref<8x256xf32, #tpu.memory_space<vmem>>, %arg1: memref<256x128xf32, #tpu.memory_space<vmem>>, %arg2: memref<1x128xf32, #tpu.memory_space<vmem>>, %arg3: memref<8x128xf32, #tpu.memory_space<vmem>>) attributes {dimension_semantics = [], scalar_prefetch = 0 : i64, scratch_operands = 0 : i64, tpu.core_type = #tpu.core_type<tc>} {
    %c0 = arith.constant 0 : index
    %c0_0 = arith.constant 0 : index
    %0 = vector.load %arg0[%c0, %c0_0] : memref<8x256xf32, #tpu.memory_space<vmem>>, vector<8x256xf32>
    %c0_1 = arith.constant 0 : index
    %c0_2 = arith.constant 0 : index
    %1 = vector.load %arg1[%c0_1, %c0_2] : memref<256x128xf32, #tpu.memory_space<vmem>>, vector<256x128xf32>
    %cst = arith.constant dense<0.000000e+00> : vector<8x128xf32>
    %2 = tpu.matmul %0, %1, %cst {dimension_numbers = #tpu.dot_dimension_numbers<[1], [0], [0], [1], [0, 0, 1, 1], [], []>} : vector<8x256xf32>, vector<256x128xf32>, vector<8x128xf32> -> vector<8x128xf32>
    %c0_3 = arith.constant 0 : index
    %c0_4 = arith.constant 0 : index
    %3 = vector.load %arg2[%c0_3, %c0_4] : memref<1x128xf32, #tpu.memory_space<vmem>>, vector<1x128xf32>
    %4 = vector.broadcast %3 : vector<1x128xf32> to vector<8x128xf32>
    %5 = arith.addf %2, %4 : vector<8x128xf32>
    %c0_5 = arith.constant 0 : index
    %c0_6 = arith.constant 0 : index
    %6 = vector.load %arg3[%c0_5, %c0_6] : memref<8x128xf32, #tpu.memory_space<vmem>>, vector<8x128xf32>
    tpu.vector_store %arg3[%c0_5, %c0_6], %5 {strides = array<i32>} : memref<8x128xf32, #tpu.memory_space<vmem>>, vector<8x128xf32>,
    return
  }
}

</mosaic_0001>

<llo_original>
// kernel: rnn_encoder_forward.4
$region0: #{rnn_encoder_forward.4}
  #allocation0 [shape = 'u32[]', space=smem, size = 0x4, offset = 0x4, fixed_abs, tag = 'smem constant byte address 0x4 - core index']
  #allocation1 [shape = 'u32[144,128]{1,0:T(1,128)}', space=vmem, size = 0x12000, scoped, tag = 'internal scratch']
  #allocation2 [shape = 'f32[8,128]{1,0:T(8,128)}', space=vmem, size = 0x1000, scoped, tag = 'scratch operand']
  %s0 = inlined_call_operand.vmem [shape: bf16[2,8,8,384], index: 0, kind: input, shape index: {}]
  %s1 = inlined_call_operand.vmem [shape: bf16[2,128,384], index: 1, kind: input, shape index: {}]
  %s2 = inlined_call_operand.vmem [shape: f32[2,1,128], index: 2, kind: input, shape index: {}]
  %s3 = inlined_call_operand.hbm [shape: f32[2,8,8,128], index: 3, kind: output, shape index: {0}]
  %s4 = inlined_call_operand.vmem [shape: f32[2,8,128], index: 4, kind: output, shape index: {1}]
  %5 = xla_tuple %s3, %s4
  %s6 = sld [smem:[#allocation0]]
  $region57: #{rnn_encoder_forward.4} parent=0
    _
  %s8 = ssub.s32 1, %s6
  %s9 = scalar_select 0, %s8, %s6
  $region1: #{rnn_encoder_forward.4} parent=0
    #allocation3 [shape = 'u8[32768]{0}', space=vmem, size = 0x8000, scoped, tag = 'output window, operand 0']
    #allocation4 [shape = 's32[2]{0}', space=sflag, size = 0x8, scoped, tag = 'scoped memory for rnn_encoder_forward.4']
    %10 = vsyncpa [#allocation4], 0
    %s11 = scalar_lea.sflag [#allocation4], 1
    %12 = vsyncpa %s11, 0
    loop: start=0, step=1, limit=6
    $region2: #{rnn_encoder_forward.4} parent=1 // loop_pre_header
      _
    $region3: #{rnn_encoder_forward.4} parent=1 // loop_header
      %s14 = sphi 0, %s18
      %p15 = scmp.ge.s32.totalorder %s14, 6
      %s21 = sphi 0, %s33
      %s22 = sphi 0, %s29
      %s23 = sphi 0, %s21
      %s24 = sphi 0, %s22
      %s25 = sphi 0, %s23
      %s26 = sphi 0, %s24
      %s46 = sphi 0, %s48
      %s49 = sphi 0, %s46
      %s50 = sphi 0, %s49
      %s66 = sphi 0, %s50
      %s72 = sphi 0, %s74
      %s75 = sphi 0, %s72
      %s76 = sphi 0, %s75
      %s92 = sphi 0, %s76
      %s98 = sphi 0, %s100
      %s101 = sphi 0, %s98
      %s102 = sphi 0, %s101
      %s118 = sphi 0, %s102
      %s134 = sphi 0, %s136
      %s137 = sphi 0, %s134
      %s138 = sphi 0, %s137
      %s154 = sphi 0, %s138
      %s160 = sphi 0, %s162
      %s163 = sphi 0, %s160
      %s164 = sphi 0, %s163
      %s180 = sphi 0, %s164
    $region4: #{rnn_encoder_forward.4} parent=1 // loop_header_branch
      %17 = sbr.rel (%p15) target = $region8
    $region5: #{rnn_encoder_forward.4} parent=1 // loop_body
      %s19 = ssub.s32 %s14, 1
      %s20 = ssub.s32 %s14, 2
      %s27 = sadd.s32 1, %s22
      %p28 = scmp.ge.s32.totalorder %s27, 2
      %s29 = scalar_select %p28, 0, %s27
      %s30 = sadd.s32 1, %s21
      %s31 = scalar_select %p28, %s30, %s21
      %p32 = scmp.ge.s32.totalorder %s31, 2
      %s33 = scalar_select %p32, 0, %s31
      %s34 = smul.u32 %s22, 2
      %s35 = ssub.s32 1, %s34
      %s36 = smul.u32 %s21, %s35
      %s37 = sadd.s32 %s22, %s36
      %s38 = smul.u32 %s29, 2
      %s39 = ssub.s32 1, %s38
      %s40 = smul.u32 %s33, %s39
      %s41 = sadd.s32 %s29, %s40
      %s42 = ssub.s32 %s21, %s33
      %s43 = ssub.s32 %s37, %s41
      %s44 = sor.u32 %s42, %s43
      %p45 = scmp.eq.s32.totalorder %s44, 0
      %s47 = sadd.s32 %s46, 1
      %s48 = scalar_select %p45, %s46, %s47
      %p51 = pneg %p45
      %p52 = scmp.eq.s32.totalorder %s14, 3
      %p53 = por %p51, %p52
      %p54 = scmp.ne.s32.totalorder %s46, %s49
      %p55 = scmp.eq.s32.totalorder %s14, 0
      %p56 = por %p54, %p55
      %p57 = scmp.ne.s32.totalorder %s46, %s49
      %p58 = scmp.eq.s32.totalorder %s19, 3
      %p59 = por %p57, %p58
      %p60 = scmp.ne.s32.totalorder %s49, %s50
      %p61 = scmp.eq.s32.totalorder %s19, 0
      %p62 = por %p60, %p61
      %p63 = scmp.ne.s32.totalorder %s49, %s50
      %p64 = scmp.eq.s32.totalorder %s20, 3
      %p65 = por %p63, %p64
      %p67 = scmp.ne.s32.totalorder %s50, %s66
      %p68 = scmp.eq.s32.totalorder %s20, 0
      %p69 = por %p67, %p68
      %s70 = ssub.s32 %s21, %s33
      %p71 = scmp.eq.s32.totalorder %s70, 0
      %s73 = sadd.s32 %s72, 1
      %s74 = scalar_select %p71, %s72, %s73
      %p77 = pneg %p71
      %p78 = scmp.eq.s32.totalorder %s14, 3
      %p79 = por %p77, %p78
      %p80 = scmp.ne.s32.totalorder %s72, %s75
      %p81 = scmp.eq.s32.totalorder %s14, 0
      %p82 = por %p80, %p81
      %p83 = scmp.ne.s32.totalorder %s72, %s75
      %p84 = scmp.eq.s32.totalorder %s19, 3
      %p85 = por %p83, %p84
      %p86 = scmp.ne.s32.totalorder %s75, %s76
      %p87 = scmp.eq.s32.totalorder %s19, 0
      %p88 = por %p86, %p87
      %p89 = scmp.ne.s32.totalorder %s75, %s76
      %p90 = scmp.eq.s32.totalorder %s20, 3
      %p91 = por %p89, %p90
      %p93 = scmp.ne.s32.totalorder %s76, %s92
      %p94 = scmp.eq.s32.totalorder %s20, 0
      %p95 = por %p93, %p94
      %s96 = ssub.s32 %s21, %s33
      %p97 = scmp.eq.s32.totalorder %s96, 0
      %s99 = sadd.s32 %s98, 1
      %s100 = scalar_select %p97, %s98, %s99
      %p103 = pneg %p97
      %p104 = scmp.eq.s32.totalorder %s14, 3
      %p105 = por %p103, %p104
      %p106 = scmp.ne.s32.totalorder %s98, %s101
      %p107 = scmp.eq.s32.totalorder %s14, 0
      %p108 = por %p106, %p107
      %p109 = scmp.ne.s32.totalorder %s98, %s101
      %p110 = scmp.eq.s32.totalorder %s19, 3
      %p111 = por %p109, %p110
      %p112 = scmp.ne.s32.totalorder %s101, %s102
      %p113 = scmp.eq.s32.totalorder %s19, 0
      %p114 = por %p112, %p113
      %p115 = scmp.ne.s32.totalorder %s101, %s102
      %p116 = scmp.eq.s32.totalorder %s20, 3
      %p117 = por %p115, %p116
      %p119 = scmp.ne.s32.totalorder %s102, %s118
      %p120 = scmp.eq.s32.totalorder %s20, 0
      %p121 = por %p119, %p120
      %s122 = smul.u32 %s22, 2
      %s123 = ssub.s32 1, %s122
      %s124 = smul.u32 %s21, %s123
      %s125 = sadd.s32 %s22, %s124
      %s126 = smul.u32 %s29, 2
      %s127 = ssub.s32 1, %s126
      %s128 = smul.u32 %s33, %s127
      %s129 = sadd.s32 %s29, %s128
      %s130 = ssub.s32 %s21, %s33
      %s131 = ssub.s32 %s125, %s129
      %s132 = sor.u32 %s130, %s131
      %p133 = scmp.eq.s32.totalorder %s132, 0
      %s135 = sadd.s32 %s134, 1
      %s136 = scalar_select %p133, %s134, %s135
      %p139 = pneg %p133
      %p140 = scmp.eq.s32.totalorder %s14, 3
      %p141 = por %p139, %p140
      %p142 = scmp.ne.s32.totalorder %s134, %s137
      %p143 = scmp.eq.s32.totalorder %s14, 0
      %p144 = por %p142, %p143
      %p145 = scmp.ne.s32.totalorder %s134, %s137
      %p146 = scmp.eq.s32.totalorder %s19, 3
      %p147 = por %p145, %p146
      %p148 = scmp.ne.s32.totalorder %s137, %s138
      %p149 = scmp.eq.s32.totalorder %s19, 0
      %p150 = por %p148, %p149
      %p151 = scmp.ne.s32.totalorder %s137, %s138
      %p152 = scmp.eq.s32.totalorder %s20, 3
      %p153 = por %p151, %p152
      %p155 = scmp.ne.s32.totalorder %s138, %s154
      %p156 = scmp.eq.s32.totalorder %s20, 0
      %p157 = por %p155, %p156
      %s158 = ssub.s32 %s21, %s33
      %p159 = scmp.eq.s32.totalorder %s158, 0
      %s161 = sadd.s32 %s160, 1
      %s162 = scalar_select %p159, %s160, %s161
      %p165 = pneg %p159
      %p166 = scmp.eq.s32.totalorder %s14, 3
      %p167 = por %p165, %p166
      %p168 = scmp.ne.s32.totalorder %s160, %s163
      %p169 = scmp.eq.s32.totalorder %s14, 0
      %p170 = por %p168, %p169
      %p171 = scmp.ne.s32.totalorder %s160, %s163
      %p172 = scmp.eq.s32.totalorder %s19, 3
      %p173 = por %p171, %p172
      %p174 = scmp.ne.s32.totalorder %s163, %s164
      %p175 = scmp.eq.s32.totalorder %s19, 0
      %p176 = por %p174, %p175
      %p177 = scmp.ne.s32.totalorder %s163, %s164
      %p178 = scmp.eq.s32.totalorder %s20, 3
      %p179 = por %p177, %p178
      %p181 = scmp.ne.s32.totalorder %s164, %s180
      %p182 = scmp.eq.s32.totalorder %s20, 0
      %p183 = por %p181, %p182
      %p184 = scmp.le.s32.totalorder 1, %s14
      %p185 = scmp.lt.s32.totalorder %s14, 5
      %p186 = pnand %p184, %p185
      %p187 = pneg %p186
      // Predicated region
      $region9: #{rnn_encoder_forward.4} parent=5 // pred_check
        _
      $region10: #{rnn_encoder_forward.4} parent=5 // pred_check_branch
        %189 = sbr.rel (%p186) target = $region12
      $region11: #{rnn_encoder_forward.4} parent=5 // pred_region
        %s190 = ssub.s32 %s14, 1
      $region12: #{rnn_encoder_forward.4} parent=5 // pred_fallthru
        _
      %p191 = scmp.lt.s32.totalorder %s14, 4
      // Predicated region
      $region13: #{rnn_encoder_forward.4} parent=5 // pred_check
        %p192 = pneg %p191
      $region14: #{rnn_encoder_forward.4} parent=5 // pred_check_branch
        %194 = sbr.rel (%p192) target = $region16
      $region15: #{rnn_encoder_forward.4} parent=5 // pred_region
        // Predicated region
        $region17: #{rnn_encoder_forward.4} parent=15 // pred_check
          %p195 = pneg %p56
        $region18: #{rnn_encoder_forward.4} parent=15 // pred_check_branch
          %197 = sbr.rel (%p195) target = $region20
        $region19: #{rnn_encoder_forward.4} parent=15 // pred_region
          %s198 = smul.u32 %s22, 2
          %s199 = ssub.s32 1, %s198
          %s200 = smul.u32 %s21, %s199
          %s201 = sadd.s32 %s22, %s200
          %s202 = smul.u32 4, %s201
          %p203 = scmp.lt.s32.totalorder %s21, 1
          %s204 = scalar_select %p203, %s21, 1
          %p205 = scmp.lt.s32.totalorder %s202, 7
          %s206 = scalar_select %p205, %s202, 7
          %s207 = smul.addr %s206, 3
          %s208 = smul.addr %s204, 24
          %s209 = sadd.s32 %s207, %s208
          %s210 = smul.addr %s209, 4
          %s211 = scalar_lea.vmem %s0, %s210
          %s212 = smul.u32 %s22, 2
          %s213 = ssub.s32 1, %s212
          %s214 = smul.u32 %s21, %s213
          %s215 = sadd.s32 %s22, %s214
          %s216 = smul.u32 4, %s215
        $region20: #{rnn_encoder_forward.4} parent=15 // pred_fallthru
          _
        // Predicated region
        $region21: #{rnn_encoder_forward.4} parent=15 // pred_check
          %p217 = pneg %p82
        $region22: #{rnn_encoder_forward.4} parent=15 // pred_check_branch
          %219 = sbr.rel (%p217) target = $region24
        $region23: #{rnn_encoder_forward.4} parent=15 // pred_region
          %p220 = scmp.lt.s32.totalorder %s21, 1
          %s221 = scalar_select %p220, %s21, 1
          %s222 = smul.addr %s221, 48
          %s223 = smul.addr %s222, 4
          %s224 = scalar_lea.vmem %s1, %s223
        $region24: #{rnn_encoder_forward.4} parent=15 // pred_fallthru
          _
        // Predicated region
        $region25: #{rnn_encoder_forward.4} parent=15 // pred_check
          %p225 = pneg %p108
        $region26: #{rnn_encoder_forward.4} parent=15 // pred_check_branch
          %227 = sbr.rel (%p225) target = $region28
        $region27: #{rnn_encoder_forward.4} parent=15 // pred_region
          %p228 = scmp.lt.s32.totalorder %s21, 1
          %s229 = scalar_select %p228, %s21, 1
          %s230 = scalar_lea.vmem %s2, %s229
        $region28: #{rnn_encoder_forward.4} parent=15 // pred_fallthru
          _
      $region16: #{rnn_encoder_forward.4} parent=5 // pred_fallthru
        _
      %p231 = scmp.le.s32.totalorder 1, %s14
      %p232 = scmp.lt.s32.totalorder %s14, 5
      %p233 = pnand %p231, %p232
      %p234 = pneg %p233
      // Predicated region
      $region29: #{rnn_encoder_forward.4} parent=5 // pred_check
        _
      $region30: #{rnn_encoder_forward.4} parent=5 // pred_check_branch
        %236 = sbr.rel (%p233) target = $region32
      $region31: #{rnn_encoder_forward.4} parent=5 // pred_region
        %s237 = ssub.s32 %s14, 1
        %s238 = smul.u32 %s24, 2
        %s239 = ssub.s32 1, %s238
        %s240 = smul.u32 %s23, %s239
        %s241 = sadd.s32 %s24, %s240
        %s242 = smul.u32 4, %s241
        %p243 = scmp.lt.s32.totalorder %s23, 1
        %s244 = scalar_select %p243, %s23, 1
        %p245 = scmp.lt.s32.totalorder %s242, 7
        %s246 = scalar_select %p245, %s242, 7
        %s247 = smul.addr %s246, 3
        %s248 = smul.addr %s244, 24
        %s249 = sadd.s32 %s247, %s248
        %s250 = smul.addr %s249, 4
        %s251 = scalar_lea.vmem %s0, %s250
        %p252 = pneg %p62
        %p253 = pneg %p59
        %p254 = scmp.lt.s32.totalorder %s23, 1
        %s255 = scalar_select %p254, %s23, 1
        %s256 = smul.addr %s255, 48
        %s257 = smul.addr %s256, 4
        %s258 = scalar_lea.vmem %s1, %s257
        %p259 = pneg %p88
        %p260 = pneg %p85
        %p261 = scmp.lt.s32.totalorder %s23, 1
        %s262 = scalar_select %p261, %s23, 1
        %s263 = scalar_lea.vmem %s2, %s262
        %p264 = pneg %p114
        %p265 = pneg %p111
        %p266 = pneg %p150
        %p267 = pneg %p147
        %s268 = sand.u32 %s137, 1
        %s269 = scalar_lea.sflag [#allocation4], %s268
        %s270 = sand.u32 %s137, 1
        %s271 = smul.addr %s270, 32
        %s272 = scalar_lea.vmem [#allocation3], %s271
        %p273 = pneg %p176
        %p274 = pneg %p173
        %p275 = scmp.lt.s32.totalorder %s23, 1
        %s276 = scalar_select %p275, %s23, 1
        %s277 = smul.addr %s276, 8
        %s278 = scalar_lea.vmem %s4, %s277
        %s279 = smul.u32 %s24, 2
        %s280 = ssub.s32 1, %s279
        %s281 = smul.u32 %s23, %s280
        %s282 = sadd.s32 %s24, %s281
        %s283 = smul.u32 4, %s282
        %p284 = scmp.lt.s32.totalorder %s23, 1
        %s285 = scalar_select %p284, %s23, 1
        %p286 = scmp.lt.s32.totalorder %s283, 7
        %s287 = scalar_select %p286, %s283, 7
        %s288 = smul.addr %s287, 3
        %s289 = smul.addr %s285, 24
        %s290 = sadd.s32 %s288, %s289
        %s291 = smul.addr %s290, 4
        %s292 = scalar_lea.vmem %s0, %s291
        %s293 = smul.u32 %s24, 2
        %s294 = ssub.s32 1, %s293
        %s295 = smul.u32 %s23, %s294
        %s296 = sadd.s32 %s24, %s295
        %s297 = smul.u32 4, %s296
        %p298 = scmp.lt.s32.totalorder %s23, 1
        %s299 = scalar_select %p298, %s23, 1
        %s300 = smul.addr %s299, 48
        %s301 = smul.addr %s300, 4
        %s302 = scalar_lea.vmem %s1, %s301
        %p303 = scmp.lt.s32.totalorder %s23, 1
        %s304 = scalar_select %p303, %s23, 1
        %s305 = scalar_lea.vmem %s2, %s304
        %s306 = smul.u32 %s24, 2
        %s307 = ssub.s32 1, %s306
        %s308 = smul.u32 %s23, %s307
        %s309 = sadd.s32 %s24, %s308
        %s310 = smul.u32 4, %s309
        %p311 = scmp.lt.s32.totalorder %s23, 1
        %s312 = scalar_select %p311, %s23, 1
        %s313 = smul.addr %s312, 8
        %s314 = scalar_lea.vmem %s4, %s313
        %p316 = scmp.eq.s32.totalorder %s24, 0
        // Predicated region
        $region33: #{rnn_encoder_forward.4} parent=31 // pred_check
          %p317 = pneg %p316
        $region34: #{rnn_encoder_forward.4} parent=31 // pred_check_branch
          %319 = sbr.rel (%p317) target = $region36
        $region35: #{rnn_encoder_forward.4} parent=31 // pred_region
          %320 = vst [vmem:[#allocation2] sm:$0xff] 0.0
        $region36: #{rnn_encoder_forward.4} parent=31 // pred_fallthru
          _
        %v321 = vld [vmem:[%s302] sm:$0xff]
        %v322 = vld [vmem:[%s302 + $0x8] sm:$0xf]
        %v323 = vld [vmem:[%s302 + $0xc] sm:$0xff]
        %v324 = vld [vmem:[%s302 + $0x14] sm:$0xf]
        %v325 = vld [vmem:[%s302 + $0x18] sm:$0xff]
        %v326 = vld [vmem:[%s302 + $0x20] sm:$0xf]
        %v327 = vld [vmem:[%s302 + $0x24] sm:$0xff]
        %v328 = vld [vmem:[%s302 + $0x2c] sm:$0xf]
        %v329 = vld [vmem:[%s302 + $0x30] sm:$0xff]
        %v330 = vld [vmem:[%s302 + $0x38] sm:$0xf]
        %v331 = vld [vmem:[%s302 + $0x3c] sm:$0xff]
        %v332 = vld [vmem:[%s302 + $0x44] sm:$0xf]
        %v333 = vld [vmem:[%s302 + $0x48] sm:$0xff]
        %v334 = vld [vmem:[%s302 + $0x50] sm:$0xf]
        %v335 = vld [vmem:[%s302 + $0x54] sm:$0xff]
        %v336 = vld [vmem:[%s302 + $0x5c] sm:$0xf]
        %v337 = vld [vmem:[%s302 + $0x60] sm:$0xff]
        %v338 = vld [vmem:[%s302 + $0x68] sm:$0xf]
        %v339 = vld [vmem:[%s302 + $0x6c] sm:$0xff]
        %v340 = vld [vmem:[%s302 + $0x74] sm:$0xf]
        %v341 = vld [vmem:[%s302 + $0x78] sm:$0xff]
        %v342 = vld [vmem:[%s302 + $0x80] sm:$0xf]
        %v343 = vld [vmem:[%s302 + $0x84] sm:$0xff]
        %v344 = vld [vmem:[%s302 + $0x8c] sm:$0xf]
        %v345 = vld [vmem:[%s302 + $0x90] sm:$0xff]
        %v346 = vld [vmem:[%s302 + $0x98] sm:$0xf]
        %v347 = vld [vmem:[%s302 + $0x9c] sm:$0xff]
        %v348 = vld [vmem:[%s302 + $0xa4] sm:$0xf]
        %v349 = vld [vmem:[%s302 + $0xa8] sm:$0xff]
        %v350 = vld [vmem:[%s302 + $0xb0] sm:$0xf]
        %v351 = vld [vmem:[%s302 + $0xb4] sm:$0xff]
        %v352 = vld [vmem:[%s302 + $0xbc] sm:$0xf]
        %v353 = vld [vmem:[%s305] sm:$0x1]
        %v355 = vlaneseq
        %v356 = vshrl.u32 %v355, 7
        %v357 = vsub.s32 0, %v356
        %v358 = vrot.slane %v353, %v357
        %v360 = vld [vmem:[#allocation2] sm:$0xff]
        %s361 = smul.u32 %s23, 3
        %s362 = smul.u32 %s361, 3
        %s363 = smul.addr %s362, 4
        %s364 = scalar_lea.vmem %s292, %s363
        %v365 = vld [vmem:[%s364] sm:$0xff]
        %v366 = vld [vmem:[%s364 + $0x8] sm:$0xf]
        %v367 = vunpack.c.l.bf16 %v365
        %v368 = vunpack.c.h.bf16 %v365
        %v369 = vunpack.c.l.bf16 %v366
        %v370 = vpack.c.bf16 %v360, %v360
        %v403 = vunpack.c.l.b16 %v321
        %v404 = vunpack.c.h.b16 %v321
        %v405 = vunpack.c.l.b16 %v322
        %v406 = vunpack.c.l.b16 %v323
        %v407 = vunpack.c.h.b16 %v323
        %v408 = vunpack.c.l.b16 %v324
        %v409 = vunpack.c.l.b16 %v325
        %v410 = vunpack.c.h.b16 %v325
        %v411 = vunpack.c.l.b16 %v326
        %v412 = vunpack.c.l.b16 %v327
        %v413 = vunpack.c.h.b16 %v327
        %v414 = vunpack.c.l.b16 %v328
        %v415 = vunpack.c.l.b16 %v329
        %v416 = vunpack.c.h.b16 %v329
        %v417 = vunpack.c.l.b16 %v330
        %v418 = vunpack.c.l.b16 %v331
        %v419 = vunpack.c.h.b16 %v331
        %v420 = vunpack.c.l.b16 %v332
        %v421 = vunpack.c.l.b16 %v333
        %v422 = vunpack.c.h.b16 %v333
        %v423 = vunpack.c.l.b16 %v334
        %v424 = vunpack.c.l.b16 %v335
        %v425 = vunpack.c.h.b16 %v335
        %v426 = vunpack.c.l.b16 %v336
        %v427 = vunpack.c.l.b16 %v337
        %v428 = vunpack.c.h.b16 %v337
        %v429 = vunpack.c.l.b16 %v338
        %v430 = vunpack.c.l.b16 %v339
        %v431 = vunpack.c.h.b16 %v339
        %v432 = vunpack.c.l.b16 %v340
        %v433 = vunpack.c.l.b16 %v341
        %v434 = vunpack.c.h.b16 %v341
        %v435 = vunpack.c.l.b16 %v342
        %v436 = vunpack.c.l.b16 %v343
        %v437 = vunpack.c.h.b16 %v343
        %v438 = vunpack.c.l.b16 %v344
        %v439 = vunpack.c.l.b16 %v345
        %v440 = vunpack.c.h.b16 %v345
        %v441 = vunpack.c.l.b16 %v346
        %v442 = vunpack.c.l.b16 %v347
        %v443 = vunpack.c.h.b16 %v347
        %v444 = vunpack.c.l.b16 %v348
        %v445 = vunpack.c.l.b16 %v349
        %v446 = vunpack.c.h.b16 %v349
        %v447 = vunpack.c.l.b16 %v350
        %v448 = vunpack.c.l.b16 %v351
        %v449 = vunpack.c.h.b16 %v351
        %v450 = vunpack.c.l.b16 %v352
        %v451 = vpack.c.b16 %v406, %v403
        %v452 = vpack.c.b16 %v407, %v404
        %v453 = vpack.c.b16 %v408, %v405
        %v454 = vpack.c.b16 %v412, %v409
        %v455 = vpack.c.b16 %v413, %v410
        %v456 = vpack.c.b16 %v414, %v411
        %v457 = vpack.c.b16 %v418, %v415
        %v458 = vpack.c.b16 %v419, %v416
        %v459 = vpack.c.b16 %v420, %v417
        %v460 = vpack.c.b16 %v424, %v421
        %v461 = vpack.c.b16 %v425, %v422
        %v462 = vpack.c.b16 %v426, %v423
        %v463 = vpack.c.b16 %v430, %v427
        %v464 = vpack.c.b16 %v431, %v428
        %v465 = vpack.c.b16 %v432, %v429
        %v466 = vpack.c.b16 %v436, %v433
        %v467 = vpack.c.b16 %v437, %v434
        %v468 = vpack.c.b16 %v438, %v435
        %v469 = vpack.c.b16 %v442, %v439
        %v470 = vpack.c.b16 %v443, %v440
        %v471 = vpack.c.b16 %v444, %v441
        %v472 = vpack.c.b16 %v448, %v445
        %v473 = vpack.c.b16 %v449, %v446
        %v474 = vpack.c.b16 %v450, %v447
        %499 = vmatprep.subr.bf16.mxu0 %v452
        %500 = vmatpush1.bf16.msra.mxu0 %v451
        %501 = vmatprep.subr.bf16.mxu0 %v455
        %502 = vmatpush1.bf16.msra.mxu0 %v454
        %503 = vmatprep.subr.bf16.mxu0 %v458
        %504 = vmatpush1.bf16.msra.mxu0 %v457
        %505 = vmatprep.subr.bf16.mxu0 %v461
        %506 = vmatpush1.bf16.msra.mxu0 %v460
        %507 = vmatprep.subr.bf16.mxu0 %v464
        %508 = vmatpush1.bf16.msra.mxu0 %v463
        %509 = vmatprep.subr.bf16.mxu0 %v467
        %510 = vmatpush1.bf16.msra.mxu0 %v466
        %511 = vmatprep.subr.bf16.mxu0 %v470
        %512 = vmatpush1.bf16.msra.mxu0 %v469
        %513 = vmatprep.subr.bf16.mxu0 %v473
        %514 = vmatpush1.bf16.msra.mxu0 %v472
        %515 = vmatprep.subr.bf16.mxu0 0
        %516 = vmatpush1.bf16.msra.mxu0 0
        %517 = vmatprep.subr.bf16.mxu0 0
        %518 = vmatpush1.bf16.msra.mxu0 0
        %519 = vmatprep.subr.bf16.mxu0 0
        %520 = vmatpush1.bf16.msra.mxu0 0
        %521 = vmatprep.subr.bf16.mxu0 0
        %522 = vmatpush1.bf16.msra.mxu0 0
        %523 = vmatprep.subr.bf16.mxu0 0
        %524 = vmatpush1.bf16.msra.mxu0 0
        %525 = vmatprep.subr.bf16.mxu0 0
        %526 = vmatpush1.bf16.msra.mxu0 0
        %527 = vmatprep.subr.bf16.mxu0 0
        %528 = vmatpush1.bf16.msra.mxu0 0
        %529 = vmatprep.subr.bf16.mxu0 0
        %530 = vmatpush1.bf16.msra.mxu0 0
        %531 = vmatprep.mubr.bf16.mxu0 0
        %532 = vmatmul.mubr.bf16.gmra.mrb[0].mxu0 %v370
        %v533 = vpop.f32.mrb[0].mxu0
        %v534 = vadd.f32 0.0, %v533
        %v535 = vpop.f32.mrb[0].mxu0
        %v536 = vadd.f32 0.0, %v535
        %v537 = vpop.f32.mrb[0].mxu0
        %v538 = vpop.f32.mrb[0].mxu0
        %539 = vdwg.mxu0
        %540 = vmatprep.subr.bf16.mxu0 0
        %541 = vmatpush1.bf16.msra.mxu0 %v453
        %542 = vmatprep.subr.bf16.mxu0 0
        %543 = vmatpush1.bf16.msra.mxu0 %v456
        %544 = vmatprep.subr.bf16.mxu0 0
        %545 = vmatpush1.bf16.msra.mxu0 %v459
        %546 = vmatprep.subr.bf16.mxu0 0
        %547 = vmatpush1.bf16.msra.mxu0 %v462
        %548 = vmatprep.subr.bf16.mxu0 0
        %549 = vmatpush1.bf16.msra.mxu0 %v465
        %550 = vmatprep.subr.bf16.mxu0 0
        %551 = vmatpush1.bf16.msra.mxu0 %v468
        %552 = vmatprep.subr.bf16.mxu0 0
        %553 = vmatpush1.bf16.msra.mxu0 %v471
        %554 = vmatprep.subr.bf16.mxu0 0
        %555 = vmatpush1.bf16.msra.mxu0 %v474
        %556 = vmatprep.subr.bf16.mxu0 0
        %557 = vmatpush1.bf16.msra.mxu0 0
        %558 = vmatprep.subr.bf16.mxu0 0
        %559 = vmatpush1.bf16.msra.mxu0 0
        %560 = vmatprep.subr.bf16.mxu0 0
        %561 = vmatpush1.bf16.msra.mxu0 0
        %562 = vmatprep.subr.bf16.mxu0 0
        %563 = vmatpush1.bf16.msra.mxu0 0
        %564 = vmatprep.subr.bf16.mxu0 0
        %565 = vmatpush1.bf16.msra.mxu0 0
        %566 = vmatprep.subr.bf16.mxu0 0
        %567 = vmatpush1.bf16.msra.mxu0 0
        %568 = vmatprep.subr.bf16.mxu0 0
        %569 = vmatpush1.bf16.msra.mxu0 0
        %570 = vmatprep.subr.bf16.mxu0 0
        %571 = vmatpush1.bf16.msra.mxu0 0
        %572 = vmatprep.mubr.bf16.mxu0 0
        %573 = vmatmul.mubr.bf16.gmra.mrb[0].mxu0 %v370
        %v574 = vpop.f32.mrb[0].mxu0
        %v575 = vadd.f32 0.0, %v574
        %v576 = vpop.f32.mrb[0].mxu0
        %v577 = vpop.f32.mrb[0].mxu0
        %v578 = vpop.f32.mrb[0].mxu0
        %579 = vdwg.mxu0
        %v580 = vadd.f32 %v367, %v534
        %v581 = vxor.u32 %v580, 2147483648
        %v582 = vmul.f32 %v581, 1.442695
        %v583 = vpow.pop %v582
        %v584 = vadd.f32 %v583, 1.0
        %v585 = vrcp.pop %v584
        %v586 = vmul.f32 1.0, %v585
        %v587 = vadd.f32 %v368, %v536
        %v588 = vxor.u32 %v587, 2147483648
        %v589 = vmul.f32 %v588, 1.442695
        %v590 = vpow.pop %v589
        %v591 = vadd.f32 %v590, 1.0
        %v592 = vrcp.pop %v591
        %v593 = vmul.f32 1.0, %v592
        %v594 = vadd.f32 %v575, %v358
        %v595 = vmul.f32 %v586, %v594
        %v596 = vadd.f32 %v369, %v595
        %v597 = vtanh.pop %v596
        %v598 = vsub.f32 1.0, %v593
        %v599 = vmul.f32 %v598, %v597
        %v600 = vmul.f32 %v593, %v360
        %v601 = vadd.f32 %v599, %v600
        %s602 = smul.u32 %s361, 8
        %s603 = scalar_lea.vmem %s272, %s602 [#allocation3]
        %604 = vst [vmem:[%s603] sm:$0xff] %v601
        %s605 = smul.u32 %s23, 2
        %s606 = ssub.s32 1, %s605
        %s607 = sadd.s32 %s361, %s606
        %s608 = smul.u32 %s607, 3
        %s609 = smul.addr %s608, 4
        %s610 = scalar_lea.vmem %s292, %s609
        %v611 = vld [vmem:[%s610] sm:$0xff]
        %v612 = vld [vmem:[%s610 + $0x8] sm:$0xf]
        %v613 = vunpack.c.l.bf16 %v611
        %v614 = vunpack.c.h.bf16 %v611
        %v615 = vunpack.c.l.bf16 %v612
        %v616 = vpack.c.bf16 %v601, %v601
        %617 = vmatprep.subr.bf16.mxu0 %v452
        %618 = vmatpush1.bf16.msra.mxu0 %v451
        %619 = vmatprep.subr.bf16.mxu0 %v455
        %620 = vmatpush1.bf16.msra.mxu0 %v454
        %621 = vmatprep.subr.bf16.mxu0 %v458
        %622 = vmatpush1.bf16.msra.mxu0 %v457
        %623 = vmatprep.subr.bf16.mxu0 %v461
        %624 = vmatpush1.bf16.msra.mxu0 %v460
        %625 = vmatprep.subr.bf16.mxu0 %v464
        %626 = vmatpush1.bf16.msra.mxu0 %v463
        %627 = vmatprep.subr.bf16.mxu0 %v467
        %628 = vmatpush1.bf16.msra.mxu0 %v466
        %629 = vmatprep.subr.bf16.mxu0 %v470
        %630 = vmatpush1.bf16.msra.mxu0 %v469
        %631 = vmatprep.subr.bf16.mxu0 %v473
        %632 = vmatpush1.bf16.msra.mxu0 %v472
        %633 = vmatprep.subr.bf16.mxu0 0
        %634 = vmatpush1.bf16.msra.mxu0 0
        %635 = vmatprep.subr.bf16.mxu0 0
        %636 = vmatpush1.bf16.msra.mxu0 0
        %637 = vmatprep.subr.bf16.mxu0 0
        %638 = vmatpush1.bf16.msra.mxu0 0
        %639 = vmatprep.subr.bf16.mxu0 0
        %640 = vmatpush1.bf16.msra.mxu0 0
        %641 = vmatprep.subr.bf16.mxu0 0
        %642 = vmatpush1.bf16.msra.mxu0 0
        %643 = vmatprep.subr.bf16.mxu0 0
        %644 = vmatpush1.bf16.msra.mxu0 0
        %645 = vmatprep.subr.bf16.mxu0 0
        %646 = vmatpush1.bf16.msra.mxu0 0
        %647 = vmatprep.subr.bf16.mxu0 0
        %648 = vmatpush1.bf16.msra.mxu0 0
        %649 = vmatprep.mubr.bf16.mxu0 0
        %650 = vmatmul.mubr.bf16.gmra.mrb[0].mxu0 %v616
        %v651 = vpop.f32.mrb[0].mxu0
        %v652 = vadd.f32 0.0, %v651
        %v653 = vpop.f32.mrb[0].mxu0
        %v654 = vadd.f32 0.0, %v653
        %v655 = vpop.f32.mrb[0].mxu0
        %v656 = vpop.f32.mrb[0].mxu0
        %657 = vdwg.mxu0
        %658 = vmatprep.subr.bf16.mxu0 0
        %659 = vmatpush1.bf16.msra.mxu0 %v453
        %660 = vmatprep.subr.bf16.mxu0 0
        %661 = vmatpush1.bf16.msra.mxu0 %v456
        %662 = vmatprep.subr.bf16.mxu0 0
        %663 = vmatpush1.bf16.msra.mxu0 %v459
        %664 = vmatprep.subr.bf16.mxu0 0
        %665 = vmatpush1.bf16.msra.mxu0 %v462
        %666 = vmatprep.subr.bf16.mxu0 0
        %667 = vmatpush1.bf16.msra.mxu0 %v465
        %668 = vmatprep.subr.bf16.mxu0 0
        %669 = vmatpush1.bf16.msra.mxu0 %v468
        %670 = vmatprep.subr.bf16.mxu0 0
        %671 = vmatpush1.bf16.msra.mxu0 %v471
        %672 = vmatprep.subr.bf16.mxu0 0
        %673 = vmatpush1.bf16.msra.mxu0 %v474
        %674 = vmatprep.subr.bf16.mxu0 0
        %675 = vmatpush1.bf16.msra.mxu0 0
        %676 = vmatprep.subr.bf16.mxu0 0
        %677 = vmatpush1.bf16.msra.mxu0 0
        %678 = vmatprep.subr.bf16.mxu0 0
        %679 = vmatpush1.bf16.msra.mxu0 0
        %680 = vmatprep.subr.bf16.mxu0 0
        %681 = vmatpush1.bf16.msra.mxu0 0
        %682 = vmatprep.subr.bf16.mxu0 0
        %683 = vmatpush1.bf16.msra.mxu0 0
        %684 = vmatprep.subr.bf16.mxu0 0
        %685 = vmatpush1.bf16.msra.mxu0 0
        %686 = vmatprep.subr.bf16.mxu0 0
        %687 = vmatpush1.bf16.msra.mxu0 0
        %688 = vmatprep.subr.bf16.mxu0 0
        %689 = vmatpush1.bf16.msra.mxu0 0
        %690 = vmatprep.mubr.bf16.mxu0 0
        %691 = vmatmul.mubr.bf16.gmra.mrb[0].mxu0 %v616
        %v692 = vpop.f32.mrb[0].mxu0
        %v693 = vadd.f32 0.0, %v692
        %v694 = vpop.f32.mrb[0].mxu0
        %v695 = vpop.f32.mrb[0].mxu0
        %v696 = vpop.f32.mrb[0].mxu0
        %697 = vdwg.mxu0
        %v698 = vadd.f32 %v613, %v652
        %v699 = vxor.u32 %v698, 2147483648
        %v700 = vmul.f32 %v699, 1.442695
        %v701 = vpow.pop %v700
        %v702 = vadd.f32 %v701, 1.0
        %v703 = vrcp.pop %v702
        %v704 = vmul.f32 1.0, %v703
        %v705 = vadd.f32 %v614, %v654
        %v706 = vxor.u32 %v705, 2147483648
        %v707 = vmul.f32 %v706, 1.442695
        %v708 = vpow.pop %v707
        %v709 = vadd.f32 %v708, 1.0
        %v710 = vrcp.pop %v709
        %v711 = vmul.f32 1.0, %v710
        %v712 = vadd.f32 %v693, %v358
        %v713 = vmul.f32 %v704, %v712
        %v714 = vadd.f32 %v615, %v713
        %v715 = vtanh.pop %v714
        %v716 = vsub.f32 1.0, %v711
        %v717 = vmul.f32 %v716, %v715
        %v718 = vmul.f32 %v711, %v601
        %v719 = vadd.f32 %v717, %v718
        %s720 = smul.u32 %s607, 8
        %s721 = scalar_lea.vmem %s272, %s720 [#allocation3]
        %722 = vst [vmem:[%s721] sm:$0xff] %v719
        %s723 = smul.u32 %s606, 2
        %s724 = sadd.s32 %s361, %s723
        %s725 = smul.u32 %s724, 3
        %s726 = smul.addr %s725, 4
        %s727 = scalar_lea.vmem %s292, %s726
        %v728 = vld [vmem:[%s727] sm:$0xff]
        %v729 = vld [vmem:[%s727 + $0x8] sm:$0xf]
        %v730 = vunpack.c.l.bf16 %v728
        %v731 = vunpack.c.h.bf16 %v728
        %v732 = vunpack.c.l.bf16 %v729
        %v733 = vpack.c.bf16 %v719, %v719
        %734 = vmatprep.subr.bf16.mxu0 %v452
        %735 = vmatpush1.bf16.msra.mxu0 %v451
        %736 = vmatprep.subr.bf16.mxu0 %v455
        %737 = vmatpush1.bf16.msra.mxu0 %v454
        %738 = vmatprep.subr.bf16.mxu0 %v458
        %739 = vmatpush1.bf16.msra.mxu0 %v457
        %740 = vmatprep.subr.bf16.mxu0 %v461
        %741 = vmatpush1.bf16.msra.mxu0 %v460
        %742 = vmatprep.subr.bf16.mxu0 %v464
        %743 = vmatpush1.bf16.msra.mxu0 %v463
        %744 = vmatprep.subr.bf16.mxu0 %v467
        %745 = vmatpush1.bf16.msra.mxu0 %v466
        %746 = vmatprep.subr.bf16.mxu0 %v470
        %747 = vmatpush1.bf16.msra.mxu0 %v469
        %748 = vmatprep.subr.bf16.mxu0 %v473
        %749 = vmatpush1.bf16.msra.mxu0 %v472
        %750 = vmatprep.subr.bf16.mxu0 0
        %751 = vmatpush1.bf16.msra.mxu0 0
        %752 = vmatprep.subr.bf16.mxu0 0
        %753 = vmatpush1.bf16.msra.mxu0 0
        %754 = vmatprep.subr.bf16.mxu0 0
        %755 = vmatpush1.bf16.msra.mxu0 0
        %756 = vmatprep.subr.bf16.mxu0 0
        %757 = vmatpush1.bf16.msra.mxu0 0
        %758 = vmatprep.subr.bf16.mxu0 0
        %759 = vmatpush1.bf16.msra.mxu0 0
        %760 = vmatprep.subr.bf16.mxu0 0
        %761 = vmatpush1.bf16.msra.mxu0 0
        %762 = vmatprep.subr.bf16.mxu0 0
        %763 = vmatpush1.bf16.msra.mxu0 0
        %764 = vmatprep.subr.bf16.mxu0 0
        %765 = vmatpush1.bf16.msra.mxu0 0
        %766 = vmatprep.mubr.bf16.mxu0 0
        %767 = vmatmul.mubr.bf16.gmra.mrb[0].mxu0 %v733
        %v768 = vpop.f32.mrb[0].mxu0
        %v769 = vadd.f32 0.0, %v768
        %v770 = vpop.f32.mrb[0].mxu0
        %v771 = vadd.f32 0.0, %v770
        %v772 = vpop.f32.mrb[0].mxu0
        %v773 = vpop.f32.mrb[0].mxu0
        %774 = vdwg.mxu0
        %775 = vmatprep.subr.bf16.mxu0 0
        %776 = vmatpush1.bf16.msra.mxu0 %v453
        %777 = vmatprep.subr.bf16.mxu0 0
        %778 = vmatpush1.bf16.msra.mxu0 %v456
        %779 = vmatprep.subr.bf16.mxu0 0
        %780 = vmatpush1.bf16.msra.mxu0 %v459
        %781 = vmatprep.subr.bf16.mxu0 0
        %782 = vmatpush1.bf16.msra.mxu0 %v462
        %783 = vmatprep.subr.bf16.mxu0 0
        %784 = vmatpush1.bf16.msra.mxu0 %v465
        %785 = vmatprep.subr.bf16.mxu0 0
        %786 = vmatpush1.bf16.msra.mxu0 %v468
        %787 = vmatprep.subr.bf16.mxu0 0
        %788 = vmatpush1.bf16.msra.mxu0 %v471
        %789 = vmatprep.subr.bf16.mxu0 0
        %790 = vmatpush1.bf16.msra.mxu0 %v474
        %791 = vmatprep.subr.bf16.mxu0 0
        %792 = vmatpush1.bf16.msra.mxu0 0
        %793 = vmatprep.subr.bf16.mxu0 0
        %794 = vmatpush1.bf16.msra.mxu0 0
        %795 = vmatprep.subr.bf16.mxu0 0
        %796 = vmatpush1.bf16.msra.mxu0 0
        %797 = vmatprep.subr.bf16.mxu0 0
        %798 = vmatpush1.bf16.msra.mxu0 0
        %799 = vmatprep.subr.bf16.mxu0 0
        %800 = vmatpush1.bf16.msra.mxu0 0
        %801 = vmatprep.subr.bf16.mxu0 0
        %802 = vmatpush1.bf16.msra.mxu0 0
        %803 = vmatprep.subr.bf16.mxu0 0
        %804 = vmatpush1.bf16.msra.mxu0 0
        %805 = vmatprep.subr.bf16.mxu0 0
        %806 = vmatpush1.bf16.msra.mxu0 0
        %807 = vmatprep.mubr.bf16.mxu0 0
        %808 = vmatmul.mubr.bf16.gmra.mrb[0].mxu0 %v733
        %v809 = vpop.f32.mrb[0].mxu0
        %v810 = vadd.f32 0.0, %v809
        %v811 = vpop.f32.mrb[0].mxu0
        %v812 = vpop.f32.mrb[0].mxu0
        %v813 = vpop.f32.mrb[0].mxu0
        %814 = vdwg.mxu0
        %v815 = vadd.f32 %v730, %v769
        %v816 = vxor.u32 %v815, 2147483648
        %v817 = vmul.f32 %v816, 1.442695
        %v818 = vpow.pop %v817
        %v819 = vadd.f32 %v818, 1.0
        %v820 = vrcp.pop %v819
        %v821 = vmul.f32 1.0, %v820
        %v822 = vadd.f32 %v731, %v771
        %v823 = vxor.u32 %v822, 2147483648
        %v824 = vmul.f32 %v823, 1.442695
        %v825 = vpow.pop %v824
        %v826 = vadd.f32 %v825, 1.0
        %v827 = vrcp.pop %v826
        %v828 = vmul.f32 1.0, %v827
        %v829 = vadd.f32 %v810, %v358
        %v830 = vmul.f32 %v821, %v829
        %v831 = vadd.f32 %v732, %v830
        %v832 = vtanh.pop %v831
        %v833 = vsub.f32 1.0, %v828
        %v834 = vmul.f32 %v833, %v832
        %v835 = vmul.f32 %v828, %v719
        %v836 = vadd.f32 %v834, %v835
        %s837 = smul.u32 %s724, 8
        %s838 = scalar_lea.vmem %s272, %s837 [#allocation3]
        %839 = vst [vmem:[%s838] sm:$0xff] %v836
        %s840 = smul.u32 %s606, 3
        %s841 = sadd.s32 %s361, %s840
        %s842 = smul.u32 %s841, 3
        %s843 = smul.addr %s842, 4
        %s844 = scalar_lea.vmem %s292, %s843
        %v845 = vld [vmem:[%s844] sm:$0xff]
        %v846 = vld [vmem:[%s844 + $0x8] sm:$0xf]
        %v847 = vunpack.c.l.bf16 %v845
        %v848 = vunpack.c.h.bf16 %v845
        %v849 = vunpack.c.l.bf16 %v846
        %v850 = vpack.c.bf16 %v836, %v836
        %851 = vmatprep.subr.bf16.mxu0 %v452
        %852 = vmatpush1.bf16.msra.mxu0 %v451
        %853 = vmatprep.subr.bf16.mxu0 %v455
        %854 = vmatpush1.bf16.msra.mxu0 %v454
        %855 = vmatprep.subr.bf16.mxu0 %v458
        %856 = vmatpush1.bf16.msra.mxu0 %v457
        %857 = vmatprep.subr.bf16.mxu0 %v461
        %858 = vmatpush1.bf16.msra.mxu0 %v460
        %859 = vmatprep.subr.bf16.mxu0 %v464
        %860 = vmatpush1.bf16.msra.mxu0 %v463
        %861 = vmatprep.subr.bf16.mxu0 %v467
        %862 = vmatpush1.bf16.msra.mxu0 %v466
        %863 = vmatprep.subr.bf16.mxu0 %v470
        %864 = vmatpush1.bf16.msra.mxu0 %v469
        %865 = vmatprep.subr.bf16.mxu0 %v473
        %866 = vmatpush1.bf16.msra.mxu0 %v472
        %867 = vmatprep.subr.bf16.mxu0 0
        %868 = vmatpush1.bf16.msra.mxu0 0
        %869 = vmatprep.subr.bf16.mxu0 0
        %870 = vmatpush1.bf16.msra.mxu0 0
        %871 = vmatprep.subr.bf16.mxu0 0
        %872 = vmatpush1.bf16.msra.mxu0 0
        %873 = vmatprep.subr.bf16.mxu0 0
        %874 = vmatpush1.bf16.msra.mxu0 0
        %875 = vmatprep.subr.bf16.mxu0 0
        %876 = vmatpush1.bf16.msra.mxu0 0
        %877 = vmatprep.subr.bf16.mxu0 0
        %878 = vmatpush1.bf16.msra.mxu0 0
        %879 = vmatprep.subr.bf16.mxu0 0
        %880 = vmatpush1.bf16.msra.mxu0 0
        %881 = vmatprep.subr.bf16.mxu0 0
        %882 = vmatpush1.bf16.msra.mxu0 0
        %883 = vmatprep.mubr.bf16.mxu0 0
        %884 = vmatmul.mubr.bf16.gmra.mrb[0].mxu0 %v850
        %v885 = vpop.f32.mrb[0].mxu0
        %v886 = vadd.f32 0.0, %v885
        %v887 = vpop.f32.mrb[0].mxu0
        %v888 = vadd.f32 0.0, %v887
        %v889 = vpop.f32.mrb[0].mxu0
        %v890 = vpop.f32.mrb[0].mxu0
        %891 = vdwg.mxu0
        %892 = vmatprep.subr.bf16.mxu0 0
        %893 = vmatpush1.bf16.msra.mxu0 %v453
        %894 = vmatprep.subr.bf16.mxu0 0
        %895 = vmatpush1.bf16.msra.mxu0 %v456
        %896 = vmatprep.subr.bf16.mxu0 0
        %897 = vmatpush1.bf16.msra.mxu0 %v459
        %898 = vmatprep.subr.bf16.mxu0 0
        %899 = vmatpush1.bf16.msra.mxu0 %v462
        %900 = vmatprep.subr.bf16.mxu0 0
        %901 = vmatpush1.bf16.msra.mxu0 %v465
        %902 = vmatprep.subr.bf16.mxu0 0
        %903 = vmatpush1.bf16.msra.mxu0 %v468
        %904 = vmatprep.subr.bf16.mxu0 0
        %905 = vmatpush1.bf16.msra.mxu0 %v471
        %906 = vmatprep.subr.bf16.mxu0 0
        %907 = vmatpush1.bf16.msra.mxu0 %v474
        %908 = vmatprep.subr.bf16.mxu0 0
        %909 = vmatpush1.bf16.msra.mxu0 0
        %910 = vmatprep.subr.bf16.mxu0 0
        %911 = vmatpush1.bf16.msra.mxu0 0
        %912 = vmatprep.subr.bf16.mxu0 0
        %913 = vmatpush1.bf16.msra.mxu0 0
        %914 = vmatprep.subr.bf16.mxu0 0
        %915 = vmatpush1.bf16.msra.mxu0 0
        %916 = vmatprep.subr.bf16.mxu0 0
        %917 = vmatpush1.bf16.msra.mxu0 0
        %918 = vmatprep.subr.bf16.mxu0 0
        %919 = vmatpush1.bf16.msra.mxu0 0
        %920 = vmatprep.subr.bf16.mxu0 0
        %921 = vmatpush1.bf16.msra.mxu0 0
        %922 = vmatprep.subr.bf16.mxu0 0
        %923 = vmatpush1.bf16.msra.mxu0 0
        %924 = vmatprep.mubr.bf16.mxu0 0
        %925 = vmatmul.mubr.bf16.gmra.mrb[0].mxu0 %v850
        %v926 = vpop.f32.mrb[0].mxu0
        %v927 = vadd.f32 0.0, %v926
        %v928 = vpop.f32.mrb[0].mxu0
        %v929 = vpop.f32.mrb[0].mxu0
        %v930 = vpop.f32.mrb[0].mxu0
        %931 = vdwg.mxu0
        %v932 = vadd.f32 %v847, %v886
        %v933 = vxor.u32 %v932, 2147483648
        %v934 = vmul.f32 %v933, 1.442695
        %v935 = vpow.pop %v934
        %v936 = vadd.f32 %v935, 1.0
        %v937 = vrcp.pop %v936
        %v938 = vmul.f32 1.0, %v937
        %v939 = vadd.f32 %v848, %v888
        %v940 = vxor.u32 %v939, 2147483648
        %v941 = vmul.f32 %v940, 1.442695
        %v942 = vpow.pop %v941
        %v943 = vadd.f32 %v942, 1.0
        %v944 = vrcp.pop %v943
        %v945 = vmul.f32 1.0, %v944
        %v946 = vadd.f32 %v927, %v358
        %v947 = vmul.f32 %v938, %v946
        %v948 = vadd.f32 %v849, %v947
        %v949 = vtanh.pop %v948
        %v950 = vsub.f32 1.0, %v945
        %v951 = vmul.f32 %v950, %v949
        %v952 = vmul.f32 %v945, %v836
        %v953 = vadd.f32 %v951, %v952
        %s954 = smul.u32 %s841, 8
        %s955 = scalar_lea.vmem %s272, %s954 [#allocation3]
        %956 = vst [vmem:[%s955] sm:$0xff] %v953
        %957 = vst [vmem:[#allocation2] sm:$0xff] %v953
        %958 = vst [vmem:[%s314] sm:$0xff] %v953
        %s959 = sand.u32 %s137, 1
        %s960 = scalar_lea.sflag [#allocation4], %s959
        %s961 = sand.u32 %s137, 1
        %s962 = smul.addr %s961, 32
        %s963 = scalar_lea.vmem [#allocation3], %s962
        %p964 = scmp.lt.s32.totalorder %s23, 1
        %s965 = scalar_select %p964, %s23, 1
        %s966 = smul.addr %s965, 8
        %s967 = scalar_lea.vmem %s4, %s966
        // Predicated region
        $region37: #{rnn_encoder_forward.4} parent=31 // pred_check
          %p968 = pneg %p147
        $region38: #{rnn_encoder_forward.4} parent=31 // pred_check_branch
          %970 = sbr.rel (%p968) target = $region40
        $region39: #{rnn_encoder_forward.4} parent=31 // pred_region
          %s971 = smul.u32 %s24, 2
          %s972 = ssub.s32 1, %s971
          %s973 = smul.u32 %s23, %s972
          %s974 = sadd.s32 %s24, %s973
          %s975 = smul.u32 4, %s974
          %s977 = ssub.s32 512, 512
          %978 = vsyncadd %s960, %s977
          %s979 = smul.addr %s23, 8
          %s980 = sadd.s32 %s975, %s979
          %s981 = smul.addr %s980, 128
          %s982 = scalar_lea.hbm %s3, %s981
          %s983 = sshll.u32 %s963, 4
          %s984 = int_to_ptr.vmem [resolvable:$true] %s983
          %989 = dma.vmem_to_hbm [thread:$0]  %s984, 512, %s982, %s960, 128, 128, 8
        $region40: #{rnn_encoder_forward.4} parent=31 // pred_fallthru
          _
        // Predicated region
        $region41: #{rnn_encoder_forward.4} parent=31 // pred_check
          %p990 = pneg %p173
        $region42: #{rnn_encoder_forward.4} parent=31 // pred_check_branch
          %992 = sbr.rel (%p990) target = $region44
        $region43: #{rnn_encoder_forward.4} parent=31 // pred_region
          _
        $region44: #{rnn_encoder_forward.4} parent=31 // pred_fallthru
          _
      $region32: #{rnn_encoder_forward.4} parent=5 // pred_fallthru
        _
      %p993 = scmp.le.s32.totalorder 2, %s14
      // Predicated region
      $region45: #{rnn_encoder_forward.4} parent=5 // pred_check
        %p994 = pneg %p993
      $region46: #{rnn_encoder_forward.4} parent=5 // pred_check_branch
        %996 = sbr.rel (%p994) target = $region48
      $region47: #{rnn_encoder_forward.4} parent=5 // pred_region
        %s997 = ssub.s32 %s14, 2
        // Predicated region
        $region49: #{rnn_encoder_forward.4} parent=47 // pred_check
          %p998 = pneg %p153
        $region50: #{rnn_encoder_forward.4} parent=47 // pred_check_branch
          %1000 = sbr.rel (%p998) target = $region52
        $region51: #{rnn_encoder_forward.4} parent=47 // pred_region
          %s1001 = sand.u32 %s138, 1
          %s1002 = scalar_lea.sflag [#allocation4], %s1001
          %s1003 = sand.u32 %s138, 1
          %s1004 = smul.addr %s1003, 32
          %s1005 = scalar_lea.vmem [#allocation3], %s1004
          %1006 = dma.done %s1002, 512
        $region52: #{rnn_encoder_forward.4} parent=47 // pred_fallthru
          _
        // Predicated region
        $region53: #{rnn_encoder_forward.4} parent=47 // pred_check
          %p1007 = pneg %p179
        $region54: #{rnn_encoder_forward.4} parent=47 // pred_check_branch
          %1009 = sbr.rel (%p1007) target = $region56
        $region55: #{rnn_encoder_forward.4} parent=47 // pred_region
          %p1010 = scmp.lt.s32.totalorder %s25, 1
          %s1011 = scalar_select %p1010, %s25, 1
          %s1012 = smul.addr %s1011, 8
          %s1013 = scalar_lea.vmem %s4, %s1012
        $region56: #{rnn_encoder_forward.4} parent=47 // pred_fallthru
          _
      $region48: #{rnn_encoder_forward.4} parent=5 // pred_fallthru
        _
    $region6: #{rnn_encoder_forward.4} parent=1 // loop_footer
      %s18 = sadd.s32 1, %s14
    $region7: #{rnn_encoder_forward.4} parent=1 // loop_footer_branch
      %13 = sbr.rel target = $region3
    $region8: #{rnn_encoder_forward.4} parent=1 // loop_exit
      _
    %1014 = vsyncpa [#allocation4], 1
    %s1015 = scalar_lea.sflag [#allocation4], 1
    %1016 = vsyncpa %s1015, 1

// kernel: rnn_encoder_forward.3
$region0: #{rnn_encoder_forward.3}
  #allocation0 [shape = 'u32[]', space=smem, size = 0x4, offset = 0x4, fixed_abs, tag = 'smem constant byte address 0x4 - core index']
  #allocation1 [shape = 'u32[144,128]{1,0:T(1,128)}', space=vmem, size = 0x12000, scoped, tag = 'internal scratch']
  #allocation2 [shape = 'f32[8,128]{1,0:T(8,128)}', space=vmem, size = 0x1000, scoped, tag = 'scratch operand']
  %s0 = inlined_call_operand.vmem [shape: bf16[2,8,8,384], index: 0, kind: input, shape index: {}]
  %s1 = inlined_call_operand.vmem [shape: bf16[2,128,384], index: 1, kind: input, shape index: {}]
  %s2 = inlined_call_operand.vmem [shape: f32[2,1,128], index: 2, kind: input, shape index: {}]
  %s3 = inlined_call_operand.vmem [shape: f32[2,8,8,128], index: 3, kind: output, shape index: {0}]
  %s4 = inlined_call_operand.hbm [shape: f32[2,8,128], index: 4, kind: output, shape index: {1}]
  %5 = xla_tuple %s3, %s4
  %s6 = sld [smem:[#allocation0]]
  $region57: #{rnn_encoder_forward.3} parent=0
    _
  %s8 = ssub.s32 1, %s6
  %s9 = scalar_select 0, %s8, %s6
  $region1: #{rnn_encoder_forward.3} parent=0
    #allocation3 [shape = 'u8[8192]{0}', space=vmem, size = 0x2000, scoped, tag = 'output window, operand 1']
    #allocation4 [shape = 's32[2]{0}', space=sflag, size = 0x8, scoped, tag = 'scoped memory for rnn_encoder_forward.3']
    %10 = vsyncpa [#allocation4], 0
    %s11 = scalar_lea.sflag [#allocation4], 1
    %12 = vsyncpa %s11, 0
    loop: start=0, step=1, limit=6
    $region2: #{rnn_encoder_forward.3} parent=1 // loop_pre_header
      _
    $region3: #{rnn_encoder_forward.3} parent=1 // loop_header
      %s14 = sphi 0, %s18
      %p15 = scmp.ge.s32.totalorder %s14, 6
      %s21 = sphi 0, %s33
      %s22 = sphi 0, %s29
      %s23 = sphi 0, %s21
      %s24 = sphi 0, %s22
      %s25 = sphi 0, %s23
      %s26 = sphi 0, %s24
      %s46 = sphi 0, %s48
      %s49 = sphi 0, %s46
      %s50 = sphi 0, %s49
      %s66 = sphi 0, %s50
      %s72 = sphi 0, %s74
      %s75 = sphi 0, %s72
      %s76 = sphi 0, %s75
      %s92 = sphi 0, %s76
      %s98 = sphi 0, %s100
      %s101 = sphi 0, %s98
      %s102 = sphi 0, %s101
      %s118 = sphi 0, %s102
      %s134 = sphi 0, %s136
      %s137 = sphi 0, %s134
      %s138 = sphi 0, %s137
      %s154 = sphi 0, %s138
      %s160 = sphi 0, %s162
      %s163 = sphi 0, %s160
      %s164 = sphi 0, %s163
      %s180 = sphi 0, %s164
    $region4: #{rnn_encoder_forward.3} parent=1 // loop_header_branch
      %17 = sbr.rel (%p15) target = $region8
    $region5: #{rnn_encoder_forward.3} parent=1 // loop_body
      %s19 = ssub.s32 %s14, 1
      %s20 = ssub.s32 %s14, 2
      %s27 = sadd.s32 1, %s22
      %p28 = scmp.ge.s32.totalorder %s27, 2
      %s29 = scalar_select %p28, 0, %s27
      %s30 = sadd.s32 1, %s21
      %s31 = scalar_select %p28, %s30, %s21
      %p32 = scmp.ge.s32.totalorder %s31, 2
      %s33 = scalar_select %p32, 0, %s31
      %s34 = smul.u32 %s22, 2
      %s35 = ssub.s32 1, %s34
      %s36 = smul.u32 %s21, %s35
      %s37 = sadd.s32 %s22, %s36
      %s38 = smul.u32 %s29, 2
      %s39 = ssub.s32 1, %s38
      %s40 = smul.u32 %s33, %s39
      %s41 = sadd.s32 %s29, %s40
      %s42 = ssub.s32 %s21, %s33
      %s43 = ssub.s32 %s37, %s41
      %s44 = sor.u32 %s42, %s43
      %p45 = scmp.eq.s32.totalorder %s44, 0
      %s47 = sadd.s32 %s46, 1
      %s48 = scalar_select %p45, %s46, %s47
      %p51 = pneg %p45
      %p52 = scmp.eq.s32.totalorder %s14, 3
      %p53 = por %p51, %p52
      %p54 = scmp.ne.s32.totalorder %s46, %s49
      %p55 = scmp.eq.s32.totalorder %s14, 0
      %p56 = por %p54, %p55
      %p57 = scmp.ne.s32.totalorder %s46, %s49
      %p58 = scmp.eq.s32.totalorder %s19, 3
      %p59 = por %p57, %p58
      %p60 = scmp.ne.s32.totalorder %s49, %s50
      %p61 = scmp.eq.s32.totalorder %s19, 0
      %p62 = por %p60, %p61
      %p63 = scmp.ne.s32.totalorder %s49, %s50
      %p64 = scmp.eq.s32.totalorder %s20, 3
      %p65 = por %p63, %p64
      %p67 = scmp.ne.s32.totalorder %s50, %s66
      %p68 = scmp.eq.s32.totalorder %s20, 0
      %p69 = por %p67, %p68
      %s70 = ssub.s32 %s21, %s33
      %p71 = scmp.eq.s32.totalorder %s70, 0
      %s73 = sadd.s32 %s72, 1
      %s74 = scalar_select %p71, %s72, %s73
      %p77 = pneg %p71
      %p78 = scmp.eq.s32.totalorder %s14, 3
      %p79 = por %p77, %p78
      %p80 = scmp.ne.s32.totalorder %s72, %s75
      %p81 = scmp.eq.s32.totalorder %s14, 0
      %p82 = por %p80, %p81
      %p83 = scmp.ne.s32.totalorder %s72, %s75
      %p84 = scmp.eq.s32.totalorder %s19, 3
      %p85 = por %p83, %p84
      %p86 = scmp.ne.s32.totalorder %s75, %s76
      %p87 = scmp.eq.s32.totalorder %s19, 0
      %p88 = por %p86, %p87
      %p89 = scmp.ne.s32.totalorder %s75, %s76
      %p90 = scmp.eq.s32.totalorder %s20, 3
      %p91 = por %p89, %p90
      %p93 = scmp.ne.s32.totalorder %s76, %s92
      %p94 = scmp.eq.s32.totalorder %s20, 0
      %p95 = por %p93, %p94
      %s96 = ssub.s32 %s21, %s33
      %p97 = scmp.eq.s32.totalorder %s96, 0
      %s99 = sadd.s32 %s98, 1
      %s100 = scalar_select %p97, %s98, %s99
      %p103 = pneg %p97
      %p104 = scmp.eq.s32.totalorder %s14, 3
      %p105 = por %p103, %p104
      %p106 = scmp.ne.s32.totalorder %s98, %s101
      %p107 = scmp.eq.s32.totalorder %s14, 0
      %p108 = por %p106, %p107
      %p109 = scmp.ne.s32.totalorder %s98, %s101
      %p110 = scmp.eq.s32.totalorder %s19, 3
      %p111 = por %p109, %p110
      %p112 = scmp.ne.s32.totalorder %s101, %s102
      %p113 = scmp.eq.s32.totalorder %s19, 0
      %p114 = por %p112, %p113
      %p115 = scmp.ne.s32.totalorder %s101, %s102
      %p116 = scmp.eq.s32.totalorder %s20, 3
      %p117 = por %p115, %p116
      %p119 = scmp.ne.s32.totalorder %s102, %s118
      %p120 = scmp.eq.s32.totalorder %s20, 0
      %p121 = por %p119, %p120
      %s122 = smul.u32 %s22, 2
      %s123 = ssub.s32 1, %s122
      %s124 = smul.u32 %s21, %s123
      %s125 = sadd.s32 %s22, %s124
      %s126 = smul.u32 %s29, 2
      %s127 = ssub.s32 1, %s126
      %s128 = smul.u32 %s33, %s127
      %s129 = sadd.s32 %s29, %s128
      %s130 = ssub.s32 %s21, %s33
      %s131 = ssub.s32 %s125, %s129
      %s132 = sor.u32 %s130, %s131
      %p133 = scmp.eq.s32.totalorder %s132, 0
      %s135 = sadd.s32 %s134, 1
      %s136 = scalar_select %p133, %s134, %s135
      %p139 = pneg %p133
      %p140 = scmp.eq.s32.totalorder %s14, 3
      %p141 = por %p139, %p140
      %p142 = scmp.ne.s32.totalorder %s134, %s137
      %p143 = scmp.eq.s32.totalorder %s14, 0
      %p144 = por %p142, %p143
      %p145 = scmp.ne.s32.totalorder %s134, %s137
      %p146 = scmp.eq.s32.totalorder %s19, 3
      %p147 = por %p145, %p146
      %p148 = scmp.ne.s32.totalorder %s137, %s138
      %p149 = scmp.eq.s32.totalorder %s19, 0
      %p150 = por %p148, %p149
      %p151 = scmp.ne.s32.totalorder %s137, %s138
      %p152 = scmp.eq.s32.totalorder %s20, 3
      %p153 = por %p151, %p152
      %p155 = scmp.ne.s32.totalorder %s138, %s154
      %p156 = scmp.eq.s32.totalorder %s20, 0
      %p157 = por %p155, %p156
      %s158 = ssub.s32 %s21, %s33
      %p159 = scmp.eq.s32.totalorder %s158, 0
      %s161 = sadd.s32 %s160, 1
      %s162 = scalar_select %p159, %s160, %s161
      %p165 = pneg %p159
      %p166 = scmp.eq.s32.totalorder %s14, 3
      %p167 = por %p165, %p166
      %p168 = scmp.ne.s32.totalorder %s160, %s163
      %p169 = scmp.eq.s32.totalorder %s14, 0
      %p170 = por %p168, %p169
      %p171 = scmp.ne.s32.totalorder %s160, %s163
      %p172 = scmp.eq.s32.totalorder %s19, 3
      %p173 = por %p171, %p172
      %p174 = scmp.ne.s32.totalorder %s163, %s164
      %p175 = scmp.eq.s32.totalorder %s19, 0
      %p176 = por %p174, %p175
      %p177 = scmp.ne.s32.totalorder %s163, %s164
      %p178 = scmp.eq.s32.totalorder %s20, 3
      %p179 = por %p177, %p178
      %p181 = scmp.ne.s32.totalorder %s164, %s180
      %p182 = scmp.eq.s32.totalorder %s20, 0
      %p183 = por %p181, %p182
      %p184 = scmp.le.s32.totalorder 1, %s14
      %p185 = scmp.lt.s32.totalorder %s14, 5
      %p186 = pnand %p184, %p185
      %p187 = pneg %p186
      // Predicated region
      $region9: #{rnn_encoder_forward.3} parent=5 // pred_check
        _
      $region10: #{rnn_encoder_forward.3} parent=5 // pred_check_branch
        %189 = sbr.rel (%p186) target = $region12
      $region11: #{rnn_encoder_forward.3} parent=5 // pred_region
        %s190 = ssub.s32 %s14, 1
      $region12: #{rnn_encoder_forward.3} parent=5 // pred_fallthru
        _
      %p191 = scmp.lt.s32.totalorder %s14, 4
      // Predicated region
      $region13: #{rnn_encoder_forward.3} parent=5 // pred_check
        %p192 = pneg %p191
      $region14: #{rnn_encoder_forward.3} parent=5 // pred_check_branch
        %194 = sbr.rel (%p192) target = $region16
      $region15: #{rnn_encoder_forward.3} parent=5 // pred_region
        // Predicated region
        $region17: #{rnn_encoder_forward.3} parent=15 // pred_check
          %p195 = pneg %p56
        $region18: #{rnn_encoder_forward.3} parent=15 // pred_check_branch
          %197 = sbr.rel (%p195) target = $region20
        $region19: #{rnn_encoder_forward.3} parent=15 // pred_region
          %s198 = smul.u32 %s22, 2
          %s199 = ssub.s32 1, %s198
          %s200 = smul.u32 %s21, %s199
          %s201 = sadd.s32 %s22, %s200
          %s202 = smul.u32 4, %s201
          %p203 = scmp.lt.s32.totalorder %s21, 1
          %s204 = scalar_select %p203, %s21, 1
          %p205 = scmp.lt.s32.totalorder %s202, 7
          %s206 = scalar_select %p205, %s202, 7
          %s207 = smul.addr %s206, 3
          %s208 = smul.addr %s204, 24
          %s209 = sadd.s32 %s207, %s208
          %s210 = smul.addr %s209, 4
          %s211 = scalar_lea.vmem %s0, %s210
          %s212 = smul.u32 %s22, 2
          %s213 = ssub.s32 1, %s212
          %s214 = smul.u32 %s21, %s213
          %s215 = sadd.s32 %s22, %s214
          %s216 = smul.u32 4, %s215
        $region20: #{rnn_encoder_forward.3} parent=15 // pred_fallthru
          _
        // Predicated region
        $region21: #{rnn_encoder_forward.3} parent=15 // pred_check
          %p217 = pneg %p82
        $region22: #{rnn_encoder_forward.3} parent=15 // pred_check_branch
          %219 = sbr.rel (%p217) target = $region24
        $region23: #{rnn_encoder_forward.3} parent=15 // pred_region
          %p220 = scmp.lt.s32.totalorder %s21, 1
          %s221 = scalar_select %p220, %s21, 1
          %s222 = smul.addr %s221, 48
          %s223 = smul.addr %s222, 4
          %s224 = scalar_lea.vmem %s1, %s223
        $region24: #{rnn_encoder_forward.3} parent=15 // pred_fallthru
          _
        // Predicated region
        $region25: #{rnn_encoder_forward.3} parent=15 // pred_check
          %p225 = pneg %p108
        $region26: #{rnn_encoder_forward.3} parent=15 // pred_check_branch
          %227 = sbr.rel (%p225) target = $region28
        $region27: #{rnn_encoder_forward.3} parent=15 // pred_region
          %p228 = scmp.lt.s32.totalorder %s21, 1
          %s229 = scalar_select %p228, %s21, 1
          %s230 = scalar_lea.vmem %s2, %s229
        $region28: #{rnn_encoder_forward.3} parent=15 // pred_fallthru
          _
      $region16: #{rnn_encoder_forward.3} parent=5 // pred_fallthru
        _
      %p231 = scmp.le.s32.totalorder 1, %s14
      %p232 = scmp.lt.s32.totalorder %s14, 5
      %p233 = pnand %p231, %p232
      %p234 = pneg %p233
      // Predicated region
      $region29: #{rnn_encoder_forward.3} parent=5 // pred_check
        _
      $region30: #{rnn_encoder_forward.3} parent=5 // pred_check_branch
        %236 = sbr.rel (%p233) target = $region32
      $region31: #{rnn_encoder_forward.3} parent=5 // pred_region
        %s237 = ssub.s32 %s14, 1
        %s238 = smul.u32 %s24, 2
        %s239 = ssub.s32 1, %s238
        %s240 = smul.u32 %s23, %s239
        %s241 = sadd.s32 %s24, %s240
        %s242 = smul.u32 4, %s241
        %p243 = scmp.lt.s32.totalorder %s23, 1
        %s244 = scalar_select %p243, %s23, 1
        %p245 = scmp.lt.s32.totalorder %s242, 7
        %s246 = scalar_select %p245, %s242, 7
        %s247 = smul.addr %s246, 3
        %s248 = smul.addr %s244, 24
        %s249 = sadd.s32 %s247, %s248
        %s250 = smul.addr %s249, 4
        %s251 = scalar_lea.vmem %s0, %s250
        %p252 = pneg %p62
        %p253 = pneg %p59
        %p254 = scmp.lt.s32.totalorder %s23, 1
        %s255 = scalar_select %p254, %s23, 1
        %s256 = smul.addr %s255, 48
        %s257 = smul.addr %s256, 4
        %s258 = scalar_lea.vmem %s1, %s257
        %p259 = pneg %p88
        %p260 = pneg %p85
        %p261 = scmp.lt.s32.totalorder %s23, 1
        %s262 = scalar_select %p261, %s23, 1
        %s263 = scalar_lea.vmem %s2, %s262
        %p264 = pneg %p114
        %p265 = pneg %p111
        %p266 = pneg %p150
        %p267 = pneg %p147
        %s268 = smul.u32 %s24, 2
        %s269 = ssub.s32 1, %s268
        %s270 = smul.u32 %s23, %s269
        %s271 = sadd.s32 %s24, %s270
        %s272 = smul.u32 4, %s271
        %p273 = scmp.lt.s32.totalorder %s23, 1
        %s274 = scalar_select %p273, %s23, 1
        %p275 = scmp.lt.s32.totalorder %s272, 7
        %s276 = scalar_select %p275, %s272, 7
        %s277 = smul.addr %s274, 8
        %s278 = sadd.s32 %s276, %s277
        %s279 = smul.addr %s278, 8
        %s280 = scalar_lea.vmem %s3, %s279
        %p281 = pneg %p176
        %p282 = pneg %p173
        %s283 = sand.u32 %s163, 1
        %s284 = scalar_lea.sflag [#allocation4], %s283
        %s285 = sand.u32 %s163, 1
        %s286 = smul.addr %s285, 8
        %s287 = scalar_lea.vmem [#allocation3], %s286
        %s288 = smul.u32 %s24, 2
        %s289 = ssub.s32 1, %s288
        %s290 = smul.u32 %s23, %s289
        %s291 = sadd.s32 %s24, %s290
        %s292 = smul.u32 4, %s291
        %p293 = scmp.lt.s32.totalorder %s23, 1
        %s294 = scalar_select %p293, %s23, 1
        %p295 = scmp.lt.s32.totalorder %s292, 7
        %s296 = scalar_select %p295, %s292, 7
        %s297 = smul.addr %s296, 3
        %s298 = smul.addr %s294, 24
        %s299 = sadd.s32 %s297, %s298
        %s300 = smul.addr %s299, 4
        %s301 = scalar_lea.vmem %s0, %s300
        %s302 = smul.u32 %s24, 2
        %s303 = ssub.s32 1, %s302
        %s304 = smul.u32 %s23, %s303
        %s305 = sadd.s32 %s24, %s304
        %s306 = smul.u32 4, %s305
        %p307 = scmp.lt.s32.totalorder %s23, 1
        %s308 = scalar_select %p307, %s23, 1
        %s309 = smul.addr %s308, 48
        %s310 = smul.addr %s309, 4
        %s311 = scalar_lea.vmem %s1, %s310
        %p312 = scmp.lt.s32.totalorder %s23, 1
        %s313 = scalar_select %p312, %s23, 1
        %s314 = scalar_lea.vmem %s2, %s313
        %s315 = smul.u32 %s24, 2
        %s316 = ssub.s32 1, %s315
        %s317 = smul.u32 %s23, %s316
        %s318 = sadd.s32 %s24, %s317
        %s319 = smul.u32 4, %s318
        %p320 = scmp.lt.s32.totalorder %s23, 1
        %s321 = scalar_select %p320, %s23, 1
        %p322 = scmp.lt.s32.totalorder %s319, 7
        %s323 = scalar_select %p322, %s319, 7
        %s324 = smul.addr %s321, 8
        %s325 = sadd.s32 %s323, %s324
        %s326 = smul.addr %s325, 8
        %s327 = scalar_lea.vmem %s3, %s326
        %s328 = smul.u32 %s24, 2
        %s329 = ssub.s32 1, %s328
        %s330 = smul.u32 %s23, %s329
        %s331 = sadd.s32 %s24, %s330
        %s332 = smul.u32 4, %s331
        %p334 = scmp.eq.s32.totalorder %s24, 0
        // Predicated region
        $region33: #{rnn_encoder_forward.3} parent=31 // pred_check
          %p335 = pneg %p334
        $region34: #{rnn_encoder_forward.3} parent=31 // pred_check_branch
          %337 = sbr.rel (%p335) target = $region36
        $region35: #{rnn_encoder_forward.3} parent=31 // pred_region
          %338 = vst [vmem:[#allocation2] sm:$0xff] 0.0
        $region36: #{rnn_encoder_forward.3} parent=31 // pred_fallthru
          _
        %v339 = vld [vmem:[%s311] sm:$0xff]
        %v340 = vld [vmem:[%s311 + $0x8] sm:$0xf]
        %v341 = vld [vmem:[%s311 + $0xc] sm:$0xff]
        %v342 = vld [vmem:[%s311 + $0x14] sm:$0xf]
        %v343 = vld [vmem:[%s311 + $0x18] sm:$0xff]
        %v344 = vld [vmem:[%s311 + $0x20] sm:$0xf]
        %v345 = vld [vmem:[%s311 + $0x24] sm:$0xff]
        %v346 = vld [vmem:[%s311 + $0x2c] sm:$0xf]
        %v347 = vld [vmem:[%s311 + $0x30] sm:$0xff]
        %v348 = vld [vmem:[%s311 + $0x38] sm:$0xf]
        %v349 = vld [vmem:[%s311 + $0x3c] sm:$0xff]
        %v350 = vld [vmem:[%s311 + $0x44] sm:$0xf]
        %v351 = vld [vmem:[%s311 + $0x48] sm:$0xff]
        %v352 = vld [vmem:[%s311 + $0x50] sm:$0xf]
        %v353 = vld [vmem:[%s311 + $0x54] sm:$0xff]
        %v354 = vld [vmem:[%s311 + $0x5c] sm:$0xf]
        %v355 = vld [vmem:[%s311 + $0x60] sm:$0xff]
        %v356 = vld [vmem:[%s311 + $0x68] sm:$0xf]
        %v357 = vld [vmem:[%s311 + $0x6c] sm:$0xff]
        %v358 = vld [vmem:[%s311 + $0x74] sm:$0xf]
        %v359 = vld [vmem:[%s311 + $0x78] sm:$0xff]
        %v360 = vld [vmem:[%s311 + $0x80] sm:$0xf]
        %v361 = vld [vmem:[%s311 + $0x84] sm:$0xff]
        %v362 = vld [vmem:[%s311 + $0x8c] sm:$0xf]
        %v363 = vld [vmem:[%s311 + $0x90] sm:$0xff]
        %v364 = vld [vmem:[%s311 + $0x98] sm:$0xf]
        %v365 = vld [vmem:[%s311 + $0x9c] sm:$0xff]
        %v366 = vld [vmem:[%s311 + $0xa4] sm:$0xf]
        %v367 = vld [vmem:[%s311 + $0xa8] sm:$0xff]
        %v368 = vld [vmem:[%s311 + $0xb0] sm:$0xf]
        %v369 = vld [vmem:[%s311 + $0xb4] sm:$0xff]
        %v370 = vld [vmem:[%s311 + $0xbc] sm:$0xf]
        %v371 = vld [vmem:[%s314] sm:$0x1]
        %v373 = vlaneseq
        %v374 = vshrl.u32 %v373, 7
        %v375 = vsub.s32 0, %v374
        %v376 = vrot.slane %v371, %v375
        %v378 = vld [vmem:[#allocation2] sm:$0xff]
        %s379 = smul.u32 %s23, 3
        %s380 = smul.u32 %s379, 3
        %s381 = smul.addr %s380, 4
        %s382 = scalar_lea.vmem %s301, %s381
        %v383 = vld [vmem:[%s382] sm:$0xff]
        %v384 = vld [vmem:[%s382 + $0x8] sm:$0xf]
        %v385 = vunpack.c.l.bf16 %v383
        %v386 = vunpack.c.h.bf16 %v383
        %v387 = vunpack.c.l.bf16 %v384
        %v388 = vpack.c.bf16 %v378, %v378
        %v421 = vunpack.c.l.b16 %v339
        %v422 = vunpack.c.h.b16 %v339
        %v423 = vunpack.c.l.b16 %v340
        %v424 = vunpack.c.l.b16 %v341
        %v425 = vunpack.c.h.b16 %v341
        %v426 = vunpack.c.l.b16 %v342
        %v427 = vunpack.c.l.b16 %v343
        %v428 = vunpack.c.h.b16 %v343
        %v429 = vunpack.c.l.b16 %v344
        %v430 = vunpack.c.l.b16 %v345
        %v431 = vunpack.c.h.b16 %v345
        %v432 = vunpack.c.l.b16 %v346
        %v433 = vunpack.c.l.b16 %v347
        %v434 = vunpack.c.h.b16 %v347
        %v435 = vunpack.c.l.b16 %v348
        %v436 = vunpack.c.l.b16 %v349
        %v437 = vunpack.c.h.b16 %v349
        %v438 = vunpack.c.l.b16 %v350
        %v439 = vunpack.c.l.b16 %v351
        %v440 = vunpack.c.h.b16 %v351
        %v441 = vunpack.c.l.b16 %v352
        %v442 = vunpack.c.l.b16 %v353
        %v443 = vunpack.c.h.b16 %v353
        %v444 = vunpack.c.l.b16 %v354
        %v445 = vunpack.c.l.b16 %v355
        %v446 = vunpack.c.h.b16 %v355
        %v447 = vunpack.c.l.b16 %v356
        %v448 = vunpack.c.l.b16 %v357
        %v449 = vunpack.c.h.b16 %v357
        %v450 = vunpack.c.l.b16 %v358
        %v451 = vunpack.c.l.b16 %v359
        %v452 = vunpack.c.h.b16 %v359
        %v453 = vunpack.c.l.b16 %v360
        %v454 = vunpack.c.l.b16 %v361
        %v455 = vunpack.c.h.b16 %v361
        %v456 = vunpack.c.l.b16 %v362
        %v457 = vunpack.c.l.b16 %v363
        %v458 = vunpack.c.h.b16 %v363
        %v459 = vunpack.c.l.b16 %v364
        %v460 = vunpack.c.l.b16 %v365
        %v461 = vunpack.c.h.b16 %v365
        %v462 = vunpack.c.l.b16 %v366
        %v463 = vunpack.c.l.b16 %v367
        %v464 = vunpack.c.h.b16 %v367
        %v465 = vunpack.c.l.b16 %v368
        %v466 = vunpack.c.l.b16 %v369
        %v467 = vunpack.c.h.b16 %v369
        %v468 = vunpack.c.l.b16 %v370
        %v469 = vpack.c.b16 %v424, %v421
        %v470 = vpack.c.b16 %v425, %v422
        %v471 = vpack.c.b16 %v426, %v423
        %v472 = vpack.c.b16 %v430, %v427
        %v473 = vpack.c.b16 %v431, %v428
        %v474 = vpack.c.b16 %v432, %v429
        %v475 = vpack.c.b16 %v436, %v433
        %v476 = vpack.c.b16 %v437, %v434
        %v477 = vpack.c.b16 %v438, %v435
        %v478 = vpack.c.b16 %v442, %v439
        %v479 = vpack.c.b16 %v443, %v440
        %v480 = vpack.c.b16 %v444, %v441
        %v481 = vpack.c.b16 %v448, %v445
        %v482 = vpack.c.b16 %v449, %v446
        %v483 = vpack.c.b16 %v450, %v447
        %v484 = vpack.c.b16 %v454, %v451
        %v485 = vpack.c.b16 %v455, %v452
        %v486 = vpack.c.b16 %v456, %v453
        %v487 = vpack.c.b16 %v460, %v457
        %v488 = vpack.c.b16 %v461, %v458
        %v489 = vpack.c.b16 %v462, %v459
        %v490 = vpack.c.b16 %v466, %v463
        %v491 = vpack.c.b16 %v467, %v464
        %v492 = vpack.c.b16 %v468, %v465
        %517 = vmatprep.subr.bf16.mxu0 %v470
        %518 = vmatpush1.bf16.msra.mxu0 %v469
        %519 = vmatprep.subr.bf16.mxu0 %v473
        %520 = vmatpush1.bf16.msra.mxu0 %v472
        %521 = vmatprep.subr.bf16.mxu0 %v476
        %522 = vmatpush1.bf16.msra.mxu0 %v475
        %523 = vmatprep.subr.bf16.mxu0 %v479
        %524 = vmatpush1.bf16.msra.mxu0 %v478
        %525 = vmatprep.subr.bf16.mxu0 %v482
        %526 = vmatpush1.bf16.msra.mxu0 %v481
        %527 = vmatprep.subr.bf16.mxu0 %v485
        %528 = vmatpush1.bf16.msra.mxu0 %v484
        %529 = vmatprep.subr.bf16.mxu0 %v488
        %530 = vmatpush1.bf16.msra.mxu0 %v487
        %531 = vmatprep.subr.bf16.mxu0 %v491
        %532 = vmatpush1.bf16.msra.mxu0 %v490
        %533 = vmatprep.subr.bf16.mxu0 0
        %534 = vmatpush1.bf16.msra.mxu0 0
        %535 = vmatprep.subr.bf16.mxu0 0
        %536 = vmatpush1.bf16.msra.mxu0 0
        %537 = vmatprep.subr.bf16.mxu0 0
        %538 = vmatpush1.bf16.msra.mxu0 0
        %539 = vmatprep.subr.bf16.mxu0 0
        %540 = vmatpush1.bf16.msra.mxu0 0
        %541 = vmatprep.subr.bf16.mxu0 0
        %542 = vmatpush1.bf16.msra.mxu0 0
        %543 = vmatprep.subr.bf16.mxu0 0
        %544 = vmatpush1.bf16.msra.mxu0 0
        %545 = vmatprep.subr.bf16.mxu0 0
        %546 = vmatpush1.bf16.msra.mxu0 0
        %547 = vmatprep.subr.bf16.mxu0 0
        %548 = vmatpush1.bf16.msra.mxu0 0
        %549 = vmatprep.mubr.bf16.mxu0 0
        %550 = vmatmul.mubr.bf16.gmra.mrb[0].mxu0 %v388
        %v551 = vpop.f32.mrb[0].mxu0
        %v552 = vadd.f32 0.0, %v551
        %v553 = vpop.f32.mrb[0].mxu0
        %v554 = vadd.f32 0.0, %v553
        %v555 = vpop.f32.mrb[0].mxu0
        %v556 = vpop.f32.mrb[0].mxu0
        %557 = vdwg.mxu0
        %558 = vmatprep.subr.bf16.mxu0 0
        %559 = vmatpush1.bf16.msra.mxu0 %v471
        %560 = vmatprep.subr.bf16.mxu0 0
        %561 = vmatpush1.bf16.msra.mxu0 %v474
        %562 = vmatprep.subr.bf16.mxu0 0
        %563 = vmatpush1.bf16.msra.mxu0 %v477
        %564 = vmatprep.subr.bf16.mxu0 0
        %565 = vmatpush1.bf16.msra.mxu0 %v480
        %566 = vmatprep.subr.bf16.mxu0 0
        %567 = vmatpush1.bf16.msra.mxu0 %v483
        %568 = vmatprep.subr.bf16.mxu0 0
        %569 = vmatpush1.bf16.msra.mxu0 %v486
        %570 = vmatprep.subr.bf16.mxu0 0
        %571 = vmatpush1.bf16.msra.mxu0 %v489
        %572 = vmatprep.subr.bf16.mxu0 0
        %573 = vmatpush1.bf16.msra.mxu0 %v492
        %574 = vmatprep.subr.bf16.mxu0 0
        %575 = vmatpush1.bf16.msra.mxu0 0
        %576 = vmatprep.subr.bf16.mxu0 0
        %577 = vmatpush1.bf16.msra.mxu0 0
        %578 = vmatprep.subr.bf16.mxu0 0
        %579 = vmatpush1.bf16.msra.mxu0 0
        %580 = vmatprep.subr.bf16.mxu0 0
        %581 = vmatpush1.bf16.msra.mxu0 0
        %582 = vmatprep.subr.bf16.mxu0 0
        %583 = vmatpush1.bf16.msra.mxu0 0
        %584 = vmatprep.subr.bf16.mxu0 0
        %585 = vmatpush1.bf16.msra.mxu0 0
        %586 = vmatprep.subr.bf16.mxu0 0
        %587 = vmatpush1.bf16.msra.mxu0 0
        %588 = vmatprep.subr.bf16.mxu0 0
        %589 = vmatpush1.bf16.msra.mxu0 0
        %590 = vmatprep.mubr.bf16.mxu0 0
        %591 = vmatmul.mubr.bf16.gmra.mrb[0].mxu0 %v388
        %v592 = vpop.f32.mrb[0].mxu0
        %v593 = vadd.f32 0.0, %v592
        %v594 = vpop.f32.mrb[0].mxu0
        %v595 = vpop.f32.mrb[0].mxu0
        %v596 = vpop.f32.mrb[0].mxu0
        %597 = vdwg.mxu0
        %v598 = vadd.f32 %v385, %v552
        %v599 = vxor.u32 %v598, 2147483648
        %v600 = vmul.f32 %v599, 1.442695
        %v601 = vpow.pop %v600
        %v602 = vadd.f32 %v601, 1.0
        %v603 = vrcp.pop %v602
        %v604 = vmul.f32 1.0, %v603
        %v605 = vadd.f32 %v386, %v554
        %v606 = vxor.u32 %v605, 2147483648
        %v607 = vmul.f32 %v606, 1.442695
        %v608 = vpow.pop %v607
        %v609 = vadd.f32 %v608, 1.0
        %v610 = vrcp.pop %v609
        %v611 = vmul.f32 1.0, %v610
        %v612 = vadd.f32 %v593, %v376
        %v613 = vmul.f32 %v604, %v612
        %v614 = vadd.f32 %v387, %v613
        %v615 = vtanh.pop %v614
        %v616 = vsub.f32 1.0, %v611
        %v617 = vmul.f32 %v616, %v615
        %v618 = vmul.f32 %v611, %v378
        %v619 = vadd.f32 %v617, %v618
        %s620 = smul.u32 %s379, 8
        %s621 = scalar_lea.vmem %s327, %s620
        %622 = vst [vmem:[%s621] sm:$0xff] %v619
        %s623 = smul.u32 %s23, 2
        %s624 = ssub.s32 1, %s623
        %s625 = sadd.s32 %s379, %s624
        %s626 = smul.u32 %s625, 3
        %s627 = smul.addr %s626, 4
        %s628 = scalar_lea.vmem %s301, %s627
        %v629 = vld [vmem:[%s628] sm:$0xff]
        %v630 = vld [vmem:[%s628 + $0x8] sm:$0xf]
        %v631 = vunpack.c.l.bf16 %v629
        %v632 = vunpack.c.h.bf16 %v629
        %v633 = vunpack.c.l.bf16 %v630
        %v634 = vpack.c.bf16 %v619, %v619
        %635 = vmatprep.subr.bf16.mxu0 %v470
        %636 = vmatpush1.bf16.msra.mxu0 %v469
        %637 = vmatprep.subr.bf16.mxu0 %v473
        %638 = vmatpush1.bf16.msra.mxu0 %v472
        %639 = vmatprep.subr.bf16.mxu0 %v476
        %640 = vmatpush1.bf16.msra.mxu0 %v475
        %641 = vmatprep.subr.bf16.mxu0 %v479
        %642 = vmatpush1.bf16.msra.mxu0 %v478
        %643 = vmatprep.subr.bf16.mxu0 %v482
        %644 = vmatpush1.bf16.msra.mxu0 %v481
        %645 = vmatprep.subr.bf16.mxu0 %v485
        %646 = vmatpush1.bf16.msra.mxu0 %v484
        %647 = vmatprep.subr.bf16.mxu0 %v488
        %648 = vmatpush1.bf16.msra.mxu0 %v487
        %649 = vmatprep.subr.bf16.mxu0 %v491
        %650 = vmatpush1.bf16.msra.mxu0 %v490
        %651 = vmatprep.subr.bf16.mxu0 0
        %652 = vmatpush1.bf16.msra.mxu0 0
        %653 = vmatprep.subr.bf16.mxu0 0
        %654 = vmatpush1.bf16.msra.mxu0 0
        %655 = vmatprep.subr.bf16.mxu0 0
        %656 = vmatpush1.bf16.msra.mxu0 0
        %657 = vmatprep.subr.bf16.mxu0 0
        %658 = vmatpush1.bf16.msra.mxu0 0
        %659 = vmatprep.subr.bf16.mxu0 0
        %660 = vmatpush1.bf16.msra.mxu0 0
        %661 = vmatprep.subr.bf16.mxu0 0
        %662 = vmatpush1.bf16.msra.mxu0 0
        %663 = vmatprep.subr.bf16.mxu0 0
        %664 = vmatpush1.bf16.msra.mxu0 0
        %665 = vmatprep.subr.bf16.mxu0 0
        %666 = vmatpush1.bf16.msra.mxu0 0
        %667 = vmatprep.mubr.bf16.mxu0 0
        %668 = vmatmul.mubr.bf16.gmra.mrb[0].mxu0 %v634
        %v669 = vpop.f32.mrb[0].mxu0
        %v670 = vadd.f32 0.0, %v669
        %v671 = vpop.f32.mrb[0].mxu0
        %v672 = vadd.f32 0.0, %v671
        %v673 = vpop.f32.mrb[0].mxu0
        %v674 = vpop.f32.mrb[0].mxu0
        %675 = vdwg.mxu0
        %676 = vmatprep.subr.bf16.mxu0 0
        %677 = vmatpush1.bf16.msra.mxu0 %v471
        %678 = vmatprep.subr.bf16.mxu0 0
        %679 = vmatpush1.bf16.msra.mxu0 %v474
        %680 = vmatprep.subr.bf16.mxu0 0
        %681 = vmatpush1.bf16.msra.mxu0 %v477
        %682 = vmatprep.subr.bf16.mxu0 0
        %683 = vmatpush1.bf16.msra.mxu0 %v480
        %684 = vmatprep.subr.bf16.mxu0 0
        %685 = vmatpush1.bf16.msra.mxu0 %v483
        %686 = vmatprep.subr.bf16.mxu0 0
        %687 = vmatpush1.bf16.msra.mxu0 %v486
        %688 = vmatprep.subr.bf16.mxu0 0
        %689 = vmatpush1.bf16.msra.mxu0 %v489
        %690 = vmatprep.subr.bf16.mxu0 0
        %691 = vmatpush1.bf16.msra.mxu0 %v492
        %692 = vmatprep.subr.bf16.mxu0 0
        %693 = vmatpush1.bf16.msra.mxu0 0
        %694 = vmatprep.subr.bf16.mxu0 0
        %695 = vmatpush1.bf16.msra.mxu0 0
        %696 = vmatprep.subr.bf16.mxu0 0
        %697 = vmatpush1.bf16.msra.mxu0 0
        %698 = vmatprep.subr.bf16.mxu0 0
        %699 = vmatpush1.bf16.msra.mxu0 0
        %700 = vmatprep.subr.bf16.mxu0 0
        %701 = vmatpush1.bf16.msra.mxu0 0
        %702 = vmatprep.subr.bf16.mxu0 0
        %703 = vmatpush1.bf16.msra.mxu0 0
        %704 = vmatprep.subr.bf16.mxu0 0
        %705 = vmatpush1.bf16.msra.mxu0 0
        %706 = vmatprep.subr.bf16.mxu0 0
        %707 = vmatpush1.bf16.msra.mxu0 0
        %708 = vmatprep.mubr.bf16.mxu0 0
        %709 = vmatmul.mubr.bf16.gmra.mrb[0].mxu0 %v634
        %v710 = vpop.f32.mrb[0].mxu0
        %v711 = vadd.f32 0.0, %v710
        %v712 = vpop.f32.mrb[0].mxu0
        %v713 = vpop.f32.mrb[0].mxu0
        %v714 = vpop.f32.mrb[0].mxu0
        %715 = vdwg.mxu0
        %v716 = vadd.f32 %v631, %v670
        %v717 = vxor.u32 %v716, 2147483648
        %v718 = vmul.f32 %v717, 1.442695
        %v719 = vpow.pop %v718
        %v720 = vadd.f32 %v719, 1.0
        %v721 = vrcp.pop %v720
        %v722 = vmul.f32 1.0, %v721
        %v723 = vadd.f32 %v632, %v672
        %v724 = vxor.u32 %v723, 2147483648
        %v725 = vmul.f32 %v724, 1.442695
        %v726 = vpow.pop %v725
        %v727 = vadd.f32 %v726, 1.0
        %v728 = vrcp.pop %v727
        %v729 = vmul.f32 1.0, %v728
        %v730 = vadd.f32 %v711, %v376
        %v731 = vmul.f32 %v722, %v730
        %v732 = vadd.f32 %v633, %v731
        %v733 = vtanh.pop %v732
        %v734 = vsub.f32 1.0, %v729
        %v735 = vmul.f32 %v734, %v733
        %v736 = vmul.f32 %v729, %v619
        %v737 = vadd.f32 %v735, %v736
        %s738 = smul.u32 %s625, 8
        %s739 = scalar_lea.vmem %s327, %s738
        %740 = vst [vmem:[%s739] sm:$0xff] %v737
        %s741 = smul.u32 %s624, 2
        %s742 = sadd.s32 %s379, %s741
        %s743 = smul.u32 %s742, 3
        %s744 = smul.addr %s743, 4
        %s745 = scalar_lea.vmem %s301, %s744
        %v746 = vld [vmem:[%s745] sm:$0xff]
        %v747 = vld [vmem:[%s745 + $0x8] sm:$0xf]
        %v748 = vunpack.c.l.bf16 %v746
        %v749 = vunpack.c.h.bf16 %v746
        %v750 = vunpack.c.l.bf16 %v747
        %v751 = vpack.c.bf16 %v737, %v737
        %752 = vmatprep.subr.bf16.mxu0 %v470
        %753 = vmatpush1.bf16.msra.mxu0 %v469
        %754 = vmatprep.subr.bf16.mxu0 %v473
        %755 = vmatpush1.bf16.msra.mxu0 %v472
        %756 = vmatprep.subr.bf16.mxu0 %v476
        %757 = vmatpush1.bf16.msra.mxu0 %v475
        %758 = vmatprep.subr.bf16.mxu0 %v479
        %759 = vmatpush1.bf16.msra.mxu0 %v478
        %760 = vmatprep.subr.bf16.mxu0 %v482
        %761 = vmatpush1.bf16.msra.mxu0 %v481
        %762 = vmatprep.subr.bf16.mxu0 %v485
        %763 = vmatpush1.bf16.msra.mxu0 %v484
        %764 = vmatprep.subr.bf16.mxu0 %v488
        %765 = vmatpush1.bf16.msra.mxu0 %v487
        %766 = vmatprep.subr.bf16.mxu0 %v491
        %767 = vmatpush1.bf16.msra.mxu0 %v490
        %768 = vmatprep.subr.bf16.mxu0 0
        %769 = vmatpush1.bf16.msra.mxu0 0
        %770 = vmatprep.subr.bf16.mxu0 0
        %771 = vmatpush1.bf16.msra.mxu0 0
        %772 = vmatprep.subr.bf16.mxu0 0
        %773 = vmatpush1.bf16.msra.mxu0 0
        %774 = vmatprep.subr.bf16.mxu0 0
        %775 = vmatpush1.bf16.msra.mxu0 0
        %776 = vmatprep.subr.bf16.mxu0 0
        %777 = vmatpush1.bf16.msra.mxu0 0
        %778 = vmatprep.subr.bf16.mxu0 0
        %779 = vmatpush1.bf16.msra.mxu0 0
        %780 = vmatprep.subr.bf16.mxu0 0
        %781 = vmatpush1.bf16.msra.mxu0 0
        %782 = vmatprep.subr.bf16.mxu0 0
        %783 = vmatpush1.bf16.msra.mxu0 0
        %784 = vmatprep.mubr.bf16.mxu0 0
        %785 = vmatmul.mubr.bf16.gmra.mrb[0].mxu0 %v751
        %v786 = vpop.f32.mrb[0].mxu0
        %v787 = vadd.f32 0.0, %v786
        %v788 = vpop.f32.mrb[0].mxu0
        %v789 = vadd.f32 0.0, %v788
        %v790 = vpop.f32.mrb[0].mxu0
        %v791 = vpop.f32.mrb[0].mxu0
        %792 = vdwg.mxu0
        %793 = vmatprep.subr.bf16.mxu0 0
        %794 = vmatpush1.bf16.msra.mxu0 %v471
        %795 = vmatprep.subr.bf16.mxu0 0
        %796 = vmatpush1.bf16.msra.mxu0 %v474
        %797 = vmatprep.subr.bf16.mxu0 0
        %798 = vmatpush1.bf16.msra.mxu0 %v477
        %799 = vmatprep.subr.bf16.mxu0 0
        %800 = vmatpush1.bf16.msra.mxu0 %v480
        %801 = vmatprep.subr.bf16.mxu0 0
        %802 = vmatpush1.bf16.msra.mxu0 %v483
        %803 = vmatprep.subr.bf16.mxu0 0
        %804 = vmatpush1.bf16.msra.mxu0 %v486
        %805 = vmatprep.subr.bf16.mxu0 0
        %806 = vmatpush1.bf16.msra.mxu0 %v489
        %807 = vmatprep.subr.bf16.mxu0 0
        %808 = vmatpush1.bf16.msra.mxu0 %v492
        %809 = vmatprep.subr.bf16.mxu0 0
        %810 = vmatpush1.bf16.msra.mxu0 0
        %811 = vmatprep.subr.bf16.mxu0 0
        %812 = vmatpush1.bf16.msra.mxu0 0
        %813 = vmatprep.subr.bf16.mxu0 0
        %814 = vmatpush1.bf16.msra.mxu0 0
        %815 = vmatprep.subr.bf16.mxu0 0
        %816 = vmatpush1.bf16.msra.mxu0 0
        %817 = vmatprep.subr.bf16.mxu0 0
        %818 = vmatpush1.bf16.msra.mxu0 0
        %819 = vmatprep.subr.bf16.mxu0 0
        %820 = vmatpush1.bf16.msra.mxu0 0
        %821 = vmatprep.subr.bf16.mxu0 0
        %822 = vmatpush1.bf16.msra.mxu0 0
        %823 = vmatprep.subr.bf16.mxu0 0
        %824 = vmatpush1.bf16.msra.mxu0 0
        %825 = vmatprep.mubr.bf16.mxu0 0
        %826 = vmatmul.mubr.bf16.gmra.mrb[0].mxu0 %v751
        %v827 = vpop.f32.mrb[0].mxu0
        %v828 = vadd.f32 0.0, %v827
        %v829 = vpop.f32.mrb[0].mxu0
        %v830 = vpop.f32.mrb[0].mxu0
        %v831 = vpop.f32.mrb[0].mxu0
        %832 = vdwg.mxu0
        %v833 = vadd.f32 %v748, %v787
        %v834 = vxor.u32 %v833, 2147483648
        %v835 = vmul.f32 %v834, 1.442695
        %v836 = vpow.pop %v835
        %v837 = vadd.f32 %v836, 1.0
        %v838 = vrcp.pop %v837
        %v839 = vmul.f32 1.0, %v838
        %v840 = vadd.f32 %v749, %v789
        %v841 = vxor.u32 %v840, 2147483648
        %v842 = vmul.f32 %v841, 1.442695
        %v843 = vpow.pop %v842
        %v844 = vadd.f32 %v843, 1.0
        %v845 = vrcp.pop %v844
        %v846 = vmul.f32 1.0, %v845
        %v847 = vadd.f32 %v828, %v376
        %v848 = vmul.f32 %v839, %v847
        %v849 = vadd.f32 %v750, %v848
        %v850 = vtanh.pop %v849
        %v851 = vsub.f32 1.0, %v846
        %v852 = vmul.f32 %v851, %v850
        %v853 = vmul.f32 %v846, %v737
        %v854 = vadd.f32 %v852, %v853
        %s855 = smul.u32 %s742, 8
        %s856 = scalar_lea.vmem %s327, %s855
        %857 = vst [vmem:[%s856] sm:$0xff] %v854
        %s858 = smul.u32 %s624, 3
        %s859 = sadd.s32 %s379, %s858
        %s860 = smul.u32 %s859, 3
        %s861 = smul.addr %s860, 4
        %s862 = scalar_lea.vmem %s301, %s861
        %v863 = vld [vmem:[%s862] sm:$0xff]
        %v864 = vld [vmem:[%s862 + $0x8] sm:$0xf]
        %v865 = vunpack.c.l.bf16 %v863
        %v866 = vunpack.c.h.bf16 %v863
        %v867 = vunpack.c.l.bf16 %v864
        %v868 = vpack.c.bf16 %v854, %v854
        %869 = vmatprep.subr.bf16.mxu0 %v470
        %870 = vmatpush1.bf16.msra.mxu0 %v469
        %871 = vmatprep.subr.bf16.mxu0 %v473
        %872 = vmatpush1.bf16.msra.mxu0 %v472
        %873 = vmatprep.subr.bf16.mxu0 %v476
        %874 = vmatpush1.bf16.msra.mxu0 %v475
        %875 = vmatprep.subr.bf16.mxu0 %v479
        %876 = vmatpush1.bf16.msra.mxu0 %v478
        %877 = vmatprep.subr.bf16.mxu0 %v482
        %878 = vmatpush1.bf16.msra.mxu0 %v481
        %879 = vmatprep.subr.bf16.mxu0 %v485
        %880 = vmatpush1.bf16.msra.mxu0 %v484
        %881 = vmatprep.subr.bf16.mxu0 %v488
        %882 = vmatpush1.bf16.msra.mxu0 %v487
        %883 = vmatprep.subr.bf16.mxu0 %v491
        %884 = vmatpush1.bf16.msra.mxu0 %v490
        %885 = vmatprep.subr.bf16.mxu0 0
        %886 = vmatpush1.bf16.msra.mxu0 0
        %887 = vmatprep.subr.bf16.mxu0 0
        %888 = vmatpush1.bf16.msra.mxu0 0
        %889 = vmatprep.subr.bf16.mxu0 0
        %890 = vmatpush1.bf16.msra.mxu0 0
        %891 = vmatprep.subr.bf16.mxu0 0
        %892 = vmatpush1.bf16.msra.mxu0 0
        %893 = vmatprep.subr.bf16.mxu0 0
        %894 = vmatpush1.bf16.msra.mxu0 0
        %895 = vmatprep.subr.bf16.mxu0 0
        %896 = vmatpush1.bf16.msra.mxu0 0
        %897 = vmatprep.subr.bf16.mxu0 0
        %898 = vmatpush1.bf16.msra.mxu0 0
        %899 = vmatprep.subr.bf16.mxu0 0
        %900 = vmatpush1.bf16.msra.mxu0 0
        %901 = vmatprep.mubr.bf16.mxu0 0
        %902 = vmatmul.mubr.bf16.gmra.mrb[0].mxu0 %v868
        %v903 = vpop.f32.mrb[0].mxu0
        %v904 = vadd.f32 0.0, %v903
        %v905 = vpop.f32.mrb[0].mxu0
        %v906 = vadd.f32 0.0, %v905
        %v907 = vpop.f32.mrb[0].mxu0
        %v908 = vpop.f32.mrb[0].mxu0
        %909 = vdwg.mxu0
        %910 = vmatprep.subr.bf16.mxu0 0
        %911 = vmatpush1.bf16.msra.mxu0 %v471
        %912 = vmatprep.subr.bf16.mxu0 0
        %913 = vmatpush1.bf16.msra.mxu0 %v474
        %914 = vmatprep.subr.bf16.mxu0 0
        %915 = vmatpush1.bf16.msra.mxu0 %v477
        %916 = vmatprep.subr.bf16.mxu0 0
        %917 = vmatpush1.bf16.msra.mxu0 %v480
        %918 = vmatprep.subr.bf16.mxu0 0
        %919 = vmatpush1.bf16.msra.mxu0 %v483
        %920 = vmatprep.subr.bf16.mxu0 0
        %921 = vmatpush1.bf16.msra.mxu0 %v486
        %922 = vmatprep.subr.bf16.mxu0 0
        %923 = vmatpush1.bf16.msra.mxu0 %v489
        %924 = vmatprep.subr.bf16.mxu0 0
        %925 = vmatpush1.bf16.msra.mxu0 %v492
        %926 = vmatprep.subr.bf16.mxu0 0
        %927 = vmatpush1.bf16.msra.mxu0 0
        %928 = vmatprep.subr.bf16.mxu0 0
        %929 = vmatpush1.bf16.msra.mxu0 0
        %930 = vmatprep.subr.bf16.mxu0 0
        %931 = vmatpush1.bf16.msra.mxu0 0
        %932 = vmatprep.subr.bf16.mxu0 0
        %933 = vmatpush1.bf16.msra.mxu0 0
        %934 = vmatprep.subr.bf16.mxu0 0
        %935 = vmatpush1.bf16.msra.mxu0 0
        %936 = vmatprep.subr.bf16.mxu0 0
        %937 = vmatpush1.bf16.msra.mxu0 0
        %938 = vmatprep.subr.bf16.mxu0 0
        %939 = vmatpush1.bf16.msra.mxu0 0
        %940 = vmatprep.subr.bf16.mxu0 0
        %941 = vmatpush1.bf16.msra.mxu0 0
        %942 = vmatprep.mubr.bf16.mxu0 0
        %943 = vmatmul.mubr.bf16.gmra.mrb[0].mxu0 %v868
        %v944 = vpop.f32.mrb[0].mxu0
        %v945 = vadd.f32 0.0, %v944
        %v946 = vpop.f32.mrb[0].mxu0
        %v947 = vpop.f32.mrb[0].mxu0
        %v948 = vpop.f32.mrb[0].mxu0
        %949 = vdwg.mxu0
        %v950 = vadd.f32 %v865, %v904
        %v951 = vxor.u32 %v950, 2147483648
        %v952 = vmul.f32 %v951, 1.442695
        %v953 = vpow.pop %v952
        %v954 = vadd.f32 %v953, 1.0
        %v955 = vrcp.pop %v954
        %v956 = vmul.f32 1.0, %v955
        %v957 = vadd.f32 %v866, %v906
        %v958 = vxor.u32 %v957, 2147483648
        %v959 = vmul.f32 %v958, 1.442695
        %v960 = vpow.pop %v959
        %v961 = vadd.f32 %v960, 1.0
        %v962 = vrcp.pop %v961
        %v963 = vmul.f32 1.0, %v962
        %v964 = vadd.f32 %v945, %v376
        %v965 = vmul.f32 %v956, %v964
        %v966 = vadd.f32 %v867, %v965
        %v967 = vtanh.pop %v966
        %v968 = vsub.f32 1.0, %v963
        %v969 = vmul.f32 %v968, %v967
        %v970 = vmul.f32 %v963, %v854
        %v971 = vadd.f32 %v969, %v970
        %s972 = smul.u32 %s859, 8
        %s973 = scalar_lea.vmem %s327, %s972
        %974 = vst [vmem:[%s973] sm:$0xff] %v971
        %975 = vst [vmem:[#allocation2] sm:$0xff] %v971
        %976 = vst [vmem:[%s287] sm:$0xff] %v971
        %s977 = smul.u32 %s24, 2
        %s978 = ssub.s32 1, %s977
        %s979 = smul.u32 %s23, %s978
        %s980 = sadd.s32 %s24, %s979
        %s981 = smul.u32 4, %s980
        %p982 = scmp.lt.s32.totalorder %s23, 1
        %s983 = scalar_select %p982, %s23, 1
        %p984 = scmp.lt.s32.totalorder %s981, 7
        %s985 = scalar_select %p984, %s981, 7
        %s986 = smul.addr %s983, 8
        %s987 = sadd.s32 %s985, %s986
        %s988 = smul.addr %s987, 8
        %s989 = scalar_lea.vmem %s3, %s988
        %s990 = sand.u32 %s163, 1
        %s991 = scalar_lea.sflag [#allocation4], %s990
        %s992 = sand.u32 %s163, 1
        %s993 = smul.addr %s992, 8
        %s994 = scalar_lea.vmem [#allocation3], %s993
        // Predicated region
        $region37: #{rnn_encoder_forward.3} parent=31 // pred_check
          %p995 = pneg %p147
        $region38: #{rnn_encoder_forward.3} parent=31 // pred_check_branch
          %997 = sbr.rel (%p995) target = $region40
        $region39: #{rnn_encoder_forward.3} parent=31 // pred_region
          %s998 = smul.u32 %s24, 2
          %s999 = ssub.s32 1, %s998
          %s1000 = smul.u32 %s23, %s999
          %s1001 = sadd.s32 %s24, %s1000
          %s1002 = smul.u32 4, %s1001
        $region40: #{rnn_encoder_forward.3} parent=31 // pred_fallthru
          _
        // Predicated region
        $region41: #{rnn_encoder_forward.3} parent=31 // pred_check
          %p1003 = pneg %p173
        $region42: #{rnn_encoder_forward.3} parent=31 // pred_check_branch
          %1005 = sbr.rel (%p1003) target = $region44
        $region43: #{rnn_encoder_forward.3} parent=31 // pred_region
          %s1007 = ssub.s32 128, 128
          %1008 = vsyncadd %s991, %s1007
          %s1009 = smul.addr %s23, 128
          %s1010 = scalar_lea.hbm %s4, %s1009
          %s1012 = sshll.u32 %s994, 4
          %s1013 = int_to_ptr.vmem [resolvable:$true] %s1012
          %1015 = dma.vmem_to_hbm [thread:$0]  %s1013, 128, %s1010, %s991
        $region44: #{rnn_encoder_forward.3} parent=31 // pred_fallthru
          _
      $region32: #{rnn_encoder_forward.3} parent=5 // pred_fallthru
        _
      %p1016 = scmp.le.s32.totalorder 2, %s14
      // Predicated region
      $region45: #{rnn_encoder_forward.3} parent=5 // pred_check
        %p1017 = pneg %p1016
      $region46: #{rnn_encoder_forward.3} parent=5 // pred_check_branch
        %1019 = sbr.rel (%p1017) target = $region48
      $region47: #{rnn_encoder_forward.3} parent=5 // pred_region
        %s1020 = ssub.s32 %s14, 2
        // Predicated region
        $region49: #{rnn_encoder_forward.3} parent=47 // pred_check
          %p1021 = pneg %p153
        $region50: #{rnn_encoder_forward.3} parent=47 // pred_check_branch
          %1023 = sbr.rel (%p1021) target = $region52
        $region51: #{rnn_encoder_forward.3} parent=47 // pred_region
          %s1024 = smul.u32 %s26, 2
          %s1025 = ssub.s32 1, %s1024
          %s1026 = smul.u32 %s25, %s1025
          %s1027 = sadd.s32 %s26, %s1026
          %s1028 = smul.u32 4, %s1027
          %p1029 = scmp.lt.s32.totalorder %s25, 1
          %s1030 = scalar_select %p1029, %s25, 1
          %p1031 = scmp.lt.s32.totalorder %s1028, 7
          %s1032 = scalar_select %p1031, %s1028, 7
          %s1033 = smul.addr %s1030, 8
          %s1034 = sadd.s32 %s1032, %s1033
          %s1035 = smul.addr %s1034, 8
          %s1036 = scalar_lea.vmem %s3, %s1035
        $region52: #{rnn_encoder_forward.3} parent=47 // pred_fallthru
          _
        // Predicated region
        $region53: #{rnn_encoder_forward.3} parent=47 // pred_check
          %p1037 = pneg %p179
        $region54: #{rnn_encoder_forward.3} parent=47 // pred_check_branch
          %1039 = sbr.rel (%p1037) target = $region56
        $region55: #{rnn_encoder_forward.3} parent=47 // pred_region
          %s1040 = sand.u32 %s164, 1
          %s1041 = scalar_lea.sflag [#allocation4], %s1040
          %s1042 = sand.u32 %s164, 1
          %s1043 = smul.addr %s1042, 8
          %s1044 = scalar_lea.vmem [#allocation3], %s1043
          %1045 = dma.done %s1041, 128
        $region56: #{rnn_encoder_forward.3} parent=47 // pred_fallthru
          _
      $region48: #{rnn_encoder_forward.3} parent=5 // pred_fallthru
        _
    $region6: #{rnn_encoder_forward.3} parent=1 // loop_footer
      %s18 = sadd.s32 1, %s14
    $region7: #{rnn_encoder_forward.3} parent=1 // loop_footer_branch
      %13 = sbr.rel target = $region3
    $region8: #{rnn_encoder_forward.3} parent=1 // loop_exit
      _
    %1046 = vsyncpa [#allocation4], 1
    %s1047 = scalar_lea.sflag [#allocation4], 1
    %1048 = vsyncpa %s1047, 1

// kernel: rnn_encoder_forward.5
$region0: #{rnn_encoder_forward.5}
  #allocation0 [shape = 'u32[]', space=smem, size = 0x4, offset = 0x4, fixed_abs, tag = 'smem constant byte address 0x4 - core index']
  #allocation1 [shape = 'u32[144,128]{1,0:T(1,128)}', space=vmem, size = 0x12000, scoped, tag = 'internal scratch']
  %s0 = inlined_call_operand.vmem [shape: f32[8,256], index: 0, kind: input, shape index: {}]
  %s1 = inlined_call_operand.vmem [shape: f32[256,128], index: 1, kind: input, shape index: {}]
  %s2 = inlined_call_operand.vmem [shape: f32[1,128], index: 2, kind: input, shape index: {}]
  %s3 = inlined_call_operand.vmem [shape: f32[8,128], index: 3, kind: output, shape index: {}]
  %s4 = sld [smem:[#allocation0]]
  $region22: #{rnn_encoder_forward.5} parent=0
    _
  %s6 = ssub.s32 1, %s4
  %s7 = scalar_select 0, %s6, %s4
  // Predicated region
  $region2: #{rnn_encoder_forward.5} parent=0 // pred_check
    _
  $region3: #{rnn_encoder_forward.5} parent=0 // pred_check_branch
    %9 = sbr.rel (0) target = $region5
  $region4: #{rnn_encoder_forward.5} parent=0 // pred_region
    _
  $region5: #{rnn_encoder_forward.5} parent=0 // pred_fallthru
    _
  // Predicated region
  $region6: #{rnn_encoder_forward.5} parent=0 // pred_check
    _
  $region7: #{rnn_encoder_forward.5} parent=0 // pred_check_branch
    %11 = sbr.rel (0) target = $region9
  $region8: #{rnn_encoder_forward.5} parent=0 // pred_region
    _
  $region9: #{rnn_encoder_forward.5} parent=0 // pred_fallthru
    _
  // Predicated region
  $region10: #{rnn_encoder_forward.5} parent=0 // pred_check
    _
  $region11: #{rnn_encoder_forward.5} parent=0 // pred_check_branch
    %13 = sbr.rel (0) target = $region13
  $region12: #{rnn_encoder_forward.5} parent=0 // pred_region
    _
  $region13: #{rnn_encoder_forward.5} parent=0 // pred_fallthru
    _
  %v14 = vld [vmem:[%s0] sm:$0xff]
  %v15 = vld [vmem:[%s0 + $0x8] sm:$0xff]
  %v16 = vld [vmem:[%s1] sm:$0xff]
  %v17 = vld [vmem:[%s1 + $0x8] sm:$0xff]
  %v18 = vld [vmem:[%s1 + $0x10] sm:$0xff]
  %v19 = vld [vmem:[%s1 + $0x18] sm:$0xff]
  %v20 = vld [vmem:[%s1 + $0x20] sm:$0xff]
  %v21 = vld [vmem:[%s1 + $0x28] sm:$0xff]
  %v22 = vld [vmem:[%s1 + $0x30] sm:$0xff]
  %v23 = vld [vmem:[%s1 + $0x38] sm:$0xff]
  %v24 = vld [vmem:[%s1 + $0x40] sm:$0xff]
  %v25 = vld [vmem:[%s1 + $0x48] sm:$0xff]
  %v26 = vld [vmem:[%s1 + $0x50] sm:$0xff]
  %v27 = vld [vmem:[%s1 + $0x58] sm:$0xff]
  %v28 = vld [vmem:[%s1 + $0x60] sm:$0xff]
  %v29 = vld [vmem:[%s1 + $0x68] sm:$0xff]
  %v30 = vld [vmem:[%s1 + $0x70] sm:$0xff]
  %v31 = vld [vmem:[%s1 + $0x78] sm:$0xff]
  %v32 = vld [vmem:[%s1 + $0x80] sm:$0xff]
  %v33 = vld [vmem:[%s1 + $0x88] sm:$0xff]
  %v34 = vld [vmem:[%s1 + $0x90] sm:$0xff]
  %v35 = vld [vmem:[%s1 + $0x98] sm:$0xff]
  %v36 = vld [vmem:[%s1 + $0xa0] sm:$0xff]
  %v37 = vld [vmem:[%s1 + $0xa8] sm:$0xff]
  %v38 = vld [vmem:[%s1 + $0xb0] sm:$0xff]
  %v39 = vld [vmem:[%s1 + $0xb8] sm:$0xff]
  %v40 = vld [vmem:[%s1 + $0xc0] sm:$0xff]
  %v41 = vld [vmem:[%s1 + $0xc8] sm:$0xff]
  %v42 = vld [vmem:[%s1 + $0xd0] sm:$0xff]
  %v43 = vld [vmem:[%s1 + $0xd8] sm:$0xff]
  %v44 = vld [vmem:[%s1 + $0xe0] sm:$0xff]
  %v45 = vld [vmem:[%s1 + $0xe8] sm:$0xff]
  %v46 = vld [vmem:[%s1 + $0xf0] sm:$0xff]
  %v47 = vld [vmem:[%s1 + $0xf8] sm:$0xff]
  %v48 = vld [vmem:[%s2] sm:$0x1]
  %v50 = vlaneseq
  %v51 = vshrl.u32 %v50, 7
  %v52 = vsub.s32 0, %v51
  %v53 = vrot.slane %v48, %v52
  %55 = vmatprep.subr.mxu0 0.0
  %56 = vmatpush1.msra.mxu0 %v16
  %57 = vmatprep.subr.mxu0 0.0
  %58 = vmatpush1.msra.mxu0 %v17
  %59 = vmatprep.subr.mxu0 0.0
  %60 = vmatpush1.msra.mxu0 %v18
  %61 = vmatprep.subr.mxu0 0.0
  %62 = vmatpush1.msra.mxu0 %v19
  %63 = vmatprep.subr.mxu0 0.0
  %64 = vmatpush1.msra.mxu0 %v20
  %65 = vmatprep.subr.mxu0 0.0
  %66 = vmatpush1.msra.mxu0 %v21
  %67 = vmatprep.subr.mxu0 0.0
  %68 = vmatpush1.msra.mxu0 %v22
  %69 = vmatprep.subr.mxu0 0.0
  %70 = vmatpush1.msra.mxu0 %v23
  %71 = vmatprep.subr.mxu0 0.0
  %72 = vmatpush1.msra.mxu0 %v24
  %73 = vmatprep.subr.mxu0 0.0
  %74 = vmatpush1.msra.mxu0 %v25
  %75 = vmatprep.subr.mxu0 0.0
  %76 = vmatpush1.msra.mxu0 %v26
  %77 = vmatprep.subr.mxu0 0.0
  %78 = vmatpush1.msra.mxu0 %v27
  %79 = vmatprep.subr.mxu0 0.0
  %80 = vmatpush1.msra.mxu0 %v28
  %81 = vmatprep.subr.mxu0 0.0
  %82 = vmatpush1.msra.mxu0 %v29
  %83 = vmatprep.subr.mxu0 0.0
  %84 = vmatpush1.msra.mxu0 %v30
  %85 = vmatprep.subr.mxu0 0.0
  %86 = vmatpush1.msra.mxu0 %v31
  %87 = vmatprep.subr.mxu0 0.0
  %88 = vmatpush1.msra.mxu0 %v32
  %89 = vmatprep.subr.mxu0 0.0
  %90 = vmatpush1.msra.mxu0 %v33
  %91 = vmatprep.subr.mxu0 0.0
  %92 = vmatpush1.msra.mxu0 %v34
  %93 = vmatprep.subr.mxu0 0.0
  %94 = vmatpush1.msra.mxu0 %v35
  %95 = vmatprep.subr.mxu0 0.0
  %96 = vmatpush1.msra.mxu0 %v36
  %97 = vmatprep.subr.mxu0 0.0
  %98 = vmatpush1.msra.mxu0 %v37
  %99 = vmatprep.subr.mxu0 0.0
  %100 = vmatpush1.msra.mxu0 %v38
  %101 = vmatprep.subr.mxu0 0.0
  %102 = vmatpush1.msra.mxu0 %v39
  %103 = vmatprep.subr.mxu0 0.0
  %104 = vmatpush1.msra.mxu0 %v40
  %105 = vmatprep.subr.mxu0 0.0
  %106 = vmatpush1.msra.mxu0 %v41
  %107 = vmatprep.subr.mxu0 0.0
  %108 = vmatpush1.msra.mxu0 %v42
  %109 = vmatprep.subr.mxu0 0.0
  %110 = vmatpush1.msra.mxu0 %v43
  %111 = vmatprep.subr.mxu0 0.0
  %112 = vmatpush1.msra.mxu0 %v44
  %113 = vmatprep.subr.mxu0 0.0
  %114 = vmatpush1.msra.mxu0 %v45
  %115 = vmatprep.subr.mxu0 0.0
  %116 = vmatpush1.msra.mxu0 %v46
  %117 = vmatprep.subr.mxu0 0.0
  %118 = vmatpush1.msra.mxu0 %v47
  %119 = vmatprep.mubr.f32.mxu0 %v15
  %120 = vmatmul.mubr.f32.gmra.mrb[0].mxu0 %v14
  %v121 = vpop.f32.mrb[0].mxu0
  %v122 = vadd.f32 %v53, %v121
  %v123 = vpop.f32.mrb[0].mxu0
  %124 = vdwg.mxu0
  %125 = vst [vmem:[%s3] sm:$0xff] %v122
  // Predicated region
  $region14: #{rnn_encoder_forward.5} parent=0 // pred_check
    _
  $region15: #{rnn_encoder_forward.5} parent=0 // pred_check_branch
    %127 = sbr.rel (0) target = $region17
  $region16: #{rnn_encoder_forward.5} parent=0 // pred_region
    _
  $region17: #{rnn_encoder_forward.5} parent=0 // pred_fallthru
    _
  // Predicated region
  $region18: #{rnn_encoder_forward.5} parent=0 // pred_check
    _
  $region19: #{rnn_encoder_forward.5} parent=0 // pred_check_branch
    %129 = sbr.rel (0) target = $region21
  $region20: #{rnn_encoder_forward.5} parent=0 // pred_region
    _
  $region21: #{rnn_encoder_forward.5} parent=0 // pred_fallthru
    _

</llo_original>
